<compile_context>
chip_gen: v5e
topology: v5e:2x2
jax: 0.10.0
libtpu: 0.0.40
codegen_flags: <defaults>
</compile_context>

<pallas_src>
import functools

import jax
import jax.numpy as jnp
from jax.experimental import pallas as pl
from jax.experimental.pallas import tpu as pltpu

LANE = 128
_VMEM_LIMIT = 32 * 1024 * 1024  # safe on v5e/v6e (128 MiB) and v7x (64 MiB)


def _round_up(x, m):
    return ((x + m - 1) // m) * m


def _pick_tm(mp):
    """Largest M tile <= 512 rows dividing mp, preferring >=2 grid steps (megacore)."""
    cands = [t for t in (512, 384, 256, 128, 64, 32, 16, 8) if t <= mp and mp % t == 0]
    for t in cands:
        if mp // t >= 2:
            return t
    return cands[0] if cands else mp


# ------------------------ fused matmul (+bias/+res/+ReLU) ---------------------

def _mm_kernel_factory(relu, has_res, dual):
    def kernel(*refs):
        if dual:
            x_ref, w_ref, r_ref, wr_ref, b_ref, o_ref = refs
        elif has_res:
            x_ref, w_ref, r_ref, b_ref, o_ref = refs
        else:
            x_ref, w_ref, b_ref, o_ref = refs
        acc = jnp.dot(x_ref[...], w_ref[...], preferred_element_type=jnp.float32)
        if dual:                                   # fused shortcut 1x1 conv
            acc = acc + jnp.dot(r_ref[...], wr_ref[...],
                                preferred_element_type=jnp.float32)
        elif has_res:                              # identity residual add
            acc = acc + r_ref[...].astype(jnp.float32)
        acc = acc + b_ref[...]                     # folded BN bias (f32 epilogue)
        if relu:
            acc = jnp.maximum(acc, 0.0)
        o_ref[...] = acc.astype(o_ref.dtype)
    return kernel


def fused_matmul(x, w, b, residual=None, res_w=None, relu=True, out_dtype=jnp.float32):
    """out = [relu](x @ w + b [+ residual | + residual @ res_w]).

    x:(M,K) bf16, w:(K,N) bf16 (BN scale folded), b:(N,) f32; K, N are lane-padded.
    """
    M, K = x.shape
    Kw, Nout = w.shape
    assert K == Kw and K % LANE == 0 and Nout % LANE == 0
    Mp = _round_up(M, 128)
    pad_m = Mp - M
    if pad_m:
        x = jnp.pad(x, ((0, pad_m), (0, 0)))
        if residual is not None:
            residual = jnp.pad(residual, ((0, pad_m), (0, 0)))

    tm = _pick_tm(Mp)
    grid = (Mp // tm,)

    in_specs = [pl.BlockSpec((tm, K), lambda i: (i, 0)),
                pl.BlockSpec((K, Nout), lambda i: (0, 0))]
    args = [x.astype(jnp.bfloat16), w.astype(jnp.bfloat16)]
    flops = 2 * Mp * K * Nout
    if residual is not None:
        Kr = residual.shape[1]
        in_specs.append(pl.BlockSpec((tm, Kr), lambda i: (i, 0)))
        args.append(residual)
        if res_w is not None:
            in_specs.append(pl.BlockSpec((Kr, Nout), lambda i: (0, 0)))
            args.append(res_w.astype(jnp.bfloat16))
            flops += 2 * Mp * Kr * Nout
    in_specs.append(pl.BlockSpec((1, Nout), lambda i: (0, 0)))
    args.append(b.reshape(1, Nout).astype(jnp.float32))

    bytes_accessed = int(sum(a.size * a.dtype.itemsize for a in args)
                         + Mp * Nout * jnp.dtype(out_dtype).itemsize)

    out = pl.pallas_call(
        _mm_kernel_factory(relu, residual is not None, res_w is not None),
        out_shape=jax.ShapeDtypeStruct((Mp, Nout), out_dtype),
        grid=grid,
        in_specs=in_specs,
        out_specs=pl.BlockSpec((tm, Nout), lambda i: (i, 0)),
        compiler_params=pltpu.CompilerParams(
            dimension_semantics=("parallel",),
            vmem_limit_bytes=_VMEM_LIMIT),
        cost_estimate=pl.CostEstimate(flops=flops, transcendentals=0,
                                      bytes_accessed=bytes_accessed),
    )(*args)
    return out[:M] if pad_m else out


def _mm_reference(x, w, b, residual=None, res_w=None, relu=True, out_dtype=jnp.float32):
    """Numerics-matched (bf16 operand, f32 accumulate) non-Pallas reference."""
    acc = jnp.dot(x, w, preferred_element_type=jnp.float32)
    if residual is not None:
        if res_w is not None:
            acc = acc + jnp.dot(residual, res_w, preferred_element_type=jnp.float32)
        else:
            acc = acc + residual.astype(jnp.float32)
    acc = acc + b.astype(jnp.float32)[None, :]
    if relu:
        acc = jnp.maximum(acc, 0.0)
    return acc.astype(out_dtype)


# ------------------ fused 3x3 conv (9-tap in-kernel accumulation) -------------

def _phase_decompose(x, ksize, stride, pad):
    """Pad spatially and split into stride*stride phase grids so each 3x3 tap is
    a unit-stride static slice inside the kernel (no im2col, no strided access)."""
    N, H, W, C = x.shape
    xp = jnp.pad(x, ((0, 0), (pad, pad), (pad, pad), (0, 0)))
    Hp, Wp = H + 2 * pad, W + 2 * pad
    s = stride
    Ho = (Hp - ksize) // s + 1
    Wo = (Wp - ksize) // s + 1
    Hph = -(-Hp // s)
    Wph = -(-Wp // s)
    grids = []
    for py in range(s):
        for px in range(s):
            g = xp[:, py::s, px::s, :]
            g = jnp.pad(g, ((0, 0), (0, Hph - g.shape[1]), (0, Wph - g.shape[2]), (0, 0)))
            grids.append(g)
    phases = jnp.stack(grids, axis=1)                       # (N, s*s, Hph, Wph, C)
    taps = [((ky % s) * s + (kx % s), ky // s, kx // s)
            for ky in range(ksize) for kx in range(ksize)]  # (phase, row_off, col_off)
    return phases, taps, Ho, Wo


def conv3x3_fused(phases, w_taps, b, taps, Ho, Wo, relu=True, out_dtype=jnp.bfloat16):
    """phases:(N,n_ph,Hph,Wph,C) bf16; w_taps:(9,C,Co) bf16; b:(Co,) f32 -> (N,Ho*Wo,Co)."""
    N, n_ph, Hph, Wph, C = phases.shape
    n_tap, _, Co = w_taps.shape
    HoWo = Ho * Wo
    ph_flat = phases.reshape(N * n_ph, Hph, Wph, C)

    def kernel(x_ref, w_ref, b_ref, o_ref, acc_ref):
        for t, (pidx, r0, c0) in enumerate(taps):
            # Static slice of the current image's phase grid.  Go through f32 for
            # the (Ho, Wo, C) -> (Ho*Wo, C) collapse (native 8-sublane layout),
            # then back to bf16 for the MXU.
            patch = x_ref[pidx, pl.ds(r0, Ho), pl.ds(c0, Wo), :].astype(jnp.float32)
            patch = patch.reshape(HoWo, C).astype(jnp.bfloat16)
            contrib = jnp.dot(patch, w_ref[t], preferred_element_type=jnp.float32)
            if t == 0:
                acc_ref[...] = contrib
            else:
                acc_ref[...] += contrib
        acc = acc_ref[...] + b_ref[...]
        if relu:
            acc = jnp.maximum(acc, 0.0)
        o_ref[0] = acc.astype(o_ref.dtype)

    return pl.pallas_call(
        kernel,
        out_shape=jax.ShapeDtypeStruct((N, HoWo, Co), out_dtype),
        grid=(N,),
        in_specs=[
            pl.BlockSpec((n_ph, Hph, Wph, C), lambda n: (n, 0, 0, 0)),
            pl.BlockSpec((n_tap, C, Co), lambda n: (0, 0, 0)),
            pl.BlockSpec((1, Co), lambda n: (0, 0)),
        ],
        out_specs=pl.BlockSpec((1, HoWo, Co), lambda n: (n, 0, 0)),
        scratch_shapes=[pltpu.VMEM((HoWo, Co), jnp.float32)],
        compiler_params=pltpu.CompilerParams(
            dimension_semantics=("parallel",),
            vmem_limit_bytes=_VMEM_LIMIT),
        cost_estimate=pl.CostEstimate(
            flops=2 * N * HoWo * C * Co * n_tap,
            transcendentals=0,
            bytes_accessed=int(ph_flat.size * 2 + w_taps.size * 2 + Co * 4
                               + N * HoWo * Co * jnp.dtype(out_dtype).itemsize)),
    )(ph_flat, w_taps, b.reshape(1, Co).astype(jnp.float32))


def _conv3x3_reference(phases, w_taps, b, taps, Ho, Wo, relu=True, out_dtype=jnp.bfloat16):
    """Numerics-matched non-Pallas reference for the fused 3x3 conv kernel."""
    N = phases.shape[0]
    Co = w_taps.shape[-1]
    acc = jnp.zeros((N, Ho, Wo, Co), jnp.float32)
    for t, (pidx, r0, c0) in enumerate(taps):
        patch = phases[:, pidx, r0:r0 + Ho, c0:c0 + Wo, :]
        acc = acc + jnp.einsum('nhwc,cd->nhwd', patch, w_taps[t],
                               preferred_element_type=jnp.float32)
    acc = acc + b.astype(jnp.float32)
    if relu:
        acc = jnp.maximum(acc, 0.0)
    return acc.reshape(N, Ho * Wo, Co).astype(out_dtype)


# ----------------------- BN folding / weight preparation ----------------------

def _fold_conv1x1(w, b, bn, cin_p, cout_p, eps=1e-5):
    gamma, beta, mean, var = bn
    s = gamma / jnp.sqrt(var + eps)
    cout, cin = w.shape[:2]
    wm = w.reshape(cout, cin).T * s[None, :]                 # (cin, cout), scale folded
    bb = (b - mean) * s + beta
    wm = jnp.pad(wm, ((0, cin_p - cin), (0, cout_p - cout))).astype(jnp.bfloat16)
    bb = jnp.pad(bb, (0, cout_p - cout)).astype(jnp.float32)
    return wm, bb


def _fold_conv3x3(w, b, bn, cin_p, cout_p, eps=1e-5):
    gamma, beta, mean, var = bn
    s = gamma / jnp.sqrt(var + eps)
    cout, cin, kh, kw = w.shape
    mats = []
    for ky in range(kh):
        for kx in range(kw):
            m = w[:, :, ky, kx].T * s[None, :]               # (cin, cout), scale folded
            mats.append(jnp.pad(m, ((0, cin_p - cin), (0, cout_p - cout))))
    wt = jnp.stack(mats, axis=0).astype(jnp.bfloat16)        # (kh*kw, cin_p, cout_p)
    bb = jnp.pad((b - mean) * s + beta, (0, cout_p - cout)).astype(jnp.float32)
    return wt, bb


# ------------------------------ forward pass ----------------------------------

@functools.partial(jax.jit, static_argnames=("stride", "downsample", "use_pallas"))
def residual_block_forward(x_nchw, params, stride, downsample, use_pallas=True):
    mm = fused_matmul if use_pallas else _mm_reference
    c3 = conv3x3_fused if use_pallas else _conv3x3_reference

    # NCHW -> NHWC (PyTorch ingress; channels go to the lane axis)
    x = jnp.transpose(x_nchw, (0, 2, 3, 1)).astype(jnp.float32)
    N, H, W, Cin = x.shape
    hid = params['w1'].shape[0]
    out_d = params['w3'].shape[0]
    Cin_p, hid_p, out_p = (_round_up(c, LANE) for c in (Cin, hid, out_d))

    # fold BN into weights (scale) + bias, lane-pad channels, cast weights bf16
    w1m, b1v = _fold_conv1x1(params['w1'], params['b1'], params['bn1'], Cin_p, hid_p)
    w2t, b2v = _fold_conv3x3(params['w2'], params['b2'], params['bn2'], hid_p, hid_p)
    w3m, b3v = _fold_conv1x1(params['w3'], params['b3'], params['bn3'], hid_p, out_p)

    # input: lane-pad channels, cast to bf16 (MXU operand dtype)
    xpad = jnp.pad(x, ((0, 0), (0, 0), (0, 0), (0, Cin_p - Cin))).astype(jnp.bfloat16)

    # ---- layer_1: 1x1 conv + folded BN + ReLU (one fused matmul kernel) ----
    y1 = mm(xpad.reshape(N * H * W, Cin_p), w1m, b1v, relu=True, out_dtype=jnp.bfloat16)
    y1 = y1.reshape(N, H, W, hid_p)

    # ---- layer_2: 3x3 strided conv + folded BN + ReLU (9-tap in-kernel accumulation) ----
    phases, taps, Ho, Wo = _phase_decompose(y1, 3, stride, pad=1)
    y2 = c3(phases, w2t, b2v, taps, Ho, Wo, relu=True, out_dtype=jnp.bfloat16)
    y2 = y2.reshape(N * Ho * Wo, hid_p)

    # ---- layer_3 + residual + final ReLU: single fused kernel ----
    if downsample:
        # shortcut 1x1 strided conv fused into the same kernel (dual matmul)
        wdm, bdv = _fold_conv1x1(params['wd'], params['bd'], params['bnd'], Cin_p, out_p)
        xs = xpad[:, ::stride, ::stride, :].reshape(N * Ho * Wo, Cin_p)
        out2d = mm(y2, w3m, b3v + bdv, residual=xs, res_w=wdm, relu=True,
                   out_dtype=jnp.float32)
    else:
        assert stride == 1 and Cin == out_d, "identity shortcut needs stride=1, Cin==out_d"
        out2d = mm(y2, w3m, b3v, residual=xpad.reshape(N * H * W, Cin_p), relu=True,
                   out_dtype=jnp.float32)

    out = out2d.reshape(N, Ho, Wo, out_p)[..., :out_d]
    return jnp.transpose(out, (0, 3, 1, 2))                  # NHWC -> NCHW (PyTorch egress)


# --------------------- full-f32 module-semantics reference --------------------

def residual_block_reference_f32(x_nchw, params, stride, downsample, eps=1e-5):
    def conv(x, w, b, s, p):
        out = jax.lax.conv_general_dilated(
            x, jnp.transpose(w, (2, 3, 1, 0)), (s, s), [(p, p), (p, p)],
            dimension_numbers=('NHWC', 'HWIO', 'NHWC'))
        return out + b.reshape(1, 1, 1, -1)

    def bn(x, stats):
        g, be, m, v = stats
        return (x - m) * (g / jnp.sqrt(v + eps)) + be

    x = jnp.transpose(x_nchw, (0, 2, 3, 1))
    y = jax.nn.relu(bn(conv(x, params['w1'], params['b1'], 1, 0), params['bn1']))
    y = jax.nn.relu(bn(conv(y, params['w2'], params['b2'], stride, 1), params['bn2']))
    y = bn(conv(y, params['w3'], params['b3'], 1, 0), params['bn3'])
    if downsample:
        r = bn(conv(x, params['wd'], params['bd'], stride, 0), params['bnd'])
    else:
        r = x
    return jnp.transpose(jax.nn.relu(y + r), (0, 3, 1, 2))


# ----------------------------------- main --------------------------------------

if __name__ == "__main__":

    def bn_params(k, c):
        k1, k2, k3, k4 = jax.random.split(k, 4)
        gamma = 1.0 + 0.1 * jax.random.normal(k1, (c,), jnp.float32)
        beta = 0.1 * jax.random.normal(k2, (c,), jnp.float32)
        mean = 0.1 * jax.random.normal(k3, (c,), jnp.float32)
        var = 1.0 + 0.1 * jnp.abs(jax.random.normal(k4, (c,), jnp.float32))
        return (gamma, beta, mean, var)

    def make_params(key, in_d, hid_d, out_d, downsample):
        ks = jax.random.split(key, 12)
        p = {
            'w1': 0.1 * jax.random.normal(ks[0], (hid_d, in_d, 1, 1), jnp.float32),
            'b1': 0.05 * jax.random.normal(ks[1], (hid_d,), jnp.float32),
            'bn1': bn_params(ks[2], hid_d),
            'w2': 0.1 * jax.random.normal(ks[3], (hid_d, hid_d, 3, 3), jnp.float32),
            'b2': 0.05 * jax.random.normal(ks[4], (hid_d,), jnp.float32),
            'bn2': bn_params(ks[5], hid_d),
            'w3': 0.1 * jax.random.normal(ks[6], (out_d, hid_d, 1, 1), jnp.float32),
            'b3': 0.05 * jax.random.normal(ks[7], (out_d,), jnp.float32),
            'bn3': bn_params(ks[8], out_d),
        }
        if downsample:
            p['wd'] = 0.1 * jax.random.normal(ks[9], (out_d, in_d, 1, 1), jnp.float32)
            p['bd'] = 0.05 * jax.random.normal(ks[10], (out_d,), jnp.float32)
            p['bnd'] = bn_params(ks[11], out_d)
        return p

    def run_case(key, N, in_d, hid_d, out_d, H, W, stride, downsample):
        kp, kx = jax.random.split(key)
        params = make_params(kp, in_d, hid_d, out_d, downsample)
        x = jax.random.normal(kx, (N, in_d, H, W), jnp.float32)     # NCHW like PyTorch

        out = residual_block_forward(x, params, stride, downsample, use_pallas=True)
        out = jax.block_until_ready(out)
        Ho = (H - 1) // stride + 1
        assert out.shape == (N, out_d, Ho, Ho), out.shape

        # tight check: identical math (folded BN, bf16 MXU operands) without Pallas
        ref_match = residual_block_forward(x, params, stride, downsample, use_pallas=False)
        err_tight = float(jnp.max(jnp.abs(out - ref_match)))
        assert err_tight < 1e-3, f"kernel vs matched reference: {err_tight}"

        # loose sanity check vs the full-f32 module semantics (bf16 rounding bound)
        ref_f32 = residual_block_reference_f32(x, params, stride, downsample)
        err_f32 = float(jnp.max(jnp.abs(out - ref_f32)))
        assert err_f32 < 5e-2, f"kernel vs f32 module reference: {err_f32}"

    k1, k2 = jax.random.split(jax.random.PRNGKey(0))
    # bottleneck with stride-2 + downsample shortcut (fused dual-matmul layer_3)
    run_case(k1, N=2, in_d=8, hid_d=16, out_d=32, H=16, W=16, stride=2, downsample=True)
    # identity shortcut variant (stride 1, in_d == out_d)
    run_case(k2, N=2, in_d=32, hid_d=16, out_d=32, H=16, W=16, stride=1, downsample=False)

    print("KERNEL_OK")
</pallas_src>

<mosaic_0001>
module attributes {stable_mosaic.version = 11 : i64} {
  func.func @kernel(%arg0: i32, %arg1: memref<256x128xbf16, #tpu.memory_space<vmem>>, %arg2: memref<128x128xbf16, #tpu.memory_space<vmem>>, %arg3: memref<1x128xf32, #tpu.memory_space<vmem>>, %arg4: memref<256x128xbf16, #tpu.memory_space<vmem>>) attributes {dimension_semantics = [#tpu.dimension_semantics<parallel>], iteration_bounds = array<i64: 2>, scalar_prefetch = 0 : i64, scratch_operands = 0 : i64, tpu.core_type = #tpu.core_type<tc>, window_params = [{transform_indices = @transform_0, window_bounds = array<i64: 256, 128>}, {pipeline_mode = #tpu.pipeline_mode<synchronous>, transform_indices = @transform_1, window_bounds = array<i64: 128, 128>}, {pipeline_mode = #tpu.pipeline_mode<synchronous>, transform_indices = @transform_2, window_bounds = array<i64: 1, 128>}, {transform_indices = @transform_3, window_bounds = array<i64: 256, 128>}]} {
    %c0 = arith.constant 0 : index
    %c0_0 = arith.constant 0 : index
    %0 = vector.load %arg1[%c0, %c0_0] : memref<256x128xbf16, #tpu.memory_space<vmem>>, vector<256x128xbf16>
    %c0_1 = arith.constant 0 : index
    %c0_2 = arith.constant 0 : index
    %1 = vector.load %arg2[%c0_1, %c0_2] : memref<128x128xbf16, #tpu.memory_space<vmem>>, vector<128x128xbf16>
    %cst = arith.constant dense<0.000000e+00> : vector<256x128xf32>
    %2 = tpu.matmul %0, %1, %cst {dimension_numbers = #tpu.dot_dimension_numbers<[1], [0], [0], [1], [0, 0, 1, 1], [], []>} : vector<256x128xbf16>, vector<128x128xbf16>, vector<256x128xf32> -> vector<256x128xf32>
    %c0_3 = arith.constant 0 : index
    %c0_4 = arith.constant 0 : index
    %3 = vector.load %arg3[%c0_3, %c0_4] : memref<1x128xf32, #tpu.memory_space<vmem>>, vector<1x128xf32>
    %4 = vector.broadcast %3 : vector<1x128xf32> to vector<256x128xf32>
    %5 = arith.addf %2, %4 : vector<256x128xf32>
    %cst_5 = arith.constant 0.000000e+00 : f32
    %6 = vector.broadcast %cst_5 : f32 to vector<256x128xf32>
    %7 = arith.maximumf %5, %6 : vector<256x128xf32>
    %8 = arith.truncf %7 : vector<256x128xf32> to vector<256x128xbf16>
    %c0_6 = arith.constant 0 : index
    %c0_7 = arith.constant 0 : index
    %9 = vector.load %arg4[%c0_6, %c0_7] : memref<256x128xbf16, #tpu.memory_space<vmem>>, vector<256x128xbf16>
    tpu.vector_store %arg4[%c0_6, %c0_7], %8 {strides = array<i32>} : memref<256x128xbf16, #tpu.memory_space<vmem>>, vector<256x128xbf16>,
    return
  }
  func.func @transform_0(%arg0: i32) -> (i32, i32) {
    %c0_i32 = arith.constant 0 : i32
    %c0_i32_0 = arith.constant 0 : i32
    return %arg0, %c0_i32 : i32, i32
  }
  func.func @transform_1(%arg0: i32) -> (i32, i32) {
    %c0_i32 = arith.constant 0 : i32
    %c0_i32_0 = arith.constant 0 : i32
    %c0_i32_1 = arith.constant 0 : i32
    return %c0_i32, %c0_i32_0 : i32, i32
  }
  func.func @transform_2(%arg0: i32) -> (i32, i32) {
    %c0_i32 = arith.constant 0 : i32
    %c0_i32_0 = arith.constant 0 : i32
    %c0_i32_1 = arith.constant 0 : i32
    return %c0_i32, %c0_i32_0 : i32, i32
  }
  func.func @transform_3(%arg0: i32) -> (i32, i32) {
    %c0_i32 = arith.constant 0 : i32
    %c0_i32_0 = arith.constant 0 : i32
    return %arg0, %c0_i32 : i32, i32
  }
}

module attributes {stable_mosaic.version = 11 : i64} {
  func.func @kernel(%arg0: i32, %arg1: memref<4x9x9x128xbf16, #tpu.memory_space<vmem>>, %arg2: memref<9x128x128xbf16, #tpu.memory_space<vmem>>, %arg3: memref<1x128xf32, #tpu.memory_space<vmem>>, %arg4: memref<1x64x128xbf16, #tpu.memory_space<vmem>>, %arg5: memref<64x128xf32, #tpu.memory_space<vmem>>) attributes {dimension_semantics = [#tpu.dimension_semantics<parallel>], iteration_bounds = array<i64: 2>, scalar_prefetch = 0 : i64, scratch_operands = 1 : i64, tpu.core_type = #tpu.core_type<tc>, window_params = [{transform_indices = @transform_0, window_bounds = array<i64: 4, 9, 9, 128>}, {pipeline_mode = #tpu.pipeline_mode<synchronous>, transform_indices = @transform_1, window_bounds = array<i64: 9, 128, 128>}, {pipeline_mode = #tpu.pipeline_mode<synchronous>, transform_indices = @transform_2, window_bounds = array<i64: 1, 128>}, {transform_indices = @transform_3, window_bounds = array<i64: 1, 64, 128>}]} {
    %c0 = arith.constant 0 : index
    %c0_0 = arith.constant 0 : index
    %c0_1 = arith.constant 0 : index
    %c0_2 = arith.constant 0 : index
    %0 = vector.load %arg1[%c0, %c0_0, %c0_1, %c0_2] : memref<4x9x9x128xbf16, #tpu.memory_space<vmem>>, vector<1x8x8x128xbf16>
    %1 = vector.shape_cast %0 : vector<1x8x8x128xbf16> to vector<8x8x128xbf16>
    %2 = arith.extf %1 : vector<8x8x128xbf16> to vector<8x8x128xf32>
    %3 = vector.shape_cast %2 : vector<8x8x128xf32> to vector<64x128xf32>
    %4 = arith.truncf %3 : vector<64x128xf32> to vector<64x128xbf16>
    %c0_3 = arith.constant 0 : index
    %c0_4 = arith.constant 0 : index
    %c0_5 = arith.constant 0 : index
    %5 = vector.load %arg2[%c0_3, %c0_4, %c0_5] : memref<9x128x128xbf16, #tpu.memory_space<vmem>>, vector<1x128x128xbf16>
    %6 = vector.shape_cast %5 : vector<1x128x128xbf16> to vector<128x128xbf16>
    %cst = arith.constant dense<0.000000e+00> : vector<64x128xf32>
    %7 = tpu.matmul %4, %6, %cst {dimension_numbers = #tpu.dot_dimension_numbers<[1], [0], [0], [1], [0, 0, 1, 1], [], []>} : vector<64x128xbf16>, vector<128x128xbf16>, vector<64x128xf32> -> vector<64x128xf32>
    %c0_6 = arith.constant 0 : index
    %c0_7 = arith.constant 0 : index
    %8 = vector.load %arg5[%c0_6, %c0_7] : memref<64x128xf32, #tpu.memory_space<vmem>>, vector<64x128xf32>
    tpu.vector_store %arg5[%c0_6, %c0_7], %7 {strides = array<i32>} : memref<64x128xf32, #tpu.memory_space<vmem>>, vector<64x128xf32>,
    %c1 = arith.constant 1 : index
    %c0_8 = arith.constant 0 : index
    %c0_9 = arith.constant 0 : index
    %c0_10 = arith.constant 0 : index
    %9 = vector.load %arg1[%c1, %c0_8, %c0_9, %c0_10] : memref<4x9x9x128xbf16, #tpu.memory_space<vmem>>, vector<1x8x8x128xbf16>
    %10 = vector.shape_cast %9 : vector<1x8x8x128xbf16> to vector<8x8x128xbf16>
    %11 = arith.extf %10 : vector<8x8x128xbf16> to vector<8x8x128xf32>
    %12 = vector.shape_cast %11 : vector<8x8x128xf32> to vector<64x128xf32>
    %13 = arith.truncf %12 : vector<64x128xf32> to vector<64x128xbf16>
    %c1_11 = arith.constant 1 : index
    %c0_12 = arith.constant 0 : index
    %c0_13 = arith.constant 0 : index
    %14 = vector.load %arg2[%c1_11, %c0_12, %c0_13] : memref<9x128x128xbf16, #tpu.memory_space<vmem>>, vector<1x128x128xbf16>
    %15 = vector.shape_cast %14 : vector<1x128x128xbf16> to vector<128x128xbf16>
    %cst_14 = arith.constant dense<0.000000e+00> : vector<64x128xf32>
    %16 = tpu.matmul %13, %15, %cst_14 {dimension_numbers = #tpu.dot_dimension_numbers<[1], [0], [0], [1], [0, 0, 1, 1], [], []>} : vector<64x128xbf16>, vector<128x128xbf16>, vector<64x128xf32> -> vector<64x128xf32>
    %c0_15 = arith.constant 0 : index
    %c0_16 = arith.constant 0 : index
    %17 = vector.load %arg5[%c0_15, %c0_16] : memref<64x128xf32, #tpu.memory_space<vmem>>, vector<64x128xf32>
    %18 = arith.addf %17, %16 : vector<64x128xf32>
    %c0_17 = arith.constant 0 : index
    %c0_18 = arith.constant 0 : index
    %19 = vector.load %arg5[%c0_17, %c0_18] : memref<64x128xf32, #tpu.memory_space<vmem>>, vector<64x128xf32>
    tpu.vector_store %arg5[%c0_17, %c0_18], %18 {strides = array<i32>} : memref<64x128xf32, #tpu.memory_space<vmem>>, vector<64x128xf32>,
    %c0_19 = arith.constant 0 : index
    %c0_20 = arith.constant 0 : index
    %c1_21 = arith.constant 1 : index
    %c0_22 = arith.constant 0 : index
    %20 = vector.load %arg1[%c0_19, %c0_20, %c1_21, %c0_22] : memref<4x9x9x128xbf16, #tpu.memory_space<vmem>>, vector<1x8x8x128xbf16>
    %21 = vector.shape_cast %20 : vector<1x8x8x128xbf16> to vector<8x8x128xbf16>
    %22 = arith.extf %21 : vector<8x8x128xbf16> to vector<8x8x128xf32>
    %23 = vector.shape_cast %22 : vector<8x8x128xf32> to vector<64x128xf32>
    %24 = arith.truncf %23 : vector<64x128xf32> to vector<64x128xbf16>
    %c2 = arith.constant 2 : index
    %c0_23 = arith.constant 0 : index
    %c0_24 = arith.constant 0 : index
    %25 = vector.load %arg2[%c2, %c0_23, %c0_24] : memref<9x128x128xbf16, #tpu.memory_space<vmem>>, vector<1x128x128xbf16>
    %26 = vector.shape_cast %25 : vector<1x128x128xbf16> to vector<128x128xbf16>
    %cst_25 = arith.constant dense<0.000000e+00> : vector<64x128xf32>
    %27 = tpu.matmul %24, %26, %cst_25 {dimension_numbers = #tpu.dot_dimension_numbers<[1], [0], [0], [1], [0, 0, 1, 1], [], []>} : vector<64x128xbf16>, vector<128x128xbf16>, vector<64x128xf32> -> vector<64x128xf32>
    %c0_26 = arith.constant 0 : index
    %c0_27 = arith.constant 0 : index
    %28 = vector.load %arg5[%c0_26, %c0_27] : memref<64x128xf32, #tpu.memory_space<vmem>>, vector<64x128xf32>
    %29 = arith.addf %28, %27 : vector<64x128xf32>
    %c0_28 = arith.constant 0 : index
    %c0_29 = arith.constant 0 : index
    %30 = vector.load %arg5[%c0_28, %c0_29] : memref<64x128xf32, #tpu.memory_space<vmem>>, vector<64x128xf32>
    tpu.vector_store %arg5[%c0_28, %c0_29], %29 {strides = array<i32>} : memref<64x128xf32, #tpu.memory_space<vmem>>, vector<64x128xf32>,
    %c2_30 = arith.constant 2 : index
    %c0_31 = arith.constant 0 : index
    %c0_32 = arith.constant 0 : index
    %c0_33 = arith.constant 0 : index
    %31 = vector.load %arg1[%c2_30, %c0_31, %c0_32, %c0_33] : memref<4x9x9x128xbf16, #tpu.memory_space<vmem>>, vector<1x8x8x128xbf16>
    %32 = vector.shape_cast %31 : vector<1x8x8x128xbf16> to vector<8x8x128xbf16>
    %33 = arith.extf %32 : vector<8x8x128xbf16> to vector<8x8x128xf32>
    %34 = vector.shape_cast %33 : vector<8x8x128xf32> to vector<64x128xf32>
    %35 = arith.truncf %34 : vector<64x128xf32> to vector<64x128xbf16>
    %c3 = arith.constant 3 : index
    %c0_34 = arith.constant 0 : index
    %c0_35 = arith.constant 0 : index
    %36 = vector.load %arg2[%c3, %c0_34, %c0_35] : memref<9x128x128xbf16, #tpu.memory_space<vmem>>, vector<1x128x128xbf16>
    %37 = vector.shape_cast %36 : vector<1x128x128xbf16> to vector<128x128xbf16>
    %cst_36 = arith.constant dense<0.000000e+00> : vector<64x128xf32>
    %38 = tpu.matmul %35, %37, %cst_36 {dimension_numbers = #tpu.dot_dimension_numbers<[1], [0], [0], [1], [0, 0, 1, 1], [], []>} : vector<64x128xbf16>, vector<128x128xbf16>, vector<64x128xf32> -> vector<64x128xf32>
    %c0_37 = arith.constant 0 : index
    %c0_38 = arith.constant 0 : index
    %39 = vector.load %arg5[%c0_37, %c0_38] : memref<64x128xf32, #tpu.memory_space<vmem>>, vector<64x128xf32>
    %40 = arith.addf %39, %38 : vector<64x128xf32>
    %c0_39 = arith.constant 0 : index
    %c0_40 = arith.constant 0 : index
    %41 = vector.load %arg5[%c0_39, %c0_40] : memref<64x128xf32, #tpu.memory_space<vmem>>, vector<64x128xf32>
    tpu.vector_store %arg5[%c0_39, %c0_40], %40 {strides = array<i32>} : memref<64x128xf32, #tpu.memory_space<vmem>>, vector<64x128xf32>,
    %c3_41 = arith.constant 3 : index
    %c0_42 = arith.constant 0 : index
    %c0_43 = arith.constant 0 : index
    %c0_44 = arith.constant 0 : index
    %42 = vector.load %arg1[%c3_41, %c0_42, %c0_43, %c0_44] : memref<4x9x9x128xbf16, #tpu.memory_space<vmem>>, vector<1x8x8x128xbf16>
    %43 = vector.shape_cast %42 : vector<1x8x8x128xbf16> to vector<8x8x128xbf16>
    %44 = arith.extf %43 : vector<8x8x128xbf16> to vector<8x8x128xf32>
    %45 = vector.shape_cast %44 : vector<8x8x128xf32> to vector<64x128xf32>
    %46 = arith.truncf %45 : vector<64x128xf32> to vector<64x128xbf16>
    %c4 = arith.constant 4 : index
    %c0_45 = arith.constant 0 : index
    %c0_46 = arith.constant 0 : index
    %47 = vector.load %arg2[%c4, %c0_45, %c0_46] : memref<9x128x128xbf16, #tpu.memory_space<vmem>>, vector<1x128x128xbf16>
    %48 = vector.shape_cast %47 : vector<1x128x128xbf16> to vector<128x128xbf16>
    %cst_47 = arith.constant dense<0.000000e+00> : vector<64x128xf32>
    %49 = tpu.matmul %46, %48, %cst_47 {dimension_numbers = #tpu.dot_dimension_numbers<[1], [0], [0], [1], [0, 0, 1, 1], [], []>} : vector<64x128xbf16>, vector<128x128xbf16>, vector<64x128xf32> -> vector<64x128xf32>
    %c0_48 = arith.constant 0 : index
    %c0_49 = arith.constant 0 : index
    %50 = vector.load %arg5[%c0_48, %c0_49] : memref<64x128xf32, #tpu.memory_space<vmem>>, vector<64x128xf32>
    %51 = arith.addf %50, %49 : vector<64x128xf32>
    %c0_50 = arith.constant 0 : index
    %c0_51 = arith.constant 0 : index
    %52 = vector.load %arg5[%c0_50, %c0_51] : memref<64x128xf32, #tpu.memory_space<vmem>>, vector<64x128xf32>
    tpu.vector_store %arg5[%c0_50, %c0_51], %51 {strides = array<i32>} : memref<64x128xf32, #tpu.memory_space<vmem>>, vector<64x128xf32>,
    %c2_52 = arith.constant 2 : index
    %c0_53 = arith.constant 0 : index
    %c1_54 = arith.constant 1 : index
    %c0_55 = arith.constant 0 : index
    %53 = vector.load %arg1[%c2_52, %c0_53, %c1_54, %c0_55] : memref<4x9x9x128xbf16, #tpu.memory_space<vmem>>, vector<1x8x8x128xbf16>
    %54 = vector.shape_cast %53 : vector<1x8x8x128xbf16> to vector<8x8x128xbf16>
    %55 = arith.extf %54 : vector<8x8x128xbf16> to vector<8x8x128xf32>
    %56 = vector.shape_cast %55 : vector<8x8x128xf32> to vector<64x128xf32>
    %57 = arith.truncf %56 : vector<64x128xf32> to vector<64x128xbf16>
    %c5 = arith.constant 5 : index
    %c0_56 = arith.constant 0 : index
    %c0_57 = arith.constant 0 : index
    %58 = vector.load %arg2[%c5, %c0_56, %c0_57] : memref<9x128x128xbf16, #tpu.memory_space<vmem>>, vector<1x128x128xbf16>
    %59 = vector.shape_cast %58 : vector<1x128x128xbf16> to vector<128x128xbf16>
    %cst_58 = arith.constant dense<0.000000e+00> : vector<64x128xf32>
    %60 = tpu.matmul %57, %59, %cst_58 {dimension_numbers = #tpu.dot_dimension_numbers<[1], [0], [0], [1], [0, 0, 1, 1], [], []>} : vector<64x128xbf16>, vector<128x128xbf16>, vector<64x128xf32> -> vector<64x128xf32>
    %c0_59 = arith.constant 0 : index
    %c0_60 = arith.constant 0 : index
    %61 = vector.load %arg5[%c0_59, %c0_60] : memref<64x128xf32, #tpu.memory_space<vmem>>, vector<64x128xf32>
    %62 = arith.addf %61, %60 : vector<64x128xf32>
    %c0_61 = arith.constant 0 : index
    %c0_62 = arith.constant 0 : index
    %63 = vector.load %arg5[%c0_61, %c0_62] : memref<64x128xf32, #tpu.memory_space<vmem>>, vector<64x128xf32>
    tpu.vector_store %arg5[%c0_61, %c0_62], %62 {strides = array<i32>} : memref<64x128xf32, #tpu.memory_space<vmem>>, vector<64x128xf32>,
    %c0_63 = arith.constant 0 : index
    %c1_64 = arith.constant 1 : index
    %c0_65 = arith.constant 0 : index
    %c0_66 = arith.constant 0 : index
    %64 = vector.load %arg1[%c0_63, %c1_64, %c0_65, %c0_66] : memref<4x9x9x128xbf16, #tpu.memory_space<vmem>>, vector<1x8x8x128xbf16>
    %65 = vector.shape_cast %64 : vector<1x8x8x128xbf16> to vector<8x8x128xbf16>
    %66 = arith.extf %65 : vector<8x8x128xbf16> to vector<8x8x128xf32>
    %67 = vector.shape_cast %66 : vector<8x8x128xf32> to vector<64x128xf32>
    %68 = arith.truncf %67 : vector<64x128xf32> to vector<64x128xbf16>
    %c6 = arith.constant 6 : index
    %c0_67 = arith.constant 0 : index
    %c0_68 = arith.constant 0 : index
    %69 = vector.load %arg2[%c6, %c0_67, %c0_68] : memref<9x128x128xbf16, #tpu.memory_space<vmem>>, vector<1x128x128xbf16>
    %70 = vector.shape_cast %69 : vector<1x128x128xbf16> to vector<128x128xbf16>
    %cst_69 = arith.constant dense<0.000000e+00> : vector<64x128xf32>
    %71 = tpu.matmul %68, %70, %cst_69 {dimension_numbers = #tpu.dot_dimension_numbers<[1], [0], [0], [1], [0, 0, 1, 1], [], []>} : vector<64x128xbf16>, vector<128x128xbf16>, vector<64x128xf32> -> vector<64x128xf32>
    %c0_70 = arith.constant 0 : index
    %c0_71 = arith.constant 0 : index
    %72 = vector.load %arg5[%c0_70, %c0_71] : memref<64x128xf32, #tpu.memory_space<vmem>>, vector<64x128xf32>
    %73 = arith.addf %72, %71 : vector<64x128xf32>
    %c0_72 = arith.constant 0 : index
    %c0_73 = arith.constant 0 : index
    %74 = vector.load %arg5[%c0_72, %c0_73] : memref<64x128xf32, #tpu.memory_space<vmem>>, vector<64x128xf32>
    tpu.vector_store %arg5[%c0_72, %c0_73], %73 {strides = array<i32>} : memref<64x128xf32, #tpu.memory_space<vmem>>, vector<64x128xf32>,
    %c1_74 = arith.constant 1 : index
    %c1_75 = arith.constant 1 : index
    %c0_76 = arith.constant 0 : index
    %c0_77 = arith.constant 0 : index
    %75 = vector.load %arg1[%c1_74, %c1_75, %c0_76, %c0_77] : memref<4x9x9x128xbf16, #tpu.memory_space<vmem>>, vector<1x8x8x128xbf16>
    %76 = vector.shape_cast %75 : vector<1x8x8x128xbf16> to vector<8x8x128xbf16>
    %77 = arith.extf %76 : vector<8x8x128xbf16> to vector<8x8x128xf32>
    %78 = vector.shape_cast %77 : vector<8x8x128xf32> to vector<64x128xf32>
    %79 = arith.truncf %78 : vector<64x128xf32> to vector<64x128xbf16>
    %c7 = arith.constant 7 : index
    %c0_78 = arith.constant 0 : index
    %c0_79 = arith.constant 0 : index
    %80 = vector.load %arg2[%c7, %c0_78, %c0_79] : memref<9x128x128xbf16, #tpu.memory_space<vmem>>, vector<1x128x128xbf16>
    %81 = vector.shape_cast %80 : vector<1x128x128xbf16> to vector<128x128xbf16>
    %cst_80 = arith.constant dense<0.000000e+00> : vector<64x128xf32>
    %82 = tpu.matmul %79, %81, %cst_80 {dimension_numbers = #tpu.dot_dimension_numbers<[1], [0], [0], [1], [0, 0, 1, 1], [], []>} : vector<64x128xbf16>, vector<128x128xbf16>, vector<64x128xf32> -> vector<64x128xf32>
    %c0_81 = arith.constant 0 : index
    %c0_82 = arith.constant 0 : index
    %83 = vector.load %arg5[%c0_81, %c0_82] : memref<64x128xf32, #tpu.memory_space<vmem>>, vector<64x128xf32>
    %84 = arith.addf %83, %82 : vector<64x128xf32>
    %c0_83 = arith.constant 0 : index
    %c0_84 = arith.constant 0 : index
    %85 = vector.load %arg5[%c0_83, %c0_84] : memref<64x128xf32, #tpu.memory_space<vmem>>, vector<64x128xf32>
    tpu.vector_store %arg5[%c0_83, %c0_84], %84 {strides = array<i32>} : memref<64x128xf32, #tpu.memory_space<vmem>>, vector<64x128xf32>,
    %c0_85 = arith.constant 0 : index
    %c1_86 = arith.constant 1 : index
    %c1_87 = arith.constant 1 : index
    %c0_88 = arith.constant 0 : index
    %86 = vector.load %arg1[%c0_85, %c1_86, %c1_87, %c0_88] : memref<4x9x9x128xbf16, #tpu.memory_space<vmem>>, vector<1x8x8x128xbf16>
    %87 = vector.shape_cast %86 : vector<1x8x8x128xbf16> to vector<8x8x128xbf16>
    %88 = arith.extf %87 : vector<8x8x128xbf16> to vector<8x8x128xf32>
    %89 = vector.shape_cast %88 : vector<8x8x128xf32> to vector<64x128xf32>
    %90 = arith.truncf %89 : vector<64x128xf32> to vector<64x128xbf16>
    %c8 = arith.constant 8 : index
    %c0_89 = arith.constant 0 : index
    %c0_90 = arith.constant 0 : index
    %91 = vector.load %arg2[%c8, %c0_89, %c0_90] : memref<9x128x128xbf16, #tpu.memory_space<vmem>>, vector<1x128x128xbf16>
    %92 = vector.shape_cast %91 : vector<1x128x128xbf16> to vector<128x128xbf16>
    %cst_91 = arith.constant dense<0.000000e+00> : vector<64x128xf32>
    %93 = tpu.matmul %90, %92, %cst_91 {dimension_numbers = #tpu.dot_dimension_numbers<[1], [0], [0], [1], [0, 0, 1, 1], [], []>} : vector<64x128xbf16>, vector<128x128xbf16>, vector<64x128xf32> -> vector<64x128xf32>
    %c0_92 = arith.constant 0 : index
    %c0_93 = arith.constant 0 : index
    %94 = vector.load %arg5[%c0_92, %c0_93] : memref<64x128xf32, #tpu.memory_space<vmem>>, vector<64x128xf32>
    %95 = arith.addf %94, %93 : vector<64x128xf32>
    %c0_94 = arith.constant 0 : index
    %c0_95 = arith.constant 0 : index
    %96 = vector.load %arg5[%c0_94, %c0_95] : memref<64x128xf32, #tpu.memory_space<vmem>>, vector<64x128xf32>
    tpu.vector_store %arg5[%c0_94, %c0_95], %95 {strides = array<i32>} : memref<64x128xf32, #tpu.memory_space<vmem>>, vector<64x128xf32>,
    %c0_96 = arith.constant 0 : index
    %c0_97 = arith.constant 0 : index
    %97 = vector.load %arg5[%c0_96, %c0_97] : memref<64x128xf32, #tpu.memory_space<vmem>>, vector<64x128xf32>
    %c0_98 = arith.constant 0 : index
    %c0_99 = arith.constant 0 : index
    %98 = vector.load %arg3[%c0_98, %c0_99] : memref<1x128xf32, #tpu.memory_space<vmem>>, vector<1x128xf32>
    %99 = vector.broadcast %98 : vector<1x128xf32> to vector<64x128xf32>
    %100 = arith.addf %97, %99 : vector<64x128xf32>
    %cst_100 = arith.constant 0.000000e+00 : f32
    %101 = vector.broadcast %cst_100 : f32 to vector<64x128xf32>
    %102 = arith.maximumf %100, %101 : vector<64x128xf32>
    %103 = arith.truncf %102 : vector<64x128xf32> to vector<64x128xbf16>
    %c0_101 = arith.constant 0 : index
    %c0_102 = arith.constant 0 : index
    %c0_103 = arith.constant 0 : index
    %104 = vector.load %arg4[%c0_101, %c0_102, %c0_103] : memref<1x64x128xbf16, #tpu.memory_space<vmem>>, vector<1x64x128xbf16>
    %105 = vector.shape_cast %104 : vector<1x64x128xbf16> to vector<64x128xbf16>
    %106 = vector.shape_cast %103 : vector<64x128xbf16> to vector<1x64x128xbf16>
    tpu.vector_store %arg4[%c0_101, %c0_102, %c0_103], %106 {strides = array<i32>} : memref<1x64x128xbf16, #tpu.memory_space<vmem>>, vector<1x64x128xbf16>,
    return
  }
  func.func @transform_0(%arg0: i32) -> (i32, i32, i32, i32) {
    %c0_i32 = arith.constant 0 : i32
    %c0_i32_0 = arith.constant 0 : i32
    %c0_i32_1 = arith.constant 0 : i32
    %c0_i32_2 = arith.constant 0 : i32
    return %arg0, %c0_i32, %c0_i32_0, %c0_i32_1 : i32, i32, i32, i32
  }
  func.func @transform_1(%arg0: i32) -> (i32, i32, i32) {
    %c0_i32 = arith.constant 0 : i32
    %c0_i32_0 = arith.constant 0 : i32
    %c0_i32_1 = arith.constant 0 : i32
    %c0_i32_2 = arith.constant 0 : i32
    return %c0_i32, %c0_i32_0, %c0_i32_1 : i32, i32, i32
  }
  func.func @transform_2(%arg0: i32) -> (i32, i32) {
    %c0_i32 = arith.constant 0 : i32
    %c0_i32_0 = arith.constant 0 : i32
    %c0_i32_1 = arith.constant 0 : i32
    return %c0_i32, %c0_i32_0 : i32, i32
  }
  func.func @transform_3(%arg0: i32) -> (i32, i32, i32) {
    %c0_i32 = arith.constant 0 : i32
    %c0_i32_0 = arith.constant 0 : i32
    %c0_i32_1 = arith.constant 0 : i32
    return %arg0, %c0_i32, %c0_i32_0 : i32, i32, i32
  }
}

module attributes {stable_mosaic.version = 11 : i64} {
  func.func @kernel(%arg0: i32, %arg1: memref<64x128xbf16, #tpu.memory_space<vmem>>, %arg2: memref<128x128xbf16, #tpu.memory_space<vmem>>, %arg3: memref<64x128xbf16, #tpu.memory_space<vmem>>, %arg4: memref<128x128xbf16, #tpu.memory_space<vmem>>, %arg5: memref<1x128xf32, #tpu.memory_space<vmem>>, %arg6: memref<64x128xf32, #tpu.memory_space<vmem>>) attributes {dimension_semantics = [#tpu.dimension_semantics<parallel>], iteration_bounds = array<i64: 2>, scalar_prefetch = 0 : i64, scratch_operands = 0 : i64, tpu.core_type = #tpu.core_type<tc>, window_params = [{transform_indices = @transform_0, window_bounds = array<i64: 64, 128>}, {pipeline_mode = #tpu.pipeline_mode<synchronous>, transform_indices = @transform_1, window_bounds = array<i64: 128, 128>}, {transform_indices = @transform_2, window_bounds = array<i64: 64, 128>}, {pipeline_mode = #tpu.pipeline_mode<synchronous>, transform_indices = @transform_3, window_bounds = array<i64: 128, 128>}, {pipeline_mode = #tpu.pipeline_mode<synchronous>, transform_indices = @transform_4, window_bounds = array<i64: 1, 128>}, {transform_indices = @transform_5, window_bounds = array<i64: 64, 128>}]} {
    %c0 = arith.constant 0 : index
    %c0_0 = arith.constant 0 : index
    %0 = vector.load %arg1[%c0, %c0_0] : memref<64x128xbf16, #tpu.memory_space<vmem>>, vector<64x128xbf16>
    %c0_1 = arith.constant 0 : index
    %c0_2 = arith.constant 0 : index
    %1 = vector.load %arg2[%c0_1, %c0_2] : memref<128x128xbf16, #tpu.memory_space<vmem>>, vector<128x128xbf16>
    %cst = arith.constant dense<0.000000e+00> : vector<64x128xf32>
    %2 = tpu.matmul %0, %1, %cst {dimension_numbers = #tpu.dot_dimension_numbers<[1], [0], [0], [1], [0, 0, 1, 1], [], []>} : vector<64x128xbf16>, vector<128x128xbf16>, vector<64x128xf32> -> vector<64x128xf32>
    %c0_3 = arith.constant 0 : index
    %c0_4 = arith.constant 0 : index
    %3 = vector.load %arg3[%c0_3, %c0_4] : memref<64x128xbf16, #tpu.memory_space<vmem>>, vector<64x128xbf16>
    %c0_5 = arith.constant 0 : index
    %c0_6 = arith.constant 0 : index
    %4 = vector.load %arg4[%c0_5, %c0_6] : memref<128x128xbf16, #tpu.memory_space<vmem>>, vector<128x128xbf16>
    %cst_7 = arith.constant dense<0.000000e+00> : vector<64x128xf32>
    %5 = tpu.matmul %3, %4, %cst_7 {dimension_numbers = #tpu.dot_dimension_numbers<[1], [0], [0], [1], [0, 0, 1, 1], [], []>} : vector<64x128xbf16>, vector<128x128xbf16>, vector<64x128xf32> -> vector<64x128xf32>
    %6 = arith.addf %2, %5 : vector<64x128xf32>
    %c0_8 = arith.constant 0 : index
    %c0_9 = arith.constant 0 : index
    %7 = vector.load %arg5[%c0_8, %c0_9] : memref<1x128xf32, #tpu.memory_space<vmem>>, vector<1x128xf32>
    %8 = vector.broadcast %7 : vector<1x128xf32> to vector<64x128xf32>
    %9 = arith.addf %6, %8 : vector<64x128xf32>
    %cst_10 = arith.constant 0.000000e+00 : f32
    %10 = vector.broadcast %cst_10 : f32 to vector<64x128xf32>
    %11 = arith.maximumf %9, %10 : vector<64x128xf32>
    %c0_11 = arith.constant 0 : index
    %c0_12 = arith.constant 0 : index
    %12 = vector.load %arg6[%c0_11, %c0_12] : memref<64x128xf32, #tpu.memory_space<vmem>>, vector<64x128xf32>
    tpu.vector_store %arg6[%c0_11, %c0_12], %11 {strides = array<i32>} : memref<64x128xf32, #tpu.memory_space<vmem>>, vector<64x128xf32>,
    return
  }
  func.func @transform_0(%arg0: i32) -> (i32, i32) {
    %c0_i32 = arith.constant 0 : i32
    %c0_i32_0 = arith.constant 0 : i32
    return %arg0, %c0_i32 : i32, i32
  }
  func.func @transform_1(%arg0: i32) -> (i32, i32) {
    %c0_i32 = arith.constant 0 : i32
    %c0_i32_0 = arith.constant 0 : i32
    %c0_i32_1 = arith.constant 0 : i32
    return %c0_i32, %c0_i32_0 : i32, i32
  }
  func.func @transform_2(%arg0: i32) -> (i32, i32) {
    %c0_i32 = arith.constant 0 : i32
    %c0_i32_0 = arith.constant 0 : i32
    return %arg0, %c0_i32 : i32, i32
  }
  func.func @transform_3(%arg0: i32) -> (i32, i32) {
    %c0_i32 = arith.constant 0 : i32
    %c0_i32_0 = arith.constant 0 : i32
    %c0_i32_1 = arith.constant 0 : i32
    return %c0_i32, %c0_i32_0 : i32, i32
  }
  func.func @transform_4(%arg0: i32) -> (i32, i32) {
    %c0_i32 = arith.constant 0 : i32
    %c0_i32_0 = arith.constant 0 : i32
    %c0_i32_1 = arith.constant 0 : i32
    return %c0_i32, %c0_i32_0 : i32, i32
  }
  func.func @transform_5(%arg0: i32) -> (i32, i32) {
    %c0_i32 = arith.constant 0 : i32
    %c0_i32_0 = arith.constant 0 : i32
    return %arg0, %c0_i32 : i32, i32
  }
}

</mosaic_0001>

<llo_original>
// kernel: residual_block_forward.3
$region0: #{residual_block_forward.3}
  #allocation0 [shape = 'u32[]', space=smem, size = 0x4, offset = 0x4, fixed_abs, tag = 'smem constant byte address 0x4 - core index']
  #allocation1 [shape = 'u32[72,128]{1,0:T(1,128)}', space=vmem, size = 0x9000, scoped, tag = 'internal scratch']
  %s0 = inlined_call_operand.vmem [shape: bf16[512,128], index: 0, kind: input, shape index: {}]
  %s1 = inlined_call_operand.vmem [shape: bf16[128,128], index: 1, kind: input, shape index: {}]
  %s2 = inlined_call_operand.vmem [shape: f32[1,128], index: 2, kind: input, shape index: {}]
  %s3 = inlined_call_operand.vmem [shape: bf16[512,128], index: 3, kind: output, shape index: {}]
  %s4 = sld [smem:[#allocation0]]
  $region45: #{residual_block_forward.3} parent=0
    _
  %s6 = ssub.s32 1, %s4
  %s7 = scalar_select 0, %s6, %s4
  loop: start=0, step=1, limit=4
  $region2: #{residual_block_forward.3} parent=0 // loop_pre_header
    _
  $region3: #{residual_block_forward.3} parent=0 // loop_header
    %s9 = sphi 0, %s13
    %p10 = scmp.ge.s32.totalorder %s9, 4
    %s19 = sphi 0, %s21
    %s22 = sphi 0, %s19
    %s23 = sphi 0, %s22
    %s39 = sphi 0, %s23
    %s43 = sphi 0, %s43
    %s45 = sphi 0, %s43
    %s46 = sphi 0, %s45
    %s60 = sphi 0, %s46
    %s64 = sphi 0, %s64
    %s66 = sphi 0, %s64
    %s67 = sphi 0, %s66
    %s81 = sphi 0, %s67
    %s87 = sphi 0, %s89
    %s90 = sphi 0, %s87
    %s91 = sphi 0, %s90
    %s107 = sphi 0, %s91
  $region4: #{residual_block_forward.3} parent=0 // loop_header_branch
    %12 = sbr.rel (%p10) target = $region8
  $region5: #{residual_block_forward.3} parent=0 // loop_body
    %s14 = ssub.s32 %s9, 1
    %s15 = ssub.s32 %s9, 2
    %s16 = sadd.s32 %s9, 1
    %s17 = ssub.s32 %s9, %s16
    %p18 = scmp.eq.s32.totalorder %s17, 0
    %s20 = sadd.s32 %s19, 1
    %s21 = scalar_select %p18, %s19, %s20
    %p24 = pneg %p18
    %p25 = scmp.eq.s32.totalorder %s9, 1
    %p26 = por %p24, %p25
    %p27 = scmp.ne.s32.totalorder %s19, %s22
    %p28 = scmp.eq.s32.totalorder %s9, 0
    %p29 = por %p27, %p28
    %p30 = scmp.ne.s32.totalorder %s19, %s22
    %p31 = scmp.eq.s32.totalorder %s14, 1
    %p32 = por %p30, %p31
    %p33 = scmp.ne.s32.totalorder %s22, %s23
    %p34 = scmp.eq.s32.totalorder %s14, 0
    %p35 = por %p33, %p34
    %p36 = scmp.ne.s32.totalorder %s22, %s23
    %p37 = scmp.eq.s32.totalorder %s15, 1
    %p38 = por %p36, %p37
    %p40 = scmp.ne.s32.totalorder %s23, %s39
    %p41 = scmp.eq.s32.totalorder %s15, 0
    %p42 = por %p40, %p41
    %s44 = sadd.s32 %s43, 1
    %p47 = scmp.eq.s32.totalorder %s9, 1
    %p48 = scmp.ne.s32.totalorder %s43, %s45
    %p49 = scmp.eq.s32.totalorder %s9, 0
    %p50 = por %p48, %p49
    %p51 = scmp.ne.s32.totalorder %s43, %s45
    %p52 = scmp.eq.s32.totalorder %s14, 1
    %p53 = por %p51, %p52
    %p54 = scmp.ne.s32.totalorder %s45, %s46
    %p55 = scmp.eq.s32.totalorder %s14, 0
    %p56 = por %p54, %p55
    %p57 = scmp.ne.s32.totalorder %s45, %s46
    %p58 = scmp.eq.s32.totalorder %s15, 1
    %p59 = por %p57, %p58
    %p61 = scmp.ne.s32.totalorder %s46, %s60
    %p62 = scmp.eq.s32.totalorder %s15, 0
    %p63 = por %p61, %p62
    %s65 = sadd.s32 %s64, 1
    %p68 = scmp.eq.s32.totalorder %s9, 1
    %p69 = scmp.ne.s32.totalorder %s64, %s66
    %p70 = scmp.eq.s32.totalorder %s9, 0
    %p71 = por %p69, %p70
    %p72 = scmp.ne.s32.totalorder %s64, %s66
    %p73 = scmp.eq.s32.totalorder %s14, 1
    %p74 = por %p72, %p73
    %p75 = scmp.ne.s32.totalorder %s66, %s67
    %p76 = scmp.eq.s32.totalorder %s14, 0
    %p77 = por %p75, %p76
    %p78 = scmp.ne.s32.totalorder %s66, %s67
    %p79 = scmp.eq.s32.totalorder %s15, 1
    %p80 = por %p78, %p79
    %p82 = scmp.ne.s32.totalorder %s67, %s81
    %p83 = scmp.eq.s32.totalorder %s15, 0
    %p84 = por %p82, %p83
    %s85 = ssub.s32 %s9, %s16
    %p86 = scmp.eq.s32.totalorder %s85, 0
    %s88 = sadd.s32 %s87, 1
    %s89 = scalar_select %p86, %s87, %s88
    %p92 = pneg %p86
    %p93 = scmp.eq.s32.totalorder %s9, 1
    %p94 = por %p92, %p93
    %p95 = scmp.ne.s32.totalorder %s87, %s90
    %p96 = scmp.eq.s32.totalorder %s9, 0
    %p97 = por %p95, %p96
    %p98 = scmp.ne.s32.totalorder %s87, %s90
    %p99 = scmp.eq.s32.totalorder %s14, 1
    %p100 = por %p98, %p99
    %p101 = scmp.ne.s32.totalorder %s90, %s91
    %p102 = scmp.eq.s32.totalorder %s14, 0
    %p103 = por %p101, %p102
    %p104 = scmp.ne.s32.totalorder %s90, %s91
    %p105 = scmp.eq.s32.totalorder %s15, 1
    %p106 = por %p104, %p105
    %p108 = scmp.ne.s32.totalorder %s91, %s107
    %p109 = scmp.eq.s32.totalorder %s15, 0
    %p110 = por %p108, %p109
    %p111 = scmp.le.s32.totalorder 1, %s9
    %p112 = scmp.lt.s32.totalorder %s9, 3
    %p113 = pnand %p111, %p112
    %p114 = pneg %p113
    // Predicated region
    $region9: #{residual_block_forward.3} parent=5 // pred_check
      _
    $region10: #{residual_block_forward.3} parent=5 // pred_check_branch
      %116 = sbr.rel (%p113) target = $region12
    $region11: #{residual_block_forward.3} parent=5 // pred_region
      %s117 = ssub.s32 %s9, 1
      // Predicated region
      $region13: #{residual_block_forward.3} parent=11 // pred_check
        %p118 = pneg %p56
      $region14: #{residual_block_forward.3} parent=11 // pred_check_branch
        %120 = sbr.rel (%p118) target = $region16
      $region15: #{residual_block_forward.3} parent=11 // pred_region
        _
      $region16: #{residual_block_forward.3} parent=11 // pred_fallthru
        _
      // Predicated region
      $region17: #{residual_block_forward.3} parent=11 // pred_check
        %p121 = pneg %p77
      $region18: #{residual_block_forward.3} parent=11 // pred_check_branch
        %123 = sbr.rel (%p121) target = $region20
      $region19: #{residual_block_forward.3} parent=11 // pred_region
        _
      $region20: #{residual_block_forward.3} parent=11 // pred_fallthru
        _
    $region12: #{residual_block_forward.3} parent=5 // pred_fallthru
      _
    %p124 = scmp.lt.s32.totalorder %s9, 2
    // Predicated region
    $region21: #{residual_block_forward.3} parent=5 // pred_check
      %p125 = pneg %p124
    $region22: #{residual_block_forward.3} parent=5 // pred_check_branch
      %127 = sbr.rel (%p125) target = $region24
    $region23: #{residual_block_forward.3} parent=5 // pred_region
      // Predicated region
      $region25: #{residual_block_forward.3} parent=23 // pred_check
        %p128 = pneg %p29
      $region26: #{residual_block_forward.3} parent=23 // pred_check_branch
        %130 = sbr.rel (%p128) target = $region28
      $region27: #{residual_block_forward.3} parent=23 // pred_region
        %s131 = smul.u32 32, %s9
        %p132 = scmp.lt.s32.totalorder %s131, 63
        %s133 = scalar_select %p132, %s131, 63
        %s134 = smul.addr %s133, 4
        %s135 = scalar_lea.vmem %s0, %s134
        %s136 = smul.u32 32, %s9
      $region28: #{residual_block_forward.3} parent=23 // pred_fallthru
        _
    $region24: #{residual_block_forward.3} parent=5 // pred_fallthru
      _
    %p137 = scmp.le.s32.totalorder 1, %s9
    %p138 = scmp.lt.s32.totalorder %s9, 3
    %p139 = pnand %p137, %p138
    %p140 = pneg %p139
    // Predicated region
    $region29: #{residual_block_forward.3} parent=5 // pred_check
      _
    $region30: #{residual_block_forward.3} parent=5 // pred_check_branch
      %142 = sbr.rel (%p139) target = $region32
    $region31: #{residual_block_forward.3} parent=5 // pred_region
      %s143 = ssub.s32 %s9, 1
      %s144 = smul.u32 32, %s14
      %p145 = scmp.lt.s32.totalorder %s144, 63
      %s146 = scalar_select %p145, %s144, 63
      %s147 = smul.addr %s146, 4
      %s148 = scalar_lea.vmem %s0, %s147
      %p149 = pneg %p35
      %p150 = pneg %p32
      %p151 = pneg %p56
      %p152 = pneg %p53
      %p153 = pneg %p77
      %p154 = pneg %p74
      %p155 = pneg %p103
      %p156 = pneg %p100
      %s157 = smul.u32 32, %s14
      %p158 = scmp.lt.s32.totalorder %s157, 63
      %s159 = scalar_select %p158, %s157, 63
      %s160 = smul.addr %s159, 4
      %s161 = scalar_lea.vmem %s3, %s160
      %s162 = smul.u32 32, %s14
      %p163 = scmp.lt.s32.totalorder %s162, 63
      %s164 = scalar_select %p163, %s162, 63
      %s165 = smul.addr %s164, 4
      %s166 = scalar_lea.vmem %s0, %s165
      %s167 = smul.u32 32, %s14
      %s168 = smul.u32 32, %s14
      %p169 = scmp.lt.s32.totalorder %s168, 63
      %s170 = scalar_select %p169, %s168, 63
      %s171 = smul.addr %s170, 4
      %s172 = scalar_lea.vmem %s3, %s171
      %s173 = smul.u32 32, %s14
      %v174 = vld [vmem:[%s166] sm:$0xf]
      %v175 = vld [vmem:[%s166 + $0x4] sm:$0xf]
      %v176 = vld [vmem:[%s166 + $0x8] sm:$0xf]
      %v177 = vld [vmem:[%s166 + $0xc] sm:$0xf]
      %v178 = vld [vmem:[%s166 + $0x10] sm:$0xf]
      %v179 = vld [vmem:[%s166 + $0x14] sm:$0xf]
      %v180 = vld [vmem:[%s166 + $0x18] sm:$0xf]
      %v181 = vld [vmem:[%s166 + $0x1c] sm:$0xf]
      %v182 = vld [vmem:[%s166 + $0x20] sm:$0xf]
      %v183 = vld [vmem:[%s166 + $0x24] sm:$0xf]
      %v184 = vld [vmem:[%s166 + $0x28] sm:$0xf]
      %v185 = vld [vmem:[%s166 + $0x2c] sm:$0xf]
      %v186 = vld [vmem:[%s166 + $0x30] sm:$0xf]
      %v187 = vld [vmem:[%s166 + $0x34] sm:$0xf]
      %v188 = vld [vmem:[%s166 + $0x38] sm:$0xf]
      %v189 = vld [vmem:[%s166 + $0x3c] sm:$0xf]
      %v190 = vld [vmem:[%s166 + $0x40] sm:$0xf]
      %v191 = vld [vmem:[%s166 + $0x44] sm:$0xf]
      %v192 = vld [vmem:[%s166 + $0x48] sm:$0xf]
      %v193 = vld [vmem:[%s166 + $0x4c] sm:$0xf]
      %v194 = vld [vmem:[%s166 + $0x50] sm:$0xf]
      %v195 = vld [vmem:[%s166 + $0x54] sm:$0xf]
      %v196 = vld [vmem:[%s166 + $0x58] sm:$0xf]
      %v197 = vld [vmem:[%s166 + $0x5c] sm:$0xf]
      %v198 = vld [vmem:[%s166 + $0x60] sm:$0xf]
      %v199 = vld [vmem:[%s166 + $0x64] sm:$0xf]
      %v200 = vld [vmem:[%s166 + $0x68] sm:$0xf]
      %v201 = vld [vmem:[%s166 + $0x6c] sm:$0xf]
      %v202 = vld [vmem:[%s166 + $0x70] sm:$0xf]
      %v203 = vld [vmem:[%s166 + $0x74] sm:$0xf]
      %v204 = vld [vmem:[%s166 + $0x78] sm:$0xf]
      %v205 = vld [vmem:[%s166 + $0x7c] sm:$0xf]
      %v206 = vld [vmem:[%s1] sm:$0xf]
      %v207 = vld [vmem:[%s1 + $0x4] sm:$0xf]
      %v208 = vld [vmem:[%s1 + $0x8] sm:$0xf]
      %v209 = vld [vmem:[%s1 + $0xc] sm:$0xf]
      %v210 = vld [vmem:[%s1 + $0x10] sm:$0xf]
      %v211 = vld [vmem:[%s1 + $0x14] sm:$0xf]
      %v212 = vld [vmem:[%s1 + $0x18] sm:$0xf]
      %v213 = vld [vmem:[%s1 + $0x1c] sm:$0xf]
      %v214 = vld [vmem:[%s1 + $0x20] sm:$0xf]
      %v215 = vld [vmem:[%s1 + $0x24] sm:$0xf]
      %v216 = vld [vmem:[%s1 + $0x28] sm:$0xf]
      %v217 = vld [vmem:[%s1 + $0x2c] sm:$0xf]
      %v218 = vld [vmem:[%s1 + $0x30] sm:$0xf]
      %v219 = vld [vmem:[%s1 + $0x34] sm:$0xf]
      %v220 = vld [vmem:[%s1 + $0x38] sm:$0xf]
      %v221 = vld [vmem:[%s1 + $0x3c] sm:$0xf]
      %v222 = vld [vmem:[%s2] sm:$0x1]
      %v224 = vperm.slane %v222, 0
      %v258 = vunpack.c.l.b16 %v174
      %v259 = vunpack.c.l.b16 %v175
      %v260 = vunpack.c.l.b16 %v176
      %v261 = vunpack.c.l.b16 %v177
      %v262 = vunpack.c.l.b16 %v178
      %v263 = vunpack.c.l.b16 %v179
      %v264 = vunpack.c.l.b16 %v180
      %v265 = vunpack.c.l.b16 %v181
      %v266 = vunpack.c.l.b16 %v182
      %v267 = vunpack.c.l.b16 %v183
      %v268 = vunpack.c.l.b16 %v184
      %v269 = vunpack.c.l.b16 %v185
      %v270 = vunpack.c.l.b16 %v186
      %v271 = vunpack.c.l.b16 %v187
      %v272 = vunpack.c.l.b16 %v188
      %v273 = vunpack.c.l.b16 %v189
      %v274 = vunpack.c.l.b16 %v190
      %v275 = vunpack.c.l.b16 %v191
      %v276 = vunpack.c.l.b16 %v192
      %v277 = vunpack.c.l.b16 %v193
      %v278 = vunpack.c.l.b16 %v194
      %v279 = vunpack.c.l.b16 %v195
      %v280 = vunpack.c.l.b16 %v196
      %v281 = vunpack.c.l.b16 %v197
      %v282 = vunpack.c.l.b16 %v198
      %v283 = vunpack.c.l.b16 %v199
      %v284 = vunpack.c.l.b16 %v200
      %v285 = vunpack.c.l.b16 %v201
      %v286 = vunpack.c.l.b16 %v202
      %v287 = vunpack.c.l.b16 %v203
      %v288 = vunpack.c.l.b16 %v204
      %v289 = vunpack.c.l.b16 %v205
      %v290 = vpack.c.b16 %v259, %v258
      %v291 = vpack.c.b16 %v261, %v260
      %v292 = vpack.c.b16 %v263, %v262
      %v293 = vpack.c.b16 %v265, %v264
      %v294 = vpack.c.b16 %v267, %v266
      %v295 = vpack.c.b16 %v269, %v268
      %v296 = vpack.c.b16 %v271, %v270
      %v297 = vpack.c.b16 %v273, %v272
      %v298 = vpack.c.b16 %v275, %v274
      %v299 = vpack.c.b16 %v277, %v276
      %v300 = vpack.c.b16 %v279, %v278
      %v301 = vpack.c.b16 %v281, %v280
      %v302 = vpack.c.b16 %v283, %v282
      %v303 = vpack.c.b16 %v285, %v284
      %v304 = vpack.c.b16 %v287, %v286
      %v305 = vpack.c.b16 %v289, %v288
      %v338 = vunpack.c.l.b16 %v206
      %v339 = vunpack.c.l.b16 %v207
      %v340 = vunpack.c.l.b16 %v208
      %v341 = vunpack.c.l.b16 %v209
      %v342 = vunpack.c.l.b16 %v210
      %v343 = vunpack.c.l.b16 %v211
      %v344 = vunpack.c.l.b16 %v212
      %v345 = vunpack.c.l.b16 %v213
      %v346 = vunpack.c.l.b16 %v214
      %v347 = vunpack.c.l.b16 %v215
      %v348 = vunpack.c.l.b16 %v216
      %v349 = vunpack.c.l.b16 %v217
      %v350 = vunpack.c.l.b16 %v218
      %v351 = vunpack.c.l.b16 %v219
      %v352 = vunpack.c.l.b16 %v220
      %v353 = vunpack.c.l.b16 %v221
      %v354 = vpack.c.b16 %v339, %v338
      %v355 = vpack.c.b16 %v341, %v340
      %v356 = vpack.c.b16 %v343, %v342
      %v357 = vpack.c.b16 %v345, %v344
      %v358 = vpack.c.b16 %v347, %v346
      %v359 = vpack.c.b16 %v349, %v348
      %v360 = vpack.c.b16 %v351, %v350
      %v361 = vpack.c.b16 %v353, %v352
      %370 = vmatpush.bf16.msra.mxu0 %v361
      %371 = vmatpush.bf16.msra.mxu0 %v360
      %372 = vmatpush.bf16.msra.mxu0 %v359
      %373 = vmatpush.bf16.msra.mxu0 %v358
      %374 = vmatpush.bf16.msra.mxu0 %v357
      %375 = vmatpush.bf16.msra.mxu0 %v356
      %376 = vmatpush.bf16.msra.mxu0 %v355
      %377 = vmatpush.bf16.msra.mxu0 %v354
      %378 = vmatmul.bf16.gmra.mxu0 %v290
      %v379 = vpop.f32.mrf.mxu0
      %v380 = vadd.f32 %v224, %v379
      %v381 = vpop.f32.mrf.mxu0
      %v382 = vadd.f32 %v224, %v381
      %383 = vmatmul.bf16.gmra.mxu0 %v291
      %v384 = vpop.f32.mrf.mxu0
      %v385 = vadd.f32 %v224, %v384
      %v386 = vpop.f32.mrf.mxu0
      %v387 = vadd.f32 %v224, %v386
      %388 = vmatmul.bf16.gmra.mxu0 %v292
      %v389 = vpop.f32.mrf.mxu0
      %v390 = vadd.f32 %v224, %v389
      %v391 = vpop.f32.mrf.mxu0
      %v392 = vadd.f32 %v224, %v391
      %393 = vmatmul.bf16.gmra.mxu0 %v293
      %v394 = vpop.f32.mrf.mxu0
      %v395 = vadd.f32 %v224, %v394
      %v396 = vpop.f32.mrf.mxu0
      %v397 = vadd.f32 %v224, %v396
      %398 = vmatmul.bf16.gmra.mxu0 %v294
      %v399 = vpop.f32.mrf.mxu0
      %v400 = vadd.f32 %v224, %v399
      %v401 = vpop.f32.mrf.mxu0
      %v402 = vadd.f32 %v224, %v401
      %403 = vmatmul.bf16.gmra.mxu0 %v295
      %v404 = vpop.f32.mrf.mxu0
      %v405 = vadd.f32 %v224, %v404
      %v406 = vpop.f32.mrf.mxu0
      %v407 = vadd.f32 %v224, %v406
      %408 = vmatmul.bf16.gmra.mxu0 %v296
      %v409 = vpop.f32.mrf.mxu0
      %v410 = vadd.f32 %v224, %v409
      %v411 = vpop.f32.mrf.mxu0
      %v412 = vadd.f32 %v224, %v411
      %413 = vmatmul.bf16.gmra.mxu0 %v297
      %v414 = vpop.f32.mrf.mxu0
      %v415 = vadd.f32 %v224, %v414
      %v416 = vpop.f32.mrf.mxu0
      %v417 = vadd.f32 %v224, %v416
      %418 = vmatmul.bf16.gmra.mxu0 %v298
      %v419 = vpop.f32.mrf.mxu0
      %v420 = vadd.f32 %v224, %v419
      %v421 = vpop.f32.mrf.mxu0
      %v422 = vadd.f32 %v224, %v421
      %423 = vmatmul.bf16.gmra.mxu0 %v299
      %v424 = vpop.f32.mrf.mxu0
      %v425 = vadd.f32 %v224, %v424
      %v426 = vpop.f32.mrf.mxu0
      %v427 = vadd.f32 %v224, %v426
      %428 = vmatmul.bf16.gmra.mxu0 %v300
      %v429 = vpop.f32.mrf.mxu0
      %v430 = vadd.f32 %v224, %v429
      %v431 = vpop.f32.mrf.mxu0
      %v432 = vadd.f32 %v224, %v431
      %433 = vmatmul.bf16.gmra.mxu0 %v301
      %v434 = vpop.f32.mrf.mxu0
      %v435 = vadd.f32 %v224, %v434
      %v436 = vpop.f32.mrf.mxu0
      %v437 = vadd.f32 %v224, %v436
      %438 = vmatmul.bf16.gmra.mxu0 %v302
      %v439 = vpop.f32.mrf.mxu0
      %v440 = vadd.f32 %v224, %v439
      %v441 = vpop.f32.mrf.mxu0
      %v442 = vadd.f32 %v224, %v441
      %443 = vmatmul.bf16.gmra.mxu0 %v303
      %v444 = vpop.f32.mrf.mxu0
      %v445 = vadd.f32 %v224, %v444
      %v446 = vpop.f32.mrf.mxu0
      %v447 = vadd.f32 %v224, %v446
      %448 = vmatmul.bf16.gmra.mxu0 %v304
      %v449 = vpop.f32.mrf.mxu0
      %v450 = vadd.f32 %v224, %v449
      %v451 = vpop.f32.mrf.mxu0
      %v452 = vadd.f32 %v224, %v451
      %453 = vmatmul.bf16.gmra.mxu0 %v305
      %v454 = vpop.f32.mrf.mxu0
      %v455 = vadd.f32 %v224, %v454
      %v456 = vpop.f32.mrf.mxu0
      %v457 = vadd.f32 %v224, %v456
      %458 = vdwg.mxu0
      %v459 = vmax.f32 %v380, 0.0
      %v460 = vmax.f32 %v382, 0.0
      %v461 = vmax.f32 %v385, 0.0
      %v462 = vmax.f32 %v387, 0.0
      %v463 = vmax.f32 %v390, 0.0
      %v464 = vmax.f32 %v392, 0.0
      %v465 = vmax.f32 %v395, 0.0
      %v466 = vmax.f32 %v397, 0.0
      %v467 = vmax.f32 %v400, 0.0
      %v468 = vmax.f32 %v402, 0.0
      %v469 = vmax.f32 %v405, 0.0
      %v470 = vmax.f32 %v407, 0.0
      %v471 = vmax.f32 %v410, 0.0
      %v472 = vmax.f32 %v412, 0.0
      %v473 = vmax.f32 %v415, 0.0
      %v474 = vmax.f32 %v417, 0.0
      %v475 = vmax.f32 %v420, 0.0
      %v476 = vmax.f32 %v422, 0.0
      %v477 = vmax.f32 %v425, 0.0
      %v478 = vmax.f32 %v427, 0.0
      %v479 = vmax.f32 %v430, 0.0
      %v480 = vmax.f32 %v432, 0.0
      %v481 = vmax.f32 %v435, 0.0
      %v482 = vmax.f32 %v437, 0.0
      %v483 = vmax.f32 %v440, 0.0
      %v484 = vmax.f32 %v442, 0.0
      %v485 = vmax.f32 %v445, 0.0
      %v486 = vmax.f32 %v447, 0.0
      %v487 = vmax.f32 %v450, 0.0
      %v488 = vmax.f32 %v452, 0.0
      %v489 = vmax.f32 %v455, 0.0
      %v490 = vmax.f32 %v457, 0.0
      %v491 = vpack.c.bf16 %v459, %v459
      %v492 = vpack.c.bf16 %v460, %v460
      %v493 = vpack.c.bf16 %v461, %v461
      %v494 = vpack.c.bf16 %v462, %v462
      %v495 = vpack.c.bf16 %v463, %v463
      %v496 = vpack.c.bf16 %v464, %v464
      %v497 = vpack.c.bf16 %v465, %v465
      %v498 = vpack.c.bf16 %v466, %v466
      %v499 = vpack.c.bf16 %v467, %v467
      %v500 = vpack.c.bf16 %v468, %v468
      %v501 = vpack.c.bf16 %v469, %v469
      %v502 = vpack.c.bf16 %v470, %v470
      %v503 = vpack.c.bf16 %v471, %v471
      %v504 = vpack.c.bf16 %v472, %v472
      %v505 = vpack.c.bf16 %v473, %v473
      %v506 = vpack.c.bf16 %v474, %v474
      %v507 = vpack.c.bf16 %v475, %v475
      %v508 = vpack.c.bf16 %v476, %v476
      %v509 = vpack.c.bf16 %v477, %v477
      %v510 = vpack.c.bf16 %v478, %v478
      %v511 = vpack.c.bf16 %v479, %v479
      %v512 = vpack.c.bf16 %v480, %v480
      %v513 = vpack.c.bf16 %v481, %v481
      %v514 = vpack.c.bf16 %v482, %v482
      %v515 = vpack.c.bf16 %v483, %v483
      %v516 = vpack.c.bf16 %v484, %v484
      %v517 = vpack.c.bf16 %v485, %v485
      %v518 = vpack.c.bf16 %v486, %v486
      %v519 = vpack.c.bf16 %v487, %v487
      %v520 = vpack.c.bf16 %v488, %v488
      %v521 = vpack.c.bf16 %v489, %v489
      %v522 = vpack.c.bf16 %v490, %v490
      %523 = vst [vmem:[%s172] sm:$0xf] %v491
      %524 = vst [vmem:[%s172 + $0x4] sm:$0xf] %v492
      %525 = vst [vmem:[%s172 + $0x8] sm:$0xf] %v493
      %526 = vst [vmem:[%s172 + $0xc] sm:$0xf] %v494
      %527 = vst [vmem:[%s172 + $0x10] sm:$0xf] %v495
      %528 = vst [vmem:[%s172 + $0x14] sm:$0xf] %v496
      %529 = vst [vmem:[%s172 + $0x18] sm:$0xf] %v497
      %530 = vst [vmem:[%s172 + $0x1c] sm:$0xf] %v498
      %531 = vst [vmem:[%s172 + $0x20] sm:$0xf] %v499
      %532 = vst [vmem:[%s172 + $0x24] sm:$0xf] %v500
      %533 = vst [vmem:[%s172 + $0x28] sm:$0xf] %v501
      %534 = vst [vmem:[%s172 + $0x2c] sm:$0xf] %v502
      %535 = vst [vmem:[%s172 + $0x30] sm:$0xf] %v503
      %536 = vst [vmem:[%s172 + $0x34] sm:$0xf] %v504
      %537 = vst [vmem:[%s172 + $0x38] sm:$0xf] %v505
      %538 = vst [vmem:[%s172 + $0x3c] sm:$0xf] %v506
      %539 = vst [vmem:[%s172 + $0x40] sm:$0xf] %v507
      %540 = vst [vmem:[%s172 + $0x44] sm:$0xf] %v508
      %541 = vst [vmem:[%s172 + $0x48] sm:$0xf] %v509
      %542 = vst [vmem:[%s172 + $0x4c] sm:$0xf] %v510
      %543 = vst [vmem:[%s172 + $0x50] sm:$0xf] %v511
      %544 = vst [vmem:[%s172 + $0x54] sm:$0xf] %v512
      %545 = vst [vmem:[%s172 + $0x58] sm:$0xf] %v513
      %546 = vst [vmem:[%s172 + $0x5c] sm:$0xf] %v514
      %547 = vst [vmem:[%s172 + $0x60] sm:$0xf] %v515
      %548 = vst [vmem:[%s172 + $0x64] sm:$0xf] %v516
      %549 = vst [vmem:[%s172 + $0x68] sm:$0xf] %v517
      %550 = vst [vmem:[%s172 + $0x6c] sm:$0xf] %v518
      %551 = vst [vmem:[%s172 + $0x70] sm:$0xf] %v519
      %552 = vst [vmem:[%s172 + $0x74] sm:$0xf] %v520
      %553 = vst [vmem:[%s172 + $0x78] sm:$0xf] %v521
      %554 = vst [vmem:[%s172 + $0x7c] sm:$0xf] %v522
      %s555 = smul.u32 32, %s14
      %p556 = scmp.lt.s32.totalorder %s555, 63
      %s557 = scalar_select %p556, %s555, 63
      %s558 = smul.addr %s557, 4
      %s559 = scalar_lea.vmem %s3, %s558
      // Predicated region
      $region33: #{residual_block_forward.3} parent=31 // pred_check
        %p560 = pneg %p100
      $region34: #{residual_block_forward.3} parent=31 // pred_check_branch
        %562 = sbr.rel (%p560) target = $region36
      $region35: #{residual_block_forward.3} parent=31 // pred_region
        %s563 = smul.u32 32, %s14
      $region36: #{residual_block_forward.3} parent=31 // pred_fallthru
        _
    $region32: #{residual_block_forward.3} parent=5 // pred_fallthru
      _
    %p564 = scmp.le.s32.totalorder 2, %s9
    // Predicated region
    $region37: #{residual_block_forward.3} parent=5 // pred_check
      %p565 = pneg %p564
    $region38: #{residual_block_forward.3} parent=5 // pred_check_branch
      %567 = sbr.rel (%p565) target = $region40
    $region39: #{residual_block_forward.3} parent=5 // pred_region
      %s568 = ssub.s32 %s9, 2
      // Predicated region
      $region41: #{residual_block_forward.3} parent=39 // pred_check
        %p569 = pneg %p106
      $region42: #{residual_block_forward.3} parent=39 // pred_check_branch
        %571 = sbr.rel (%p569) target = $region44
      $region43: #{residual_block_forward.3} parent=39 // pred_region
        %s572 = smul.u32 32, %s15
        %p573 = scmp.lt.s32.totalorder %s572, 63
        %s574 = scalar_select %p573, %s572, 63
        %s575 = smul.addr %s574, 4
        %s576 = scalar_lea.vmem %s3, %s575
      $region44: #{residual_block_forward.3} parent=39 // pred_fallthru
        _
    $region40: #{residual_block_forward.3} parent=5 // pred_fallthru
      _
  $region6: #{residual_block_forward.3} parent=0 // loop_footer
    %s13 = sadd.s32 1, %s9
  $region7: #{residual_block_forward.3} parent=0 // loop_footer_branch
    %8 = sbr.rel target = $region3
  $region8: #{residual_block_forward.3} parent=0 // loop_exit
    _

// kernel: residual_block_forward.4
$region0: #{residual_block_forward.4}
  #allocation0 [shape = 'u32[]', space=smem, size = 0x4, offset = 0x4, fixed_abs, tag = 'smem constant byte address 0x4 - core index']
  #allocation1 [shape = 'u32[72,128]{1,0:T(1,128)}', space=vmem, size = 0x9000, scoped, tag = 'internal scratch']
  #allocation2 [shape = 'f32[64,128]{1,0:T(8,128)}', space=vmem, size = 0x8000, scoped, tag = 'scratch operand']
  %s0 = inlined_call_operand.vmem [shape: bf16[8,9,9,128], index: 0, kind: input, shape index: {}]
  %s1 = inlined_call_operand.vmem [shape: bf16[9,128,128], index: 1, kind: input, shape index: {}]
  %s2 = inlined_call_operand.vmem [shape: f32[1,128], index: 2, kind: input, shape index: {}]
  %s3 = inlined_call_operand.vmem [shape: bf16[2,64,128], index: 3, kind: output, shape index: {}]
  %s4 = sld [smem:[#allocation0]]
  $region45: #{residual_block_forward.4} parent=0
    _
  %s6 = ssub.s32 1, %s4
  %s7 = scalar_select 0, %s6, %s4
  loop: start=0, step=1, limit=4
  $region2: #{residual_block_forward.4} parent=0 // loop_pre_header
    _
  $region3: #{residual_block_forward.4} parent=0 // loop_header
    %s9 = sphi 0, %s13
    %p10 = scmp.ge.s32.totalorder %s9, 4
    %s19 = sphi 0, %s21
    %s22 = sphi 0, %s19
    %s23 = sphi 0, %s22
    %s39 = sphi 0, %s23
    %s43 = sphi 0, %s43
    %s45 = sphi 0, %s43
    %s46 = sphi 0, %s45
    %s60 = sphi 0, %s46
    %s64 = sphi 0, %s64
    %s66 = sphi 0, %s64
    %s67 = sphi 0, %s66
    %s81 = sphi 0, %s67
    %s87 = sphi 0, %s89
    %s90 = sphi 0, %s87
    %s91 = sphi 0, %s90
    %s107 = sphi 0, %s91
  $region4: #{residual_block_forward.4} parent=0 // loop_header_branch
    %12 = sbr.rel (%p10) target = $region8
  $region5: #{residual_block_forward.4} parent=0 // loop_body
    %s14 = ssub.s32 %s9, 1
    %s15 = ssub.s32 %s9, 2
    %s16 = sadd.s32 %s9, 1
    %s17 = ssub.s32 %s9, %s16
    %p18 = scmp.eq.s32.totalorder %s17, 0
    %s20 = sadd.s32 %s19, 1
    %s21 = scalar_select %p18, %s19, %s20
    %p24 = pneg %p18
    %p25 = scmp.eq.s32.totalorder %s9, 1
    %p26 = por %p24, %p25
    %p27 = scmp.ne.s32.totalorder %s19, %s22
    %p28 = scmp.eq.s32.totalorder %s9, 0
    %p29 = por %p27, %p28
    %p30 = scmp.ne.s32.totalorder %s19, %s22
    %p31 = scmp.eq.s32.totalorder %s14, 1
    %p32 = por %p30, %p31
    %p33 = scmp.ne.s32.totalorder %s22, %s23
    %p34 = scmp.eq.s32.totalorder %s14, 0
    %p35 = por %p33, %p34
    %p36 = scmp.ne.s32.totalorder %s22, %s23
    %p37 = scmp.eq.s32.totalorder %s15, 1
    %p38 = por %p36, %p37
    %p40 = scmp.ne.s32.totalorder %s23, %s39
    %p41 = scmp.eq.s32.totalorder %s15, 0
    %p42 = por %p40, %p41
    %s44 = sadd.s32 %s43, 1
    %p47 = scmp.eq.s32.totalorder %s9, 1
    %p48 = scmp.ne.s32.totalorder %s43, %s45
    %p49 = scmp.eq.s32.totalorder %s9, 0
    %p50 = por %p48, %p49
    %p51 = scmp.ne.s32.totalorder %s43, %s45
    %p52 = scmp.eq.s32.totalorder %s14, 1
    %p53 = por %p51, %p52
    %p54 = scmp.ne.s32.totalorder %s45, %s46
    %p55 = scmp.eq.s32.totalorder %s14, 0
    %p56 = por %p54, %p55
    %p57 = scmp.ne.s32.totalorder %s45, %s46
    %p58 = scmp.eq.s32.totalorder %s15, 1
    %p59 = por %p57, %p58
    %p61 = scmp.ne.s32.totalorder %s46, %s60
    %p62 = scmp.eq.s32.totalorder %s15, 0
    %p63 = por %p61, %p62
    %s65 = sadd.s32 %s64, 1
    %p68 = scmp.eq.s32.totalorder %s9, 1
    %p69 = scmp.ne.s32.totalorder %s64, %s66
    %p70 = scmp.eq.s32.totalorder %s9, 0
    %p71 = por %p69, %p70
    %p72 = scmp.ne.s32.totalorder %s64, %s66
    %p73 = scmp.eq.s32.totalorder %s14, 1
    %p74 = por %p72, %p73
    %p75 = scmp.ne.s32.totalorder %s66, %s67
    %p76 = scmp.eq.s32.totalorder %s14, 0
    %p77 = por %p75, %p76
    %p78 = scmp.ne.s32.totalorder %s66, %s67
    %p79 = scmp.eq.s32.totalorder %s15, 1
    %p80 = por %p78, %p79
    %p82 = scmp.ne.s32.totalorder %s67, %s81
    %p83 = scmp.eq.s32.totalorder %s15, 0
    %p84 = por %p82, %p83
    %s85 = ssub.s32 %s9, %s16
    %p86 = scmp.eq.s32.totalorder %s85, 0
    %s88 = sadd.s32 %s87, 1
    %s89 = scalar_select %p86, %s87, %s88
    %p92 = pneg %p86
    %p93 = scmp.eq.s32.totalorder %s9, 1
    %p94 = por %p92, %p93
    %p95 = scmp.ne.s32.totalorder %s87, %s90
    %p96 = scmp.eq.s32.totalorder %s9, 0
    %p97 = por %p95, %p96
    %p98 = scmp.ne.s32.totalorder %s87, %s90
    %p99 = scmp.eq.s32.totalorder %s14, 1
    %p100 = por %p98, %p99
    %p101 = scmp.ne.s32.totalorder %s90, %s91
    %p102 = scmp.eq.s32.totalorder %s14, 0
    %p103 = por %p101, %p102
    %p104 = scmp.ne.s32.totalorder %s90, %s91
    %p105 = scmp.eq.s32.totalorder %s15, 1
    %p106 = por %p104, %p105
    %p108 = scmp.ne.s32.totalorder %s91, %s107
    %p109 = scmp.eq.s32.totalorder %s15, 0
    %p110 = por %p108, %p109
    %p111 = scmp.le.s32.totalorder 1, %s9
    %p112 = scmp.lt.s32.totalorder %s9, 3
    %p113 = pnand %p111, %p112
    %p114 = pneg %p113
    // Predicated region
    $region9: #{residual_block_forward.4} parent=5 // pred_check
      _
    $region10: #{residual_block_forward.4} parent=5 // pred_check_branch
      %116 = sbr.rel (%p113) target = $region12
    $region11: #{residual_block_forward.4} parent=5 // pred_region
      %s117 = ssub.s32 %s9, 1
      // Predicated region
      $region13: #{residual_block_forward.4} parent=11 // pred_check
        %p118 = pneg %p56
      $region14: #{residual_block_forward.4} parent=11 // pred_check_branch
        %120 = sbr.rel (%p118) target = $region16
      $region15: #{residual_block_forward.4} parent=11 // pred_region
        _
      $region16: #{residual_block_forward.4} parent=11 // pred_fallthru
        _
      // Predicated region
      $region17: #{residual_block_forward.4} parent=11 // pred_check
        %p121 = pneg %p77
      $region18: #{residual_block_forward.4} parent=11 // pred_check_branch
        %123 = sbr.rel (%p121) target = $region20
      $region19: #{residual_block_forward.4} parent=11 // pred_region
        _
      $region20: #{residual_block_forward.4} parent=11 // pred_fallthru
        _
    $region12: #{residual_block_forward.4} parent=5 // pred_fallthru
      _
    %p124 = scmp.lt.s32.totalorder %s9, 2
    // Predicated region
    $region21: #{residual_block_forward.4} parent=5 // pred_check
      %p125 = pneg %p124
    $region22: #{residual_block_forward.4} parent=5 // pred_check_branch
      %127 = sbr.rel (%p125) target = $region24
    $region23: #{residual_block_forward.4} parent=5 // pred_region
      // Predicated region
      $region25: #{residual_block_forward.4} parent=23 // pred_check
        %p128 = pneg %p29
      $region26: #{residual_block_forward.4} parent=23 // pred_check_branch
        %130 = sbr.rel (%p128) target = $region28
      $region27: #{residual_block_forward.4} parent=23 // pred_region
        %s131 = smul.u32 4, %s9
        %p132 = scmp.lt.s32.totalorder %s131, 7
        %s133 = scalar_select %p132, %s131, 7
        %s134 = smul.addr %s133, 18
        %s135 = smul.addr %s134, 4
        %s136 = scalar_lea.vmem %s0, %s135
        %s137 = smul.u32 4, %s9
      $region28: #{residual_block_forward.4} parent=23 // pred_fallthru
        _
    $region24: #{residual_block_forward.4} parent=5 // pred_fallthru
      _
    %p138 = scmp.le.s32.totalorder 1, %s9
    %p139 = scmp.lt.s32.totalorder %s9, 3
    %p140 = pnand %p138, %p139
    %p141 = pneg %p140
    // Predicated region
    $region29: #{residual_block_forward.4} parent=5 // pred_check
      _
    $region30: #{residual_block_forward.4} parent=5 // pred_check_branch
      %143 = sbr.rel (%p140) target = $region32
    $region31: #{residual_block_forward.4} parent=5 // pred_region
      %s144 = ssub.s32 %s9, 1
      %s145 = smul.u32 4, %s14
      %p146 = scmp.lt.s32.totalorder %s145, 7
      %s147 = scalar_select %p146, %s145, 7
      %s148 = smul.addr %s147, 18
      %s149 = smul.addr %s148, 4
      %s150 = scalar_lea.vmem %s0, %s149
      %p151 = pneg %p35
      %p152 = pneg %p32
      %p153 = pneg %p56
      %p154 = pneg %p53
      %p155 = pneg %p77
      %p156 = pneg %p74
      %p157 = pneg %p103
      %p158 = pneg %p100
      %p159 = scmp.lt.s32.totalorder %s14, 1
      %s160 = scalar_select %p159, %s14, 1
      %s161 = smul.addr %s160, 8
      %s162 = smul.addr %s161, 4
      %s163 = scalar_lea.vmem %s3, %s162
      %s164 = smul.u32 4, %s14
      %p165 = scmp.lt.s32.totalorder %s164, 7
      %s166 = scalar_select %p165, %s164, 7
      %s167 = smul.addr %s166, 18
      %s168 = smul.addr %s167, 4
      %s169 = scalar_lea.vmem %s0, %s168
      %s170 = smul.u32 4, %s14
      %p171 = scmp.lt.s32.totalorder %s14, 1
      %s172 = scalar_select %p171, %s14, 1
      %s173 = smul.addr %s172, 8
      %s174 = smul.addr %s173, 4
      %s175 = scalar_lea.vmem %s3, %s174
      %v176 = vld [vmem:[%s169] sm:$0xf]
      %v177 = vld [vmem:[%s169 + $0x8] sm:$0xf]
      %v178 = vld [vmem:[%s169 + $0x10] sm:$0xf]
      %v179 = vld [vmem:[%s169 + $0x18] sm:$0xf]
      %v180 = vld [vmem:[%s169 + $0x20] sm:$0xf]
      %v181 = vld [vmem:[%s169 + $0x28] sm:$0xf]
      %v182 = vld [vmem:[%s169 + $0x30] sm:$0xf]
      %v183 = vld [vmem:[%s169 + $0x38] sm:$0xf]
      %v184 = vunpack.c.l.bf16 %v176
      %v185 = vunpack.c.l.bf16 %v177
      %v186 = vunpack.c.l.bf16 %v178
      %v187 = vunpack.c.l.bf16 %v179
      %v188 = vunpack.c.l.bf16 %v180
      %v189 = vunpack.c.l.bf16 %v181
      %v190 = vunpack.c.l.bf16 %v182
      %v191 = vunpack.c.l.bf16 %v183
      %v192 = vpack.c.bf16 %v185, %v184
      %v193 = vpack.c.bf16 %v187, %v186
      %v194 = vpack.c.bf16 %v189, %v188
      %v195 = vpack.c.bf16 %v191, %v190
      %v196 = vld [vmem:[%s1] sm:$0xf]
      %v197 = vld [vmem:[%s1 + $0x4] sm:$0xf]
      %v198 = vld [vmem:[%s1 + $0x8] sm:$0xf]
      %v199 = vld [vmem:[%s1 + $0xc] sm:$0xf]
      %v200 = vld [vmem:[%s1 + $0x10] sm:$0xf]
      %v201 = vld [vmem:[%s1 + $0x14] sm:$0xf]
      %v202 = vld [vmem:[%s1 + $0x18] sm:$0xf]
      %v203 = vld [vmem:[%s1 + $0x1c] sm:$0xf]
      %v204 = vld [vmem:[%s1 + $0x20] sm:$0xf]
      %v205 = vld [vmem:[%s1 + $0x24] sm:$0xf]
      %v206 = vld [vmem:[%s1 + $0x28] sm:$0xf]
      %v207 = vld [vmem:[%s1 + $0x2c] sm:$0xf]
      %v208 = vld [vmem:[%s1 + $0x30] sm:$0xf]
      %v209 = vld [vmem:[%s1 + $0x34] sm:$0xf]
      %v210 = vld [vmem:[%s1 + $0x38] sm:$0xf]
      %v211 = vld [vmem:[%s1 + $0x3c] sm:$0xf]
      %v228 = vunpack.c.l.b16 %v196
      %v229 = vunpack.c.l.b16 %v197
      %v230 = vunpack.c.l.b16 %v198
      %v231 = vunpack.c.l.b16 %v199
      %v232 = vunpack.c.l.b16 %v200
      %v233 = vunpack.c.l.b16 %v201
      %v234 = vunpack.c.l.b16 %v202
      %v235 = vunpack.c.l.b16 %v203
      %v236 = vunpack.c.l.b16 %v204
      %v237 = vunpack.c.l.b16 %v205
      %v238 = vunpack.c.l.b16 %v206
      %v239 = vunpack.c.l.b16 %v207
      %v240 = vunpack.c.l.b16 %v208
      %v241 = vunpack.c.l.b16 %v209
      %v242 = vunpack.c.l.b16 %v210
      %v243 = vunpack.c.l.b16 %v211
      %v244 = vpack.c.b16 %v229, %v228
      %v245 = vpack.c.b16 %v231, %v230
      %v246 = vpack.c.b16 %v233, %v232
      %v247 = vpack.c.b16 %v235, %v234
      %v248 = vpack.c.b16 %v237, %v236
      %v249 = vpack.c.b16 %v239, %v238
      %v250 = vpack.c.b16 %v241, %v240
      %v251 = vpack.c.b16 %v243, %v242
      %260 = vmatpush.bf16.msra.mxu0 %v251
      %261 = vmatpush.bf16.msra.mxu0 %v250
      %262 = vmatpush.bf16.msra.mxu0 %v249
      %263 = vmatpush.bf16.msra.mxu0 %v248
      %264 = vmatpush.bf16.msra.mxu0 %v247
      %265 = vmatpush.bf16.msra.mxu0 %v246
      %266 = vmatpush.bf16.msra.mxu0 %v245
      %267 = vmatpush.bf16.msra.mxu0 %v244
      %268 = vmatmul.bf16.gmra.mxu0 %v192
      %v269 = vpop.f32.mrf.mxu0
      %v270 = vadd.f32 0.0, %v269
      %v271 = vpop.f32.mrf.mxu0
      %v272 = vadd.f32 0.0, %v271
      %273 = vmatmul.bf16.gmra.mxu0 %v193
      %v274 = vpop.f32.mrf.mxu0
      %v275 = vadd.f32 0.0, %v274
      %v276 = vpop.f32.mrf.mxu0
      %v277 = vadd.f32 0.0, %v276
      %278 = vmatmul.bf16.gmra.mxu0 %v194
      %v279 = vpop.f32.mrf.mxu0
      %v280 = vadd.f32 0.0, %v279
      %v281 = vpop.f32.mrf.mxu0
      %v282 = vadd.f32 0.0, %v281
      %283 = vmatmul.bf16.gmra.mxu0 %v195
      %v284 = vpop.f32.mrf.mxu0
      %v285 = vadd.f32 0.0, %v284
      %v286 = vpop.f32.mrf.mxu0
      %v287 = vadd.f32 0.0, %v286
      %288 = vdwg.mxu0
      %289 = vst [vmem:[#allocation2] sm:$0xff] %v270
      %290 = vst [vmem:[#allocation2 + $0x8] sm:$0xff] %v272
      %291 = vst [vmem:[#allocation2 + $0x10] sm:$0xff] %v275
      %292 = vst [vmem:[#allocation2 + $0x18] sm:$0xff] %v277
      %293 = vst [vmem:[#allocation2 + $0x20] sm:$0xff] %v280
      %294 = vst [vmem:[#allocation2 + $0x28] sm:$0xff] %v282
      %295 = vst [vmem:[#allocation2 + $0x30] sm:$0xff] %v285
      %296 = vst [vmem:[#allocation2 + $0x38] sm:$0xff] %v287
      %s297 = scalar_lea.vmem %s169, 72
      %v298 = vld [vmem:[%s297] sm:$0xf]
      %v299 = vld [vmem:[%s297 + $0x8] sm:$0xf]
      %v300 = vld [vmem:[%s297 + $0x10] sm:$0xf]
      %v301 = vld [vmem:[%s297 + $0x18] sm:$0xf]
      %v302 = vld [vmem:[%s297 + $0x20] sm:$0xf]
      %v303 = vld [vmem:[%s297 + $0x28] sm:$0xf]
      %v304 = vld [vmem:[%s297 + $0x30] sm:$0xf]
      %v305 = vld [vmem:[%s297 + $0x38] sm:$0xf]
      %v306 = vunpack.c.l.bf16 %v298
      %v307 = vunpack.c.l.bf16 %v299
      %v308 = vunpack.c.l.bf16 %v300
      %v309 = vunpack.c.l.bf16 %v301
      %v310 = vunpack.c.l.bf16 %v302
      %v311 = vunpack.c.l.bf16 %v303
      %v312 = vunpack.c.l.bf16 %v304
      %v313 = vunpack.c.l.bf16 %v305
      %v314 = vpack.c.bf16 %v307, %v306
      %v315 = vpack.c.bf16 %v309, %v308
      %v316 = vpack.c.bf16 %v311, %v310
      %v317 = vpack.c.bf16 %v313, %v312
      %s318 = scalar_lea.vmem %s1, 64
      %v319 = vld [vmem:[%s318] sm:$0xf]
      %v320 = vld [vmem:[%s318 + $0x4] sm:$0xf]
      %v321 = vld [vmem:[%s318 + $0x8] sm:$0xf]
      %v322 = vld [vmem:[%s318 + $0xc] sm:$0xf]
      %v323 = vld [vmem:[%s318 + $0x10] sm:$0xf]
      %v324 = vld [vmem:[%s318 + $0x14] sm:$0xf]
      %v325 = vld [vmem:[%s318 + $0x18] sm:$0xf]
      %v326 = vld [vmem:[%s318 + $0x1c] sm:$0xf]
      %v327 = vld [vmem:[%s318 + $0x20] sm:$0xf]
      %v328 = vld [vmem:[%s318 + $0x24] sm:$0xf]
      %v329 = vld [vmem:[%s318 + $0x28] sm:$0xf]
      %v330 = vld [vmem:[%s318 + $0x2c] sm:$0xf]
      %v331 = vld [vmem:[%s318 + $0x30] sm:$0xf]
      %v332 = vld [vmem:[%s318 + $0x34] sm:$0xf]
      %v333 = vld [vmem:[%s318 + $0x38] sm:$0xf]
      %v334 = vld [vmem:[%s318 + $0x3c] sm:$0xf]
      %v351 = vunpack.c.l.b16 %v319
      %v352 = vunpack.c.l.b16 %v320
      %v353 = vunpack.c.l.b16 %v321
      %v354 = vunpack.c.l.b16 %v322
      %v355 = vunpack.c.l.b16 %v323
      %v356 = vunpack.c.l.b16 %v324
      %v357 = vunpack.c.l.b16 %v325
      %v358 = vunpack.c.l.b16 %v326
      %v359 = vunpack.c.l.b16 %v327
      %v360 = vunpack.c.l.b16 %v328
      %v361 = vunpack.c.l.b16 %v329
      %v362 = vunpack.c.l.b16 %v330
      %v363 = vunpack.c.l.b16 %v331
      %v364 = vunpack.c.l.b16 %v332
      %v365 = vunpack.c.l.b16 %v333
      %v366 = vunpack.c.l.b16 %v334
      %v367 = vpack.c.b16 %v352, %v351
      %v368 = vpack.c.b16 %v354, %v353
      %v369 = vpack.c.b16 %v356, %v355
      %v370 = vpack.c.b16 %v358, %v357
      %v371 = vpack.c.b16 %v360, %v359
      %v372 = vpack.c.b16 %v362, %v361
      %v373 = vpack.c.b16 %v364, %v363
      %v374 = vpack.c.b16 %v366, %v365
      %383 = vmatpush.bf16.msra.mxu0 %v374
      %384 = vmatpush.bf16.msra.mxu0 %v373
      %385 = vmatpush.bf16.msra.mxu0 %v372
      %386 = vmatpush.bf16.msra.mxu0 %v371
      %387 = vmatpush.bf16.msra.mxu0 %v370
      %388 = vmatpush.bf16.msra.mxu0 %v369
      %389 = vmatpush.bf16.msra.mxu0 %v368
      %390 = vmatpush.bf16.msra.mxu0 %v367
      %391 = vmatmul.bf16.gmra.mxu0 %v314
      %v392 = vpop.f32.mrf.mxu0
      %v393 = vadd.f32 0.0, %v392
      %v394 = vpop.f32.mrf.mxu0
      %v395 = vadd.f32 0.0, %v394
      %396 = vmatmul.bf16.gmra.mxu0 %v315
      %v397 = vpop.f32.mrf.mxu0
      %v398 = vadd.f32 0.0, %v397
      %v399 = vpop.f32.mrf.mxu0
      %v400 = vadd.f32 0.0, %v399
      %401 = vmatmul.bf16.gmra.mxu0 %v316
      %v402 = vpop.f32.mrf.mxu0
      %v403 = vadd.f32 0.0, %v402
      %v404 = vpop.f32.mrf.mxu0
      %v405 = vadd.f32 0.0, %v404
      %406 = vmatmul.bf16.gmra.mxu0 %v317
      %v407 = vpop.f32.mrf.mxu0
      %v408 = vadd.f32 0.0, %v407
      %v409 = vpop.f32.mrf.mxu0
      %v410 = vadd.f32 0.0, %v409
      %411 = vdwg.mxu0
      %v412 = vld [vmem:[#allocation2] sm:$0xff]
      %v413 = vld [vmem:[#allocation2 + $0x8] sm:$0xff]
      %v414 = vld [vmem:[#allocation2 + $0x10] sm:$0xff]
      %v415 = vld [vmem:[#allocation2 + $0x18] sm:$0xff]
      %v416 = vld [vmem:[#allocation2 + $0x20] sm:$0xff]
      %v417 = vld [vmem:[#allocation2 + $0x28] sm:$0xff]
      %v418 = vld [vmem:[#allocation2 + $0x30] sm:$0xff]
      %v419 = vld [vmem:[#allocation2 + $0x38] sm:$0xff]
      %v420 = vadd.f32 %v412, %v393
      %v421 = vadd.f32 %v413, %v395
      %v422 = vadd.f32 %v414, %v398
      %v423 = vadd.f32 %v415, %v400
      %v424 = vadd.f32 %v416, %v403
      %v425 = vadd.f32 %v417, %v405
      %v426 = vadd.f32 %v418, %v408
      %v427 = vadd.f32 %v419, %v410
      %428 = vst [vmem:[#allocation2] sm:$0xff] %v420
      %429 = vst [vmem:[#allocation2 + $0x8] sm:$0xff] %v421
      %430 = vst [vmem:[#allocation2 + $0x10] sm:$0xff] %v422
      %431 = vst [vmem:[#allocation2 + $0x18] sm:$0xff] %v423
      %432 = vst [vmem:[#allocation2 + $0x20] sm:$0xff] %v424
      %433 = vst [vmem:[#allocation2 + $0x28] sm:$0xff] %v425
      %434 = vst [vmem:[#allocation2 + $0x30] sm:$0xff] %v426
      %435 = vst [vmem:[#allocation2 + $0x38] sm:$0xff] %v427
      %v436 = vld [vmem:[%s169] sm:$0xf]
      %v437 = vld [vmem:[%s169 + $0x4] sm:$0x1]
      %v438 = vld [vmem:[%s169 + $0x8] sm:$0xf]
      %v439 = vld [vmem:[%s169 + $0xc] sm:$0x1]
      %v440 = vld [vmem:[%s169 + $0x10] sm:$0xf]
      %v441 = vld [vmem:[%s169 + $0x14] sm:$0x1]
      %v442 = vld [vmem:[%s169 + $0x18] sm:$0xf]
      %v443 = vld [vmem:[%s169 + $0x1c] sm:$0x1]
      %v444 = vld [vmem:[%s169 + $0x20] sm:$0xf]
      %v445 = vld [vmem:[%s169 + $0x24] sm:$0x1]
      %v446 = vld [vmem:[%s169 + $0x28] sm:$0xf]
      %v447 = vld [vmem:[%s169 + $0x2c] sm:$0x1]
      %v448 = vld [vmem:[%s169 + $0x30] sm:$0xf]
      %v449 = vld [vmem:[%s169 + $0x34] sm:$0x1]
      %v450 = vld [vmem:[%s169 + $0x38] sm:$0xf]
      %v451 = vld [vmem:[%s169 + $0x3c] sm:$0x1]
      %v452 = vunpack.c.l.bf16 %v436
      %v453 = vunpack.c.l.bf16 %v437
      %v454 = vunpack.c.l.bf16 %v438
      %v455 = vunpack.c.l.bf16 %v439
      %v456 = vunpack.c.l.bf16 %v440
      %v457 = vunpack.c.l.bf16 %v441
      %v458 = vunpack.c.l.bf16 %v442
      %v459 = vunpack.c.l.bf16 %v443
      %v460 = vunpack.c.l.bf16 %v444
      %v461 = vunpack.c.l.bf16 %v445
      %v462 = vunpack.c.l.bf16 %v446
      %v463 = vunpack.c.l.bf16 %v447
      %v464 = vunpack.c.l.bf16 %v448
      %v465 = vunpack.c.l.bf16 %v449
      %v466 = vunpack.c.l.bf16 %v450
      %v467 = vunpack.c.l.bf16 %v451
      %vm484 = vcmask 1046528
      %v485 = vrot.slane %v452, 1
      %v486 = vrot.slane %v453, 1
      %v487 = vsel %vm484, %v485, %v486
      %v488 = vrot.slane %v454, 1
      %v489 = vrot.slane %v455, 1
      %v490 = vsel %vm484, %v488, %v489
      %v491 = vrot.slane %v456, 1
      %v492 = vrot.slane %v457, 1
      %v493 = vsel %vm484, %v491, %v492
      %v494 = vrot.slane %v458, 1
      %v495 = vrot.slane %v459, 1
      %v496 = vsel %vm484, %v494, %v495
      %v497 = vrot.slane %v460, 1
      %v498 = vrot.slane %v461, 1
      %v499 = vsel %vm484, %v497, %v498
      %v500 = vrot.slane %v462, 1
      %v501 = vrot.slane %v463, 1
      %v502 = vsel %vm484, %v500, %v501
      %v503 = vrot.slane %v464, 1
      %v504 = vrot.slane %v465, 1
      %v505 = vsel %vm484, %v503, %v504
      %v506 = vrot.slane %v466, 1
      %v507 = vrot.slane %v467, 1
      %v508 = vsel %vm484, %v506, %v507
      %v517 = vpack.c.bf16 %v490, %v487
      %v518 = vpack.c.bf16 %v496, %v493
      %v519 = vpack.c.bf16 %v502, %v499
      %v520 = vpack.c.bf16 %v508, %v505
      %s521 = scalar_lea.vmem %s1, 128
      %v522 = vld [vmem:[%s521] sm:$0xf]
      %v523 = vld [vmem:[%s521 + $0x4] sm:$0xf]
      %v524 = vld [vmem:[%s521 + $0x8] sm:$0xf]
      %v525 = vld [vmem:[%s521 + $0xc] sm:$0xf]
      %v526 = vld [vmem:[%s521 + $0x10] sm:$0xf]
      %v527 = vld [vmem:[%s521 + $0x14] sm:$0xf]
      %v528 = vld [vmem:[%s521 + $0x18] sm:$0xf]
      %v529 = vld [vmem:[%s521 + $0x1c] sm:$0xf]
      %v530 = vld [vmem:[%s521 + $0x20] sm:$0xf]
      %v531 = vld [vmem:[%s521 + $0x24] sm:$0xf]
      %v532 = vld [vmem:[%s521 + $0x28] sm:$0xf]
      %v533 = vld [vmem:[%s521 + $0x2c] sm:$0xf]
      %v534 = vld [vmem:[%s521 + $0x30] sm:$0xf]
      %v535 = vld [vmem:[%s521 + $0x34] sm:$0xf]
      %v536 = vld [vmem:[%s521 + $0x38] sm:$0xf]
      %v537 = vld [vmem:[%s521 + $0x3c] sm:$0xf]
      %v554 = vunpack.c.l.b16 %v522
      %v555 = vunpack.c.l.b16 %v523
      %v556 = vunpack.c.l.b16 %v524
      %v557 = vunpack.c.l.b16 %v525
      %v558 = vunpack.c.l.b16 %v526
      %v559 = vunpack.c.l.b16 %v527
      %v560 = vunpack.c.l.b16 %v528
      %v561 = vunpack.c.l.b16 %v529
      %v562 = vunpack.c.l.b16 %v530
      %v563 = vunpack.c.l.b16 %v531
      %v564 = vunpack.c.l.b16 %v532
      %v565 = vunpack.c.l.b16 %v533
      %v566 = vunpack.c.l.b16 %v534
      %v567 = vunpack.c.l.b16 %v535
      %v568 = vunpack.c.l.b16 %v536
      %v569 = vunpack.c.l.b16 %v537
      %v570 = vpack.c.b16 %v555, %v554
      %v571 = vpack.c.b16 %v557, %v556
      %v572 = vpack.c.b16 %v559, %v558
      %v573 = vpack.c.b16 %v561, %v560
      %v574 = vpack.c.b16 %v563, %v562
      %v575 = vpack.c.b16 %v565, %v564
      %v576 = vpack.c.b16 %v567, %v566
      %v577 = vpack.c.b16 %v569, %v568
      %586 = vmatpush.bf16.msra.mxu0 %v577
      %587 = vmatpush.bf16.msra.mxu0 %v576
      %588 = vmatpush.bf16.msra.mxu0 %v575
      %589 = vmatpush.bf16.msra.mxu0 %v574
      %590 = vmatpush.bf16.msra.mxu0 %v573
      %591 = vmatpush.bf16.msra.mxu0 %v572
      %592 = vmatpush.bf16.msra.mxu0 %v571
      %593 = vmatpush.bf16.msra.mxu0 %v570
      %594 = vmatmul.bf16.gmra.mxu0 %v517
      %v595 = vpop.f32.mrf.mxu0
      %v596 = vadd.f32 0.0, %v595
      %v597 = vpop.f32.mrf.mxu0
      %v598 = vadd.f32 0.0, %v597
      %599 = vmatmul.bf16.gmra.mxu0 %v518
      %v600 = vpop.f32.mrf.mxu0
      %v601 = vadd.f32 0.0, %v600
      %v602 = vpop.f32.mrf.mxu0
      %v603 = vadd.f32 0.0, %v602
      %604 = vmatmul.bf16.gmra.mxu0 %v519
      %v605 = vpop.f32.mrf.mxu0
      %v606 = vadd.f32 0.0, %v605
      %v607 = vpop.f32.mrf.mxu0
      %v608 = vadd.f32 0.0, %v607
      %609 = vmatmul.bf16.gmra.mxu0 %v520
      %v610 = vpop.f32.mrf.mxu0
      %v611 = vadd.f32 0.0, %v610
      %v612 = vpop.f32.mrf.mxu0
      %v613 = vadd.f32 0.0, %v612
      %614 = vdwg.mxu0
      %v615 = vld [vmem:[#allocation2] sm:$0xff]
      %v616 = vld [vmem:[#allocation2 + $0x8] sm:$0xff]
      %v617 = vld [vmem:[#allocation2 + $0x10] sm:$0xff]
      %v618 = vld [vmem:[#allocation2 + $0x18] sm:$0xff]
      %v619 = vld [vmem:[#allocation2 + $0x20] sm:$0xff]
      %v620 = vld [vmem:[#allocation2 + $0x28] sm:$0xff]
      %v621 = vld [vmem:[#allocation2 + $0x30] sm:$0xff]
      %v622 = vld [vmem:[#allocation2 + $0x38] sm:$0xff]
      %v623 = vadd.f32 %v615, %v596
      %v624 = vadd.f32 %v616, %v598
      %v625 = vadd.f32 %v617, %v601
      %v626 = vadd.f32 %v618, %v603
      %v627 = vadd.f32 %v619, %v606
      %v628 = vadd.f32 %v620, %v608
      %v629 = vadd.f32 %v621, %v611
      %v630 = vadd.f32 %v622, %v613
      %631 = vst [vmem:[#allocation2] sm:$0xff] %v623
      %632 = vst [vmem:[#allocation2 + $0x8] sm:$0xff] %v624
      %633 = vst [vmem:[#allocation2 + $0x10] sm:$0xff] %v625
      %634 = vst [vmem:[#allocation2 + $0x18] sm:$0xff] %v626
      %635 = vst [vmem:[#allocation2 + $0x20] sm:$0xff] %v627
      %636 = vst [vmem:[#allocation2 + $0x28] sm:$0xff] %v628
      %637 = vst [vmem:[#allocation2 + $0x30] sm:$0xff] %v629
      %638 = vst [vmem:[#allocation2 + $0x38] sm:$0xff] %v630
      %s639 = scalar_lea.vmem %s169, 144
      %v640 = vld [vmem:[%s639] sm:$0xf]
      %v641 = vld [vmem:[%s639 + $0x8] sm:$0xf]
      %v642 = vld [vmem:[%s639 + $0x10] sm:$0xf]
      %v643 = vld [vmem:[%s639 + $0x18] sm:$0xf]
      %v644 = vld [vmem:[%s639 + $0x20] sm:$0xf]
      %v645 = vld [vmem:[%s639 + $0x28] sm:$0xf]
      %v646 = vld [vmem:[%s639 + $0x30] sm:$0xf]
      %v647 = vld [vmem:[%s639 + $0x38] sm:$0xf]
      %v648 = vunpack.c.l.bf16 %v640
      %v649 = vunpack.c.l.bf16 %v641
      %v650 = vunpack.c.l.bf16 %v642
      %v651 = vunpack.c.l.bf16 %v643
      %v652 = vunpack.c.l.bf16 %v644
      %v653 = vunpack.c.l.bf16 %v645
      %v654 = vunpack.c.l.bf16 %v646
      %v655 = vunpack.c.l.bf16 %v647
      %v656 = vpack.c.bf16 %v649, %v648
      %v657 = vpack.c.bf16 %v651, %v650
      %v658 = vpack.c.bf16 %v653, %v652
      %v659 = vpack.c.bf16 %v655, %v654
      %s660 = scalar_lea.vmem %s1, 192
      %v661 = vld [vmem:[%s660] sm:$0xf]
      %v662 = vld [vmem:[%s660 + $0x4] sm:$0xf]
      %v663 = vld [vmem:[%s660 + $0x8] sm:$0xf]
      %v664 = vld [vmem:[%s660 + $0xc] sm:$0xf]
      %v665 = vld [vmem:[%s660 + $0x10] sm:$0xf]
      %v666 = vld [vmem:[%s660 + $0x14] sm:$0xf]
      %v667 = vld [vmem:[%s660 + $0x18] sm:$0xf]
      %v668 = vld [vmem:[%s660 + $0x1c] sm:$0xf]
      %v669 = vld [vmem:[%s660 + $0x20] sm:$0xf]
      %v670 = vld [vmem:[%s660 + $0x24] sm:$0xf]
      %v671 = vld [vmem:[%s660 + $0x28] sm:$0xf]
      %v672 = vld [vmem:[%s660 + $0x2c] sm:$0xf]
      %v673 = vld [vmem:[%s660 + $0x30] sm:$0xf]
      %v674 = vld [vmem:[%s660 + $0x34] sm:$0xf]
      %v675 = vld [vmem:[%s660 + $0x38] sm:$0xf]
      %v676 = vld [vmem:[%s660 + $0x3c] sm:$0xf]
      %v693 = vunpack.c.l.b16 %v661
      %v694 = vunpack.c.l.b16 %v662
      %v695 = vunpack.c.l.b16 %v663
      %v696 = vunpack.c.l.b16 %v664
      %v697 = vunpack.c.l.b16 %v665
      %v698 = vunpack.c.l.b16 %v666
      %v699 = vunpack.c.l.b16 %v667
      %v700 = vunpack.c.l.b16 %v668
      %v701 = vunpack.c.l.b16 %v669
      %v702 = vunpack.c.l.b16 %v670
      %v703 = vunpack.c.l.b16 %v671
      %v704 = vunpack.c.l.b16 %v672
      %v705 = vunpack.c.l.b16 %v673
      %v706 = vunpack.c.l.b16 %v674
      %v707 = vunpack.c.l.b16 %v675
      %v708 = vunpack.c.l.b16 %v676
      %v709 = vpack.c.b16 %v694, %v693
      %v710 = vpack.c.b16 %v696, %v695
      %v711 = vpack.c.b16 %v698, %v697
      %v712 = vpack.c.b16 %v700, %v699
      %v713 = vpack.c.b16 %v702, %v701
      %v714 = vpack.c.b16 %v704, %v703
      %v715 = vpack.c.b16 %v706, %v705
      %v716 = vpack.c.b16 %v708, %v707
      %725 = vmatpush.bf16.msra.mxu0 %v716
      %726 = vmatpush.bf16.msra.mxu0 %v715
      %727 = vmatpush.bf16.msra.mxu0 %v714
      %728 = vmatpush.bf16.msra.mxu0 %v713
      %729 = vmatpush.bf16.msra.mxu0 %v712
      %730 = vmatpush.bf16.msra.mxu0 %v711
      %731 = vmatpush.bf16.msra.mxu0 %v710
      %732 = vmatpush.bf16.msra.mxu0 %v709
      %733 = vmatmul.bf16.gmra.mxu0 %v656
      %v734 = vpop.f32.mrf.mxu0
      %v735 = vadd.f32 0.0, %v734
      %v736 = vpop.f32.mrf.mxu0
      %v737 = vadd.f32 0.0, %v736
      %738 = vmatmul.bf16.gmra.mxu0 %v657
      %v739 = vpop.f32.mrf.mxu0
      %v740 = vadd.f32 0.0, %v739
      %v741 = vpop.f32.mrf.mxu0
      %v742 = vadd.f32 0.0, %v741
      %743 = vmatmul.bf16.gmra.mxu0 %v658
      %v744 = vpop.f32.mrf.mxu0
      %v745 = vadd.f32 0.0, %v744
      %v746 = vpop.f32.mrf.mxu0
      %v747 = vadd.f32 0.0, %v746
      %748 = vmatmul.bf16.gmra.mxu0 %v659
      %v749 = vpop.f32.mrf.mxu0
      %v750 = vadd.f32 0.0, %v749
      %v751 = vpop.f32.mrf.mxu0
      %v752 = vadd.f32 0.0, %v751
      %753 = vdwg.mxu0
      %v754 = vld [vmem:[#allocation2] sm:$0xff]
      %v755 = vld [vmem:[#allocation2 + $0x8] sm:$0xff]
      %v756 = vld [vmem:[#allocation2 + $0x10] sm:$0xff]
      %v757 = vld [vmem:[#allocation2 + $0x18] sm:$0xff]
      %v758 = vld [vmem:[#allocation2 + $0x20] sm:$0xff]
      %v759 = vld [vmem:[#allocation2 + $0x28] sm:$0xff]
      %v760 = vld [vmem:[#allocation2 + $0x30] sm:$0xff]
      %v761 = vld [vmem:[#allocation2 + $0x38] sm:$0xff]
      %v762 = vadd.f32 %v754, %v735
      %v763 = vadd.f32 %v755, %v737
      %v764 = vadd.f32 %v756, %v740
      %v765 = vadd.f32 %v757, %v742
      %v766 = vadd.f32 %v758, %v745
      %v767 = vadd.f32 %v759, %v747
      %v768 = vadd.f32 %v760, %v750
      %v769 = vadd.f32 %v761, %v752
      %770 = vst [vmem:[#allocation2] sm:$0xff] %v762
      %771 = vst [vmem:[#allocation2 + $0x8] sm:$0xff] %v763
      %772 = vst [vmem:[#allocation2 + $0x10] sm:$0xff] %v764
      %773 = vst [vmem:[#allocation2 + $0x18] sm:$0xff] %v765
      %774 = vst [vmem:[#allocation2 + $0x20] sm:$0xff] %v766
      %775 = vst [vmem:[#allocation2 + $0x28] sm:$0xff] %v767
      %776 = vst [vmem:[#allocation2 + $0x30] sm:$0xff] %v768
      %777 = vst [vmem:[#allocation2 + $0x38] sm:$0xff] %v769
      %s778 = scalar_lea.vmem %s169, 216
      %v779 = vld [vmem:[%s778] sm:$0xf]
      %v780 = vld [vmem:[%s778 + $0x8] sm:$0xf]
      %v781 = vld [vmem:[%s778 + $0x10] sm:$0xf]
      %v782 = vld [vmem:[%s778 + $0x18] sm:$0xf]
      %v783 = vld [vmem:[%s778 + $0x20] sm:$0xf]
      %v784 = vld [vmem:[%s778 + $0x28] sm:$0xf]
      %v785 = vld [vmem:[%s778 + $0x30] sm:$0xf]
      %v786 = vld [vmem:[%s778 + $0x38] sm:$0xf]
      %v787 = vunpack.c.l.bf16 %v779
      %v788 = vunpack.c.l.bf16 %v780
      %v789 = vunpack.c.l.bf16 %v781
      %v790 = vunpack.c.l.bf16 %v782
      %v791 = vunpack.c.l.bf16 %v783
      %v792 = vunpack.c.l.bf16 %v784
      %v793 = vunpack.c.l.bf16 %v785
      %v794 = vunpack.c.l.bf16 %v786
      %v795 = vpack.c.bf16 %v788, %v787
      %v796 = vpack.c.bf16 %v790, %v789
      %v797 = vpack.c.bf16 %v792, %v791
      %v798 = vpack.c.bf16 %v794, %v793
      %s799 = scalar_lea.vmem %s1, 256
      %v800 = vld [vmem:[%s799] sm:$0xf]
      %v801 = vld [vmem:[%s799 + $0x4] sm:$0xf]
      %v802 = vld [vmem:[%s799 + $0x8] sm:$0xf]
      %v803 = vld [vmem:[%s799 + $0xc] sm:$0xf]
      %v804 = vld [vmem:[%s799 + $0x10] sm:$0xf]
      %v805 = vld [vmem:[%s799 + $0x14] sm:$0xf]
      %v806 = vld [vmem:[%s799 + $0x18] sm:$0xf]
      %v807 = vld [vmem:[%s799 + $0x1c] sm:$0xf]
      %v808 = vld [vmem:[%s799 + $0x20] sm:$0xf]
      %v809 = vld [vmem:[%s799 + $0x24] sm:$0xf]
      %v810 = vld [vmem:[%s799 + $0x28] sm:$0xf]
      %v811 = vld [vmem:[%s799 + $0x2c] sm:$0xf]
      %v812 = vld [vmem:[%s799 + $0x30] sm:$0xf]
      %v813 = vld [vmem:[%s799 + $0x34] sm:$0xf]
      %v814 = vld [vmem:[%s799 + $0x38] sm:$0xf]
      %v815 = vld [vmem:[%s799 + $0x3c] sm:$0xf]
      %v832 = vunpack.c.l.b16 %v800
      %v833 = vunpack.c.l.b16 %v801
      %v834 = vunpack.c.l.b16 %v802
      %v835 = vunpack.c.l.b16 %v803
      %v836 = vunpack.c.l.b16 %v804
      %v837 = vunpack.c.l.b16 %v805
      %v838 = vunpack.c.l.b16 %v806
      %v839 = vunpack.c.l.b16 %v807
      %v840 = vunpack.c.l.b16 %v808
      %v841 = vunpack.c.l.b16 %v809
      %v842 = vunpack.c.l.b16 %v810
      %v843 = vunpack.c.l.b16 %v811
      %v844 = vunpack.c.l.b16 %v812
      %v845 = vunpack.c.l.b16 %v813
      %v846 = vunpack.c.l.b16 %v814
      %v847 = vunpack.c.l.b16 %v815
      %v848 = vpack.c.b16 %v833, %v832
      %v849 = vpack.c.b16 %v835, %v834
      %v850 = vpack.c.b16 %v837, %v836
      %v851 = vpack.c.b16 %v839, %v838
      %v852 = vpack.c.b16 %v841, %v840
      %v853 = vpack.c.b16 %v843, %v842
      %v854 = vpack.c.b16 %v845, %v844
      %v855 = vpack.c.b16 %v847, %v846
      %864 = vmatpush.bf16.msra.mxu0 %v855
      %865 = vmatpush.bf16.msra.mxu0 %v854
      %866 = vmatpush.bf16.msra.mxu0 %v853
      %867 = vmatpush.bf16.msra.mxu0 %v852
      %868 = vmatpush.bf16.msra.mxu0 %v851
      %869 = vmatpush.bf16.msra.mxu0 %v850
      %870 = vmatpush.bf16.msra.mxu0 %v849
      %871 = vmatpush.bf16.msra.mxu0 %v848
      %872 = vmatmul.bf16.gmra.mxu0 %v795
      %v873 = vpop.f32.mrf.mxu0
      %v874 = vadd.f32 0.0, %v873
      %v875 = vpop.f32.mrf.mxu0
      %v876 = vadd.f32 0.0, %v875
      %877 = vmatmul.bf16.gmra.mxu0 %v796
      %v878 = vpop.f32.mrf.mxu0
      %v879 = vadd.f32 0.0, %v878
      %v880 = vpop.f32.mrf.mxu0
      %v881 = vadd.f32 0.0, %v880
      %882 = vmatmul.bf16.gmra.mxu0 %v797
      %v883 = vpop.f32.mrf.mxu0
      %v884 = vadd.f32 0.0, %v883
      %v885 = vpop.f32.mrf.mxu0
      %v886 = vadd.f32 0.0, %v885
      %887 = vmatmul.bf16.gmra.mxu0 %v798
      %v888 = vpop.f32.mrf.mxu0
      %v889 = vadd.f32 0.0, %v888
      %v890 = vpop.f32.mrf.mxu0
      %v891 = vadd.f32 0.0, %v890
      %892 = vdwg.mxu0
      %v893 = vld [vmem:[#allocation2] sm:$0xff]
      %v894 = vld [vmem:[#allocation2 + $0x8] sm:$0xff]
      %v895 = vld [vmem:[#allocation2 + $0x10] sm:$0xff]
      %v896 = vld [vmem:[#allocation2 + $0x18] sm:$0xff]
      %v897 = vld [vmem:[#allocation2 + $0x20] sm:$0xff]
      %v898 = vld [vmem:[#allocation2 + $0x28] sm:$0xff]
      %v899 = vld [vmem:[#allocation2 + $0x30] sm:$0xff]
      %v900 = vld [vmem:[#allocation2 + $0x38] sm:$0xff]
      %v901 = vadd.f32 %v893, %v874
      %v902 = vadd.f32 %v894, %v876
      %v903 = vadd.f32 %v895, %v879
      %v904 = vadd.f32 %v896, %v881
      %v905 = vadd.f32 %v897, %v884
      %v906 = vadd.f32 %v898, %v886
      %v907 = vadd.f32 %v899, %v889
      %v908 = vadd.f32 %v900, %v891
      %909 = vst [vmem:[#allocation2] sm:$0xff] %v901
      %910 = vst [vmem:[#allocation2 + $0x8] sm:$0xff] %v902
      %911 = vst [vmem:[#allocation2 + $0x10] sm:$0xff] %v903
      %912 = vst [vmem:[#allocation2 + $0x18] sm:$0xff] %v904
      %913 = vst [vmem:[#allocation2 + $0x20] sm:$0xff] %v905
      %914 = vst [vmem:[#allocation2 + $0x28] sm:$0xff] %v906
      %915 = vst [vmem:[#allocation2 + $0x30] sm:$0xff] %v907
      %916 = vst [vmem:[#allocation2 + $0x38] sm:$0xff] %v908
      %v917 = vld [vmem:[%s639] sm:$0xf]
      %v918 = vld [vmem:[%s639 + $0x4] sm:$0x1]
      %v919 = vld [vmem:[%s639 + $0x8] sm:$0xf]
      %v920 = vld [vmem:[%s639 + $0xc] sm:$0x1]
      %v921 = vld [vmem:[%s639 + $0x10] sm:$0xf]
      %v922 = vld [vmem:[%s639 + $0x14] sm:$0x1]
      %v923 = vld [vmem:[%s639 + $0x18] sm:$0xf]
      %v924 = vld [vmem:[%s639 + $0x1c] sm:$0x1]
      %v925 = vld [vmem:[%s639 + $0x20] sm:$0xf]
      %v926 = vld [vmem:[%s639 + $0x24] sm:$0x1]
      %v927 = vld [vmem:[%s639 + $0x28] sm:$0xf]
      %v928 = vld [vmem:[%s639 + $0x2c] sm:$0x1]
      %v929 = vld [vmem:[%s639 + $0x30] sm:$0xf]
      %v930 = vld [vmem:[%s639 + $0x34] sm:$0x1]
      %v931 = vld [vmem:[%s639 + $0x38] sm:$0xf]
      %v932 = vld [vmem:[%s639 + $0x3c] sm:$0x1]
      %v933 = vunpack.c.l.bf16 %v917
      %v934 = vunpack.c.l.bf16 %v918
      %v935 = vunpack.c.l.bf16 %v919
      %v936 = vunpack.c.l.bf16 %v920
      %v937 = vunpack.c.l.bf16 %v921
      %v938 = vunpack.c.l.bf16 %v922
      %v939 = vunpack.c.l.bf16 %v923
      %v940 = vunpack.c.l.bf16 %v924
      %v941 = vunpack.c.l.bf16 %v925
      %v942 = vunpack.c.l.bf16 %v926
      %v943 = vunpack.c.l.bf16 %v927
      %v944 = vunpack.c.l.bf16 %v928
      %v945 = vunpack.c.l.bf16 %v929
      %v946 = vunpack.c.l.bf16 %v930
      %v947 = vunpack.c.l.bf16 %v931
      %v948 = vunpack.c.l.bf16 %v932
      %v965 = vrot.slane %v933, 1
      %v966 = vrot.slane %v934, 1
      %v967 = vsel %vm484, %v965, %v966
      %v968 = vrot.slane %v935, 1
      %v969 = vrot.slane %v936, 1
      %v970 = vsel %vm484, %v968, %v969
      %v971 = vrot.slane %v937, 1
      %v972 = vrot.slane %v938, 1
      %v973 = vsel %vm484, %v971, %v972
      %v974 = vrot.slane %v939, 1
      %v975 = vrot.slane %v940, 1
      %v976 = vsel %vm484, %v974, %v975
      %v977 = vrot.slane %v941, 1
      %v978 = vrot.slane %v942, 1
      %v979 = vsel %vm484, %v977, %v978
      %v980 = vrot.slane %v943, 1
      %v981 = vrot.slane %v944, 1
      %v982 = vsel %vm484, %v980, %v981
      %v983 = vrot.slane %v945, 1
      %v984 = vrot.slane %v946, 1
      %v985 = vsel %vm484, %v983, %v984
      %v986 = vrot.slane %v947, 1
      %v987 = vrot.slane %v948, 1
      %v988 = vsel %vm484, %v986, %v987
      %v997 = vpack.c.bf16 %v970, %v967
      %v998 = vpack.c.bf16 %v976, %v973
      %v999 = vpack.c.bf16 %v982, %v979
      %v1000 = vpack.c.bf16 %v988, %v985
      %s1001 = scalar_lea.vmem %s1, 320
      %v1002 = vld [vmem:[%s1001] sm:$0xf]
      %v1003 = vld [vmem:[%s1001 + $0x4] sm:$0xf]
      %v1004 = vld [vmem:[%s1001 + $0x8] sm:$0xf]
      %v1005 = vld [vmem:[%s1001 + $0xc] sm:$0xf]
      %v1006 = vld [vmem:[%s1001 + $0x10] sm:$0xf]
      %v1007 = vld [vmem:[%s1001 + $0x14] sm:$0xf]
      %v1008 = vld [vmem:[%s1001 + $0x18] sm:$0xf]
      %v1009 = vld [vmem:[%s1001 + $0x1c] sm:$0xf]
      %v1010 = vld [vmem:[%s1001 + $0x20] sm:$0xf]
      %v1011 = vld [vmem:[%s1001 + $0x24] sm:$0xf]
      %v1012 = vld [vmem:[%s1001 + $0x28] sm:$0xf]
      %v1013 = vld [vmem:[%s1001 + $0x2c] sm:$0xf]
      %v1014 = vld [vmem:[%s1001 + $0x30] sm:$0xf]
      %v1015 = vld [vmem:[%s1001 + $0x34] sm:$0xf]
      %v1016 = vld [vmem:[%s1001 + $0x38] sm:$0xf]
      %v1017 = vld [vmem:[%s1001 + $0x3c] sm:$0xf]
      %v1034 = vunpack.c.l.b16 %v1002
      %v1035 = vunpack.c.l.b16 %v1003
      %v1036 = vunpack.c.l.b16 %v1004
      %v1037 = vunpack.c.l.b16 %v1005
      %v1038 = vunpack.c.l.b16 %v1006
      %v1039 = vunpack.c.l.b16 %v1007
      %v1040 = vunpack.c.l.b16 %v1008
      %v1041 = vunpack.c.l.b16 %v1009
      %v1042 = vunpack.c.l.b16 %v1010
      %v1043 = vunpack.c.l.b16 %v1011
      %v1044 = vunpack.c.l.b16 %v1012
      %v1045 = vunpack.c.l.b16 %v1013
      %v1046 = vunpack.c.l.b16 %v1014
      %v1047 = vunpack.c.l.b16 %v1015
      %v1048 = vunpack.c.l.b16 %v1016
      %v1049 = vunpack.c.l.b16 %v1017
      %v1050 = vpack.c.b16 %v1035, %v1034
      %v1051 = vpack.c.b16 %v1037, %v1036
      %v1052 = vpack.c.b16 %v1039, %v1038
      %v1053 = vpack.c.b16 %v1041, %v1040
      %v1054 = vpack.c.b16 %v1043, %v1042
      %v1055 = vpack.c.b16 %v1045, %v1044
      %v1056 = vpack.c.b16 %v1047, %v1046
      %v1057 = vpack.c.b16 %v1049, %v1048
      %1066 = vmatpush.bf16.msra.mxu0 %v1057
      %1067 = vmatpush.bf16.msra.mxu0 %v1056
      %1068 = vmatpush.bf16.msra.mxu0 %v1055
      %1069 = vmatpush.bf16.msra.mxu0 %v1054
      %1070 = vmatpush.bf16.msra.mxu0 %v1053
      %1071 = vmatpush.bf16.msra.mxu0 %v1052
      %1072 = vmatpush.bf16.msra.mxu0 %v1051
      %1073 = vmatpush.bf16.msra.mxu0 %v1050
      %1074 = vmatmul.bf16.gmra.mxu0 %v997
      %v1075 = vpop.f32.mrf.mxu0
      %v1076 = vadd.f32 0.0, %v1075
      %v1077 = vpop.f32.mrf.mxu0
      %v1078 = vadd.f32 0.0, %v1077
      %1079 = vmatmul.bf16.gmra.mxu0 %v998
      %v1080 = vpop.f32.mrf.mxu0
      %v1081 = vadd.f32 0.0, %v1080
      %v1082 = vpop.f32.mrf.mxu0
      %v1083 = vadd.f32 0.0, %v1082
      %1084 = vmatmul.bf16.gmra.mxu0 %v999
      %v1085 = vpop.f32.mrf.mxu0
      %v1086 = vadd.f32 0.0, %v1085
      %v1087 = vpop.f32.mrf.mxu0
      %v1088 = vadd.f32 0.0, %v1087
      %1089 = vmatmul.bf16.gmra.mxu0 %v1000
      %v1090 = vpop.f32.mrf.mxu0
      %v1091 = vadd.f32 0.0, %v1090
      %v1092 = vpop.f32.mrf.mxu0
      %v1093 = vadd.f32 0.0, %v1092
      %1094 = vdwg.mxu0
      %v1095 = vld [vmem:[#allocation2] sm:$0xff]
      %v1096 = vld [vmem:[#allocation2 + $0x8] sm:$0xff]
      %v1097 = vld [vmem:[#allocation2 + $0x10] sm:$0xff]
      %v1098 = vld [vmem:[#allocation2 + $0x18] sm:$0xff]
      %v1099 = vld [vmem:[#allocation2 + $0x20] sm:$0xff]
      %v1100 = vld [vmem:[#allocation2 + $0x28] sm:$0xff]
      %v1101 = vld [vmem:[#allocation2 + $0x30] sm:$0xff]
      %v1102 = vld [vmem:[#allocation2 + $0x38] sm:$0xff]
      %v1103 = vadd.f32 %v1095, %v1076
      %v1104 = vadd.f32 %v1096, %v1078
      %v1105 = vadd.f32 %v1097, %v1081
      %v1106 = vadd.f32 %v1098, %v1083
      %v1107 = vadd.f32 %v1099, %v1086
      %v1108 = vadd.f32 %v1100, %v1088
      %v1109 = vadd.f32 %v1101, %v1091
      %v1110 = vadd.f32 %v1102, %v1093
      %1111 = vst [vmem:[#allocation2] sm:$0xff] %v1103
      %1112 = vst [vmem:[#allocation2 + $0x8] sm:$0xff] %v1104
      %1113 = vst [vmem:[#allocation2 + $0x10] sm:$0xff] %v1105
      %1114 = vst [vmem:[#allocation2 + $0x18] sm:$0xff] %v1106
      %1115 = vst [vmem:[#allocation2 + $0x20] sm:$0xff] %v1107
      %1116 = vst [vmem:[#allocation2 + $0x28] sm:$0xff] %v1108
      %1117 = vst [vmem:[#allocation2 + $0x30] sm:$0xff] %v1109
      %1118 = vst [vmem:[#allocation2 + $0x38] sm:$0xff] %v1110
      %s1119 = scalar_lea.vmem %s169, 8
      %v1120 = vld [vmem:[%s1119] sm:$0xf]
      %v1121 = vld [vmem:[%s1119 + $0x8] sm:$0xf]
      %v1122 = vld [vmem:[%s1119 + $0x10] sm:$0xf]
      %v1123 = vld [vmem:[%s1119 + $0x18] sm:$0xf]
      %v1124 = vld [vmem:[%s1119 + $0x20] sm:$0xf]
      %v1125 = vld [vmem:[%s1119 + $0x28] sm:$0xf]
      %v1126 = vld [vmem:[%s1119 + $0x30] sm:$0xf]
      %v1127 = vld [vmem:[%s1119 + $0x38] sm:$0xf]
      %v1128 = vunpack.c.l.bf16 %v1120
      %v1129 = vunpack.c.l.bf16 %v1121
      %v1130 = vunpack.c.l.bf16 %v1122
      %v1131 = vunpack.c.l.bf16 %v1123
      %v1132 = vunpack.c.l.bf16 %v1124
      %v1133 = vunpack.c.l.bf16 %v1125
      %v1134 = vunpack.c.l.bf16 %v1126
      %v1135 = vunpack.c.l.bf16 %v1127
      %v1136 = vpack.c.bf16 %v1129, %v1128
      %v1137 = vpack.c.bf16 %v1131, %v1130
      %v1138 = vpack.c.bf16 %v1133, %v1132
      %v1139 = vpack.c.bf16 %v1135, %v1134
      %s1140 = scalar_lea.vmem %s1, 384
      %v1141 = vld [vmem:[%s1140] sm:$0xf]
      %v1142 = vld [vmem:[%s1140 + $0x4] sm:$0xf]
      %v1143 = vld [vmem:[%s1140 + $0x8] sm:$0xf]
      %v1144 = vld [vmem:[%s1140 + $0xc] sm:$0xf]
      %v1145 = vld [vmem:[%s1140 + $0x10] sm:$0xf]
      %v1146 = vld [vmem:[%s1140 + $0x14] sm:$0xf]
      %v1147 = vld [vmem:[%s1140 + $0x18] sm:$0xf]
      %v1148 = vld [vmem:[%s1140 + $0x1c] sm:$0xf]
      %v1149 = vld [vmem:[%s1140 + $0x20] sm:$0xf]
      %v1150 = vld [vmem:[%s1140 + $0x24] sm:$0xf]
      %v1151 = vld [vmem:[%s1140 + $0x28] sm:$0xf]
      %v1152 = vld [vmem:[%s1140 + $0x2c] sm:$0xf]
      %v1153 = vld [vmem:[%s1140 + $0x30] sm:$0xf]
      %v1154 = vld [vmem:[%s1140 + $0x34] sm:$0xf]
      %v1155 = vld [vmem:[%s1140 + $0x38] sm:$0xf]
      %v1156 = vld [vmem:[%s1140 + $0x3c] sm:$0xf]
      %v1173 = vunpack.c.l.b16 %v1141
      %v1174 = vunpack.c.l.b16 %v1142
      %v1175 = vunpack.c.l.b16 %v1143
      %v1176 = vunpack.c.l.b16 %v1144
      %v1177 = vunpack.c.l.b16 %v1145
      %v1178 = vunpack.c.l.b16 %v1146
      %v1179 = vunpack.c.l.b16 %v1147
      %v1180 = vunpack.c.l.b16 %v1148
      %v1181 = vunpack.c.l.b16 %v1149
      %v1182 = vunpack.c.l.b16 %v1150
      %v1183 = vunpack.c.l.b16 %v1151
      %v1184 = vunpack.c.l.b16 %v1152
      %v1185 = vunpack.c.l.b16 %v1153
      %v1186 = vunpack.c.l.b16 %v1154
      %v1187 = vunpack.c.l.b16 %v1155
      %v1188 = vunpack.c.l.b16 %v1156
      %v1189 = vpack.c.b16 %v1174, %v1173
      %v1190 = vpack.c.b16 %v1176, %v1175
      %v1191 = vpack.c.b16 %v1178, %v1177
      %v1192 = vpack.c.b16 %v1180, %v1179
      %v1193 = vpack.c.b16 %v1182, %v1181
      %v1194 = vpack.c.b16 %v1184, %v1183
      %v1195 = vpack.c.b16 %v1186, %v1185
      %v1196 = vpack.c.b16 %v1188, %v1187
      %1205 = vmatpush.bf16.msra.mxu0 %v1196
      %1206 = vmatpush.bf16.msra.mxu0 %v1195
      %1207 = vmatpush.bf16.msra.mxu0 %v1194
      %1208 = vmatpush.bf16.msra.mxu0 %v1193
      %1209 = vmatpush.bf16.msra.mxu0 %v1192
      %1210 = vmatpush.bf16.msra.mxu0 %v1191
      %1211 = vmatpush.bf16.msra.mxu0 %v1190
      %1212 = vmatpush.bf16.msra.mxu0 %v1189
      %1213 = vmatmul.bf16.gmra.mxu0 %v1136
      %v1214 = vpop.f32.mrf.mxu0
      %v1215 = vadd.f32 0.0, %v1214
      %v1216 = vpop.f32.mrf.mxu0
      %v1217 = vadd.f32 0.0, %v1216
      %1218 = vmatmul.bf16.gmra.mxu0 %v1137
      %v1219 = vpop.f32.mrf.mxu0
      %v1220 = vadd.f32 0.0, %v1219
      %v1221 = vpop.f32.mrf.mxu0
      %v1222 = vadd.f32 0.0, %v1221
      %1223 = vmatmul.bf16.gmra.mxu0 %v1138
      %v1224 = vpop.f32.mrf.mxu0
      %v1225 = vadd.f32 0.0, %v1224
      %v1226 = vpop.f32.mrf.mxu0
      %v1227 = vadd.f32 0.0, %v1226
      %1228 = vmatmul.bf16.gmra.mxu0 %v1139
      %v1229 = vpop.f32.mrf.mxu0
      %v1230 = vadd.f32 0.0, %v1229
      %v1231 = vpop.f32.mrf.mxu0
      %v1232 = vadd.f32 0.0, %v1231
      %1233 = vdwg.mxu0
      %v1234 = vld [vmem:[#allocation2] sm:$0xff]
      %v1235 = vld [vmem:[#allocation2 + $0x8] sm:$0xff]
      %v1236 = vld [vmem:[#allocation2 + $0x10] sm:$0xff]
      %v1237 = vld [vmem:[#allocation2 + $0x18] sm:$0xff]
      %v1238 = vld [vmem:[#allocation2 + $0x20] sm:$0xff]
      %v1239 = vld [vmem:[#allocation2 + $0x28] sm:$0xff]
      %v1240 = vld [vmem:[#allocation2 + $0x30] sm:$0xff]
      %v1241 = vld [vmem:[#allocation2 + $0x38] sm:$0xff]
      %v1242 = vadd.f32 %v1234, %v1215
      %v1243 = vadd.f32 %v1235, %v1217
      %v1244 = vadd.f32 %v1236, %v1220
      %v1245 = vadd.f32 %v1237, %v1222
      %v1246 = vadd.f32 %v1238, %v1225
      %v1247 = vadd.f32 %v1239, %v1227
      %v1248 = vadd.f32 %v1240, %v1230
      %v1249 = vadd.f32 %v1241, %v1232
      %1250 = vst [vmem:[#allocation2] sm:$0xff] %v1242
      %1251 = vst [vmem:[#allocation2 + $0x8] sm:$0xff] %v1243
      %1252 = vst [vmem:[#allocation2 + $0x10] sm:$0xff] %v1244
      %1253 = vst [vmem:[#allocation2 + $0x18] sm:$0xff] %v1245
      %1254 = vst [vmem:[#allocation2 + $0x20] sm:$0xff] %v1246
      %1255 = vst [vmem:[#allocation2 + $0x28] sm:$0xff] %v1247
      %1256 = vst [vmem:[#allocation2 + $0x30] sm:$0xff] %v1248
      %1257 = vst [vmem:[#allocation2 + $0x38] sm:$0xff] %v1249
      %s1258 = scalar_lea.vmem %s169, 80
      %v1259 = vld [vmem:[%s1258] sm:$0xf]
      %v1260 = vld [vmem:[%s1258 + $0x8] sm:$0xf]
      %v1261 = vld [vmem:[%s1258 + $0x10] sm:$0xf]
      %v1262 = vld [vmem:[%s1258 + $0x18] sm:$0xf]
      %v1263 = vld [vmem:[%s1258 + $0x20] sm:$0xf]
      %v1264 = vld [vmem:[%s1258 + $0x28] sm:$0xf]
      %v1265 = vld [vmem:[%s1258 + $0x30] sm:$0xf]
      %v1266 = vld [vmem:[%s1258 + $0x38] sm:$0xf]
      %v1267 = vunpack.c.l.bf16 %v1259
      %v1268 = vunpack.c.l.bf16 %v1260
      %v1269 = vunpack.c.l.bf16 %v1261
      %v1270 = vunpack.c.l.bf16 %v1262
      %v1271 = vunpack.c.l.bf16 %v1263
      %v1272 = vunpack.c.l.bf16 %v1264
      %v1273 = vunpack.c.l.bf16 %v1265
      %v1274 = vunpack.c.l.bf16 %v1266
      %v1275 = vpack.c.bf16 %v1268, %v1267
      %v1276 = vpack.c.bf16 %v1270, %v1269
      %v1277 = vpack.c.bf16 %v1272, %v1271
      %v1278 = vpack.c.bf16 %v1274, %v1273
      %s1279 = scalar_lea.vmem %s1, 448
      %v1280 = vld [vmem:[%s1279] sm:$0xf]
      %v1281 = vld [vmem:[%s1279 + $0x4] sm:$0xf]
      %v1282 = vld [vmem:[%s1279 + $0x8] sm:$0xf]
      %v1283 = vld [vmem:[%s1279 + $0xc] sm:$0xf]
      %v1284 = vld [vmem:[%s1279 + $0x10] sm:$0xf]
      %v1285 = vld [vmem:[%s1279 + $0x14] sm:$0xf]
      %v1286 = vld [vmem:[%s1279 + $0x18] sm:$0xf]
      %v1287 = vld [vmem:[%s1279 + $0x1c] sm:$0xf]
      %v1288 = vld [vmem:[%s1279 + $0x20] sm:$0xf]
      %v1289 = vld [vmem:[%s1279 + $0x24] sm:$0xf]
      %v1290 = vld [vmem:[%s1279 + $0x28] sm:$0xf]
      %v1291 = vld [vmem:[%s1279 + $0x2c] sm:$0xf]
      %v1292 = vld [vmem:[%s1279 + $0x30] sm:$0xf]
      %v1293 = vld [vmem:[%s1279 + $0x34] sm:$0xf]
      %v1294 = vld [vmem:[%s1279 + $0x38] sm:$0xf]
      %v1295 = vld [vmem:[%s1279 + $0x3c] sm:$0xf]
      %v1312 = vunpack.c.l.b16 %v1280
      %v1313 = vunpack.c.l.b16 %v1281
      %v1314 = vunpack.c.l.b16 %v1282
      %v1315 = vunpack.c.l.b16 %v1283
      %v1316 = vunpack.c.l.b16 %v1284
      %v1317 = vunpack.c.l.b16 %v1285
      %v1318 = vunpack.c.l.b16 %v1286
      %v1319 = vunpack.c.l.b16 %v1287
      %v1320 = vunpack.c.l.b16 %v1288
      %v1321 = vunpack.c.l.b16 %v1289
      %v1322 = vunpack.c.l.b16 %v1290
      %v1323 = vunpack.c.l.b16 %v1291
      %v1324 = vunpack.c.l.b16 %v1292
      %v1325 = vunpack.c.l.b16 %v1293
      %v1326 = vunpack.c.l.b16 %v1294
      %v1327 = vunpack.c.l.b16 %v1295
      %v1328 = vpack.c.b16 %v1313, %v1312
      %v1329 = vpack.c.b16 %v1315, %v1314
      %v1330 = vpack.c.b16 %v1317, %v1316
      %v1331 = vpack.c.b16 %v1319, %v1318
      %v1332 = vpack.c.b16 %v1321, %v1320
      %v1333 = vpack.c.b16 %v1323, %v1322
      %v1334 = vpack.c.b16 %v1325, %v1324
      %v1335 = vpack.c.b16 %v1327, %v1326
      %1344 = vmatpush.bf16.msra.mxu0 %v1335
      %1345 = vmatpush.bf16.msra.mxu0 %v1334
      %1346 = vmatpush.bf16.msra.mxu0 %v1333
      %1347 = vmatpush.bf16.msra.mxu0 %v1332
      %1348 = vmatpush.bf16.msra.mxu0 %v1331
      %1349 = vmatpush.bf16.msra.mxu0 %v1330
      %1350 = vmatpush.bf16.msra.mxu0 %v1329
      %1351 = vmatpush.bf16.msra.mxu0 %v1328
      %1352 = vmatmul.bf16.gmra.mxu0 %v1275
      %v1353 = vpop.f32.mrf.mxu0
      %v1354 = vadd.f32 0.0, %v1353
      %v1355 = vpop.f32.mrf.mxu0
      %v1356 = vadd.f32 0.0, %v1355
      %1357 = vmatmul.bf16.gmra.mxu0 %v1276
      %v1358 = vpop.f32.mrf.mxu0
      %v1359 = vadd.f32 0.0, %v1358
      %v1360 = vpop.f32.mrf.mxu0
      %v1361 = vadd.f32 0.0, %v1360
      %1362 = vmatmul.bf16.gmra.mxu0 %v1277
      %v1363 = vpop.f32.mrf.mxu0
      %v1364 = vadd.f32 0.0, %v1363
      %v1365 = vpop.f32.mrf.mxu0
      %v1366 = vadd.f32 0.0, %v1365
      %1367 = vmatmul.bf16.gmra.mxu0 %v1278
      %v1368 = vpop.f32.mrf.mxu0
      %v1369 = vadd.f32 0.0, %v1368
      %v1370 = vpop.f32.mrf.mxu0
      %v1371 = vadd.f32 0.0, %v1370
      %1372 = vdwg.mxu0
      %v1373 = vld [vmem:[#allocation2] sm:$0xff]
      %v1374 = vld [vmem:[#allocation2 + $0x8] sm:$0xff]
      %v1375 = vld [vmem:[#allocation2 + $0x10] sm:$0xff]
      %v1376 = vld [vmem:[#allocation2 + $0x18] sm:$0xff]
      %v1377 = vld [vmem:[#allocation2 + $0x20] sm:$0xff]
      %v1378 = vld [vmem:[#allocation2 + $0x28] sm:$0xff]
      %v1379 = vld [vmem:[#allocation2 + $0x30] sm:$0xff]
      %v1380 = vld [vmem:[#allocation2 + $0x38] sm:$0xff]
      %v1381 = vadd.f32 %v1373, %v1354
      %v1382 = vadd.f32 %v1374, %v1356
      %v1383 = vadd.f32 %v1375, %v1359
      %v1384 = vadd.f32 %v1376, %v1361
      %v1385 = vadd.f32 %v1377, %v1364
      %v1386 = vadd.f32 %v1378, %v1366
      %v1387 = vadd.f32 %v1379, %v1369
      %v1388 = vadd.f32 %v1380, %v1371
      %1389 = vst [vmem:[#allocation2] sm:$0xff] %v1381
      %1390 = vst [vmem:[#allocation2 + $0x8] sm:$0xff] %v1382
      %1391 = vst [vmem:[#allocation2 + $0x10] sm:$0xff] %v1383
      %1392 = vst [vmem:[#allocation2 + $0x18] sm:$0xff] %v1384
      %1393 = vst [vmem:[#allocation2 + $0x20] sm:$0xff] %v1385
      %1394 = vst [vmem:[#allocation2 + $0x28] sm:$0xff] %v1386
      %1395 = vst [vmem:[#allocation2 + $0x30] sm:$0xff] %v1387
      %1396 = vst [vmem:[#allocation2 + $0x38] sm:$0xff] %v1388
      %v1397 = vld [vmem:[%s1119] sm:$0xf]
      %v1398 = vld [vmem:[%s1119 + $0x4] sm:$0x1]
      %v1399 = vld [vmem:[%s1119 + $0x8] sm:$0xf]
      %v1400 = vld [vmem:[%s1119 + $0xc] sm:$0x1]
      %v1401 = vld [vmem:[%s1119 + $0x10] sm:$0xf]
      %v1402 = vld [vmem:[%s1119 + $0x14] sm:$0x1]
      %v1403 = vld [vmem:[%s1119 + $0x18] sm:$0xf]
      %v1404 = vld [vmem:[%s1119 + $0x1c] sm:$0x1]
      %v1405 = vld [vmem:[%s1119 + $0x20] sm:$0xf]
      %v1406 = vld [vmem:[%s1119 + $0x24] sm:$0x1]
      %v1407 = vld [vmem:[%s1119 + $0x28] sm:$0xf]
      %v1408 = vld [vmem:[%s1119 + $0x2c] sm:$0x1]
      %v1409 = vld [vmem:[%s1119 + $0x30] sm:$0xf]
      %v1410 = vld [vmem:[%s1119 + $0x34] sm:$0x1]
      %v1411 = vld [vmem:[%s1119 + $0x38] sm:$0xf]
      %v1412 = vld [vmem:[%s1119 + $0x3c] sm:$0x1]
      %v1413 = vunpack.c.l.bf16 %v1397
      %v1414 = vunpack.c.l.bf16 %v1398
      %v1415 = vunpack.c.l.bf16 %v1399
      %v1416 = vunpack.c.l.bf16 %v1400
      %v1417 = vunpack.c.l.bf16 %v1401
      %v1418 = vunpack.c.l.bf16 %v1402
      %v1419 = vunpack.c.l.bf16 %v1403
      %v1420 = vunpack.c.l.bf16 %v1404
      %v1421 = vunpack.c.l.bf16 %v1405
      %v1422 = vunpack.c.l.bf16 %v1406
      %v1423 = vunpack.c.l.bf16 %v1407
      %v1424 = vunpack.c.l.bf16 %v1408
      %v1425 = vunpack.c.l.bf16 %v1409
      %v1426 = vunpack.c.l.bf16 %v1410
      %v1427 = vunpack.c.l.bf16 %v1411
      %v1428 = vunpack.c.l.bf16 %v1412
      %v1445 = vrot.slane %v1413, 1
      %v1446 = vrot.slane %v1414, 1
      %v1447 = vsel %vm484, %v1445, %v1446
      %v1448 = vrot.slane %v1415, 1
      %v1449 = vrot.slane %v1416, 1
      %v1450 = vsel %vm484, %v1448, %v1449
      %v1451 = vrot.slane %v1417, 1
      %v1452 = vrot.slane %v1418, 1
      %v1453 = vsel %vm484, %v1451, %v1452
      %v1454 = vrot.slane %v1419, 1
      %v1455 = vrot.slane %v1420, 1
      %v1456 = vsel %vm484, %v1454, %v1455
      %v1457 = vrot.slane %v1421, 1
      %v1458 = vrot.slane %v1422, 1
      %v1459 = vsel %vm484, %v1457, %v1458
      %v1460 = vrot.slane %v1423, 1
      %v1461 = vrot.slane %v1424, 1
      %v1462 = vsel %vm484, %v1460, %v1461
      %v1463 = vrot.slane %v1425, 1
      %v1464 = vrot.slane %v1426, 1
      %v1465 = vsel %vm484, %v1463, %v1464
      %v1466 = vrot.slane %v1427, 1
      %v1467 = vrot.slane %v1428, 1
      %v1468 = vsel %vm484, %v1466, %v1467
      %v1477 = vpack.c.bf16 %v1450, %v1447
      %v1478 = vpack.c.bf16 %v1456, %v1453
      %v1479 = vpack.c.bf16 %v1462, %v1459
      %v1480 = vpack.c.bf16 %v1468, %v1465
      %s1481 = scalar_lea.vmem %s1, 512
      %v1482 = vld [vmem:[%s1481] sm:$0xf]
      %v1483 = vld [vmem:[%s1481 + $0x4] sm:$0xf]
      %v1484 = vld [vmem:[%s1481 + $0x8] sm:$0xf]
      %v1485 = vld [vmem:[%s1481 + $0xc] sm:$0xf]
      %v1486 = vld [vmem:[%s1481 + $0x10] sm:$0xf]
      %v1487 = vld [vmem:[%s1481 + $0x14] sm:$0xf]
      %v1488 = vld [vmem:[%s1481 + $0x18] sm:$0xf]
      %v1489 = vld [vmem:[%s1481 + $0x1c] sm:$0xf]
      %v1490 = vld [vmem:[%s1481 + $0x20] sm:$0xf]
      %v1491 = vld [vmem:[%s1481 + $0x24] sm:$0xf]
      %v1492 = vld [vmem:[%s1481 + $0x28] sm:$0xf]
      %v1493 = vld [vmem:[%s1481 + $0x2c] sm:$0xf]
      %v1494 = vld [vmem:[%s1481 + $0x30] sm:$0xf]
      %v1495 = vld [vmem:[%s1481 + $0x34] sm:$0xf]
      %v1496 = vld [vmem:[%s1481 + $0x38] sm:$0xf]
      %v1497 = vld [vmem:[%s1481 + $0x3c] sm:$0xf]
      %v1514 = vunpack.c.l.b16 %v1482
      %v1515 = vunpack.c.l.b16 %v1483
      %v1516 = vunpack.c.l.b16 %v1484
      %v1517 = vunpack.c.l.b16 %v1485
      %v1518 = vunpack.c.l.b16 %v1486
      %v1519 = vunpack.c.l.b16 %v1487
      %v1520 = vunpack.c.l.b16 %v1488
      %v1521 = vunpack.c.l.b16 %v1489
      %v1522 = vunpack.c.l.b16 %v1490
      %v1523 = vunpack.c.l.b16 %v1491
      %v1524 = vunpack.c.l.b16 %v1492
      %v1525 = vunpack.c.l.b16 %v1493
      %v1526 = vunpack.c.l.b16 %v1494
      %v1527 = vunpack.c.l.b16 %v1495
      %v1528 = vunpack.c.l.b16 %v1496
      %v1529 = vunpack.c.l.b16 %v1497
      %v1530 = vpack.c.b16 %v1515, %v1514
      %v1531 = vpack.c.b16 %v1517, %v1516
      %v1532 = vpack.c.b16 %v1519, %v1518
      %v1533 = vpack.c.b16 %v1521, %v1520
      %v1534 = vpack.c.b16 %v1523, %v1522
      %v1535 = vpack.c.b16 %v1525, %v1524
      %v1536 = vpack.c.b16 %v1527, %v1526
      %v1537 = vpack.c.b16 %v1529, %v1528
      %1546 = vmatpush.bf16.msra.mxu0 %v1537
      %1547 = vmatpush.bf16.msra.mxu0 %v1536
      %1548 = vmatpush.bf16.msra.mxu0 %v1535
      %1549 = vmatpush.bf16.msra.mxu0 %v1534
      %1550 = vmatpush.bf16.msra.mxu0 %v1533
      %1551 = vmatpush.bf16.msra.mxu0 %v1532
      %1552 = vmatpush.bf16.msra.mxu0 %v1531
      %1553 = vmatpush.bf16.msra.mxu0 %v1530
      %1554 = vmatmul.bf16.gmra.mxu0 %v1477
      %v1555 = vpop.f32.mrf.mxu0
      %v1556 = vadd.f32 0.0, %v1555
      %v1557 = vpop.f32.mrf.mxu0
      %v1558 = vadd.f32 0.0, %v1557
      %1559 = vmatmul.bf16.gmra.mxu0 %v1478
      %v1560 = vpop.f32.mrf.mxu0
      %v1561 = vadd.f32 0.0, %v1560
      %v1562 = vpop.f32.mrf.mxu0
      %v1563 = vadd.f32 0.0, %v1562
      %1564 = vmatmul.bf16.gmra.mxu0 %v1479
      %v1565 = vpop.f32.mrf.mxu0
      %v1566 = vadd.f32 0.0, %v1565
      %v1567 = vpop.f32.mrf.mxu0
      %v1568 = vadd.f32 0.0, %v1567
      %1569 = vmatmul.bf16.gmra.mxu0 %v1480
      %v1570 = vpop.f32.mrf.mxu0
      %v1571 = vadd.f32 0.0, %v1570
      %v1572 = vpop.f32.mrf.mxu0
      %v1573 = vadd.f32 0.0, %v1572
      %1574 = vdwg.mxu0
      %v1575 = vld [vmem:[#allocation2] sm:$0xff]
      %v1576 = vld [vmem:[#allocation2 + $0x8] sm:$0xff]
      %v1577 = vld [vmem:[#allocation2 + $0x10] sm:$0xff]
      %v1578 = vld [vmem:[#allocation2 + $0x18] sm:$0xff]
      %v1579 = vld [vmem:[#allocation2 + $0x20] sm:$0xff]
      %v1580 = vld [vmem:[#allocation2 + $0x28] sm:$0xff]
      %v1581 = vld [vmem:[#allocation2 + $0x30] sm:$0xff]
      %v1582 = vld [vmem:[#allocation2 + $0x38] sm:$0xff]
      %v1583 = vadd.f32 %v1575, %v1556
      %v1584 = vadd.f32 %v1576, %v1558
      %v1585 = vadd.f32 %v1577, %v1561
      %v1586 = vadd.f32 %v1578, %v1563
      %v1587 = vadd.f32 %v1579, %v1566
      %v1588 = vadd.f32 %v1580, %v1568
      %v1589 = vadd.f32 %v1581, %v1571
      %v1590 = vadd.f32 %v1582, %v1573
      %1591 = vst [vmem:[#allocation2] sm:$0xff] %v1583
      %1592 = vst [vmem:[#allocation2 + $0x8] sm:$0xff] %v1584
      %1593 = vst [vmem:[#allocation2 + $0x10] sm:$0xff] %v1585
      %1594 = vst [vmem:[#allocation2 + $0x18] sm:$0xff] %v1586
      %1595 = vst [vmem:[#allocation2 + $0x20] sm:$0xff] %v1587
      %1596 = vst [vmem:[#allocation2 + $0x28] sm:$0xff] %v1588
      %1597 = vst [vmem:[#allocation2 + $0x30] sm:$0xff] %v1589
      %1598 = vst [vmem:[#allocation2 + $0x38] sm:$0xff] %v1590
      %v1599 = vld [vmem:[#allocation2] sm:$0xff]
      %v1600 = vld [vmem:[#allocation2 + $0x8] sm:$0xff]
      %v1601 = vld [vmem:[#allocation2 + $0x10] sm:$0xff]
      %v1602 = vld [vmem:[#allocation2 + $0x18] sm:$0xff]
      %v1603 = vld [vmem:[#allocation2 + $0x20] sm:$0xff]
      %v1604 = vld [vmem:[#allocation2 + $0x28] sm:$0xff]
      %v1605 = vld [vmem:[#allocation2 + $0x30] sm:$0xff]
      %v1606 = vld [vmem:[#allocation2 + $0x38] sm:$0xff]
      %v1607 = vld [vmem:[%s2] sm:$0x1]
      %v1609 = vperm.slane %v1607, 0
      %v1611 = vadd.f32 %v1599, %v1609
      %v1612 = vadd.f32 %v1600, %v1609
      %v1613 = vadd.f32 %v1601, %v1609
      %v1614 = vadd.f32 %v1602, %v1609
      %v1615 = vadd.f32 %v1603, %v1609
      %v1616 = vadd.f32 %v1604, %v1609
      %v1617 = vadd.f32 %v1605, %v1609
      %v1618 = vadd.f32 %v1606, %v1609
      %v1619 = vmax.f32 %v1611, 0.0
      %v1620 = vmax.f32 %v1612, 0.0
      %v1621 = vmax.f32 %v1613, 0.0
      %v1622 = vmax.f32 %v1614, 0.0
      %v1623 = vmax.f32 %v1615, 0.0
      %v1624 = vmax.f32 %v1616, 0.0
      %v1625 = vmax.f32 %v1617, 0.0
      %v1626 = vmax.f32 %v1618, 0.0
      %v1627 = vpack.c.bf16 %v1619, %v1619
      %v1628 = vpack.c.bf16 %v1620, %v1620
      %v1629 = vpack.c.bf16 %v1621, %v1621
      %v1630 = vpack.c.bf16 %v1622, %v1622
      %v1631 = vpack.c.bf16 %v1623, %v1623
      %v1632 = vpack.c.bf16 %v1624, %v1624
      %v1633 = vpack.c.bf16 %v1625, %v1625
      %v1634 = vpack.c.bf16 %v1626, %v1626
      %1635 = vst [vmem:[%s175] sm:$0xf] %v1627
      %1636 = vst [vmem:[%s175 + $0x4] sm:$0xf] %v1628
      %1637 = vst [vmem:[%s175 + $0x8] sm:$0xf] %v1629
      %1638 = vst [vmem:[%s175 + $0xc] sm:$0xf] %v1630
      %1639 = vst [vmem:[%s175 + $0x10] sm:$0xf] %v1631
      %1640 = vst [vmem:[%s175 + $0x14] sm:$0xf] %v1632
      %1641 = vst [vmem:[%s175 + $0x18] sm:$0xf] %v1633
      %1642 = vst [vmem:[%s175 + $0x1c] sm:$0xf] %v1634
      %p1643 = scmp.lt.s32.totalorder %s14, 1
      %s1644 = scalar_select %p1643, %s14, 1
      %s1645 = smul.addr %s1644, 8
      %s1646 = smul.addr %s1645, 4
      %s1647 = scalar_lea.vmem %s3, %s1646
      // Predicated region
      $region33: #{residual_block_forward.4} parent=31 // pred_check
        %p1648 = pneg %p100
      $region34: #{residual_block_forward.4} parent=31 // pred_check_branch
        %1650 = sbr.rel (%p1648) target = $region36
      $region35: #{residual_block_forward.4} parent=31 // pred_region
        _
      $region36: #{residual_block_forward.4} parent=31 // pred_fallthru
        _
    $region32: #{residual_block_forward.4} parent=5 // pred_fallthru
      _
    %p1651 = scmp.le.s32.totalorder 2, %s9
    // Predicated region
    $region37: #{residual_block_forward.4} parent=5 // pred_check
      %p1652 = pneg %p1651
    $region38: #{residual_block_forward.4} parent=5 // pred_check_branch
      %1654 = sbr.rel (%p1652) target = $region40
    $region39: #{residual_block_forward.4} parent=5 // pred_region
      %s1655 = ssub.s32 %s9, 2
      // Predicated region
      $region41: #{residual_block_forward.4} parent=39 // pred_check
        %p1656 = pneg %p106
      $region42: #{residual_block_forward.4} parent=39 // pred_check_branch
        %1658 = sbr.rel (%p1656) target = $region44
      $region43: #{residual_block_forward.4} parent=39 // pred_region
        %p1659 = scmp.lt.s32.totalorder %s15, 1
        %s1660 = scalar_select %p1659, %s15, 1
        %s1661 = smul.addr %s1660, 8
        %s1662 = smul.addr %s1661, 4
        %s1663 = scalar_lea.vmem %s3, %s1662
      $region44: #{residual_block_forward.4} parent=39 // pred_fallthru
        _
    $region40: #{residual_block_forward.4} parent=5 // pred_fallthru
      _
  $region6: #{residual_block_forward.4} parent=0 // loop_footer
    %s13 = sadd.s32 1, %s9
  $region7: #{residual_block_forward.4} parent=0 // loop_footer_branch
    %8 = sbr.rel target = $region3
  $region8: #{residual_block_forward.4} parent=0 // loop_exit
    _

// kernel: residual_block_forward.5
$region0: #{residual_block_forward.5}
  #allocation0 [shape = 'u32[]', space=smem, size = 0x4, offset = 0x4, fixed_abs, tag = 'smem constant byte address 0x4 - core index']
  #allocation1 [shape = 'u32[72,128]{1,0:T(1,128)}', space=vmem, size = 0x9000, scoped, tag = 'internal scratch']
  %s0 = inlined_call_operand.vmem [shape: bf16[128,128], index: 0, kind: input, shape index: {}]
  %s1 = inlined_call_operand.vmem [shape: bf16[128,128], index: 1, kind: input, shape index: {}]
  %s2 = inlined_call_operand.vmem [shape: bf16[128,128], index: 2, kind: input, shape index: {}]
  %s3 = inlined_call_operand.vmem [shape: bf16[128,128], index: 3, kind: input, shape index: {}]
  %s4 = inlined_call_operand.vmem [shape: f32[1,128], index: 4, kind: input, shape index: {}]
  %s5 = inlined_call_operand.vmem [shape: f32[128,128], index: 5, kind: output, shape index: {}]
  %s6 = sld [smem:[#allocation0]]
  $region53: #{residual_block_forward.5} parent=0
    _
  %s8 = ssub.s32 1, %s6
  %s9 = scalar_select 0, %s8, %s6
  loop: start=0, step=1, limit=4
  $region2: #{residual_block_forward.5} parent=0 // loop_pre_header
    _
  $region3: #{residual_block_forward.5} parent=0 // loop_header
    %s11 = sphi 0, %s15
    %p12 = scmp.ge.s32.totalorder %s11, 4
    %s21 = sphi 0, %s23
    %s24 = sphi 0, %s21
    %s25 = sphi 0, %s24
    %s41 = sphi 0, %s25
    %s45 = sphi 0, %s45
    %s47 = sphi 0, %s45
    %s48 = sphi 0, %s47
    %s62 = sphi 0, %s48
    %s68 = sphi 0, %s70
    %s71 = sphi 0, %s68
    %s72 = sphi 0, %s71
    %s88 = sphi 0, %s72
    %s92 = sphi 0, %s92
    %s94 = sphi 0, %s92
    %s95 = sphi 0, %s94
    %s109 = sphi 0, %s95
    %s113 = sphi 0, %s113
    %s115 = sphi 0, %s113
    %s116 = sphi 0, %s115
    %s130 = sphi 0, %s116
    %s136 = sphi 0, %s138
    %s139 = sphi 0, %s136
    %s140 = sphi 0, %s139
    %s156 = sphi 0, %s140
  $region4: #{residual_block_forward.5} parent=0 // loop_header_branch
    %14 = sbr.rel (%p12) target = $region8
  $region5: #{residual_block_forward.5} parent=0 // loop_body
    %s16 = ssub.s32 %s11, 1
    %s17 = ssub.s32 %s11, 2
    %s18 = sadd.s32 %s11, 1
    %s19 = ssub.s32 %s11, %s18
    %p20 = scmp.eq.s32.totalorder %s19, 0
    %s22 = sadd.s32 %s21, 1
    %s23 = scalar_select %p20, %s21, %s22
    %p26 = pneg %p20
    %p27 = scmp.eq.s32.totalorder %s11, 1
    %p28 = por %p26, %p27
    %p29 = scmp.ne.s32.totalorder %s21, %s24
    %p30 = scmp.eq.s32.totalorder %s11, 0
    %p31 = por %p29, %p30
    %p32 = scmp.ne.s32.totalorder %s21, %s24
    %p33 = scmp.eq.s32.totalorder %s16, 1
    %p34 = por %p32, %p33
    %p35 = scmp.ne.s32.totalorder %s24, %s25
    %p36 = scmp.eq.s32.totalorder %s16, 0
    %p37 = por %p35, %p36
    %p38 = scmp.ne.s32.totalorder %s24, %s25
    %p39 = scmp.eq.s32.totalorder %s17, 1
    %p40 = por %p38, %p39
    %p42 = scmp.ne.s32.totalorder %s25, %s41
    %p43 = scmp.eq.s32.totalorder %s17, 0
    %p44 = por %p42, %p43
    %s46 = sadd.s32 %s45, 1
    %p49 = scmp.eq.s32.totalorder %s11, 1
    %p50 = scmp.ne.s32.totalorder %s45, %s47
    %p51 = scmp.eq.s32.totalorder %s11, 0
    %p52 = por %p50, %p51
    %p53 = scmp.ne.s32.totalorder %s45, %s47
    %p54 = scmp.eq.s32.totalorder %s16, 1
    %p55 = por %p53, %p54
    %p56 = scmp.ne.s32.totalorder %s47, %s48
    %p57 = scmp.eq.s32.totalorder %s16, 0
    %p58 = por %p56, %p57
    %p59 = scmp.ne.s32.totalorder %s47, %s48
    %p60 = scmp.eq.s32.totalorder %s17, 1
    %p61 = por %p59, %p60
    %p63 = scmp.ne.s32.totalorder %s48, %s62
    %p64 = scmp.eq.s32.totalorder %s17, 0
    %p65 = por %p63, %p64
    %s66 = ssub.s32 %s11, %s18
    %p67 = scmp.eq.s32.totalorder %s66, 0
    %s69 = sadd.s32 %s68, 1
    %s70 = scalar_select %p67, %s68, %s69
    %p73 = pneg %p67
    %p74 = scmp.eq.s32.totalorder %s11, 1
    %p75 = por %p73, %p74
    %p76 = scmp.ne.s32.totalorder %s68, %s71
    %p77 = scmp.eq.s32.totalorder %s11, 0
    %p78 = por %p76, %p77
    %p79 = scmp.ne.s32.totalorder %s68, %s71
    %p80 = scmp.eq.s32.totalorder %s16, 1
    %p81 = por %p79, %p80
    %p82 = scmp.ne.s32.totalorder %s71, %s72
    %p83 = scmp.eq.s32.totalorder %s16, 0
    %p84 = por %p82, %p83
    %p85 = scmp.ne.s32.totalorder %s71, %s72
    %p86 = scmp.eq.s32.totalorder %s17, 1
    %p87 = por %p85, %p86
    %p89 = scmp.ne.s32.totalorder %s72, %s88
    %p90 = scmp.eq.s32.totalorder %s17, 0
    %p91 = por %p89, %p90
    %s93 = sadd.s32 %s92, 1
    %p96 = scmp.eq.s32.totalorder %s11, 1
    %p97 = scmp.ne.s32.totalorder %s92, %s94
    %p98 = scmp.eq.s32.totalorder %s11, 0
    %p99 = por %p97, %p98
    %p100 = scmp.ne.s32.totalorder %s92, %s94
    %p101 = scmp.eq.s32.totalorder %s16, 1
    %p102 = por %p100, %p101
    %p103 = scmp.ne.s32.totalorder %s94, %s95
    %p104 = scmp.eq.s32.totalorder %s16, 0
    %p105 = por %p103, %p104
    %p106 = scmp.ne.s32.totalorder %s94, %s95
    %p107 = scmp.eq.s32.totalorder %s17, 1
    %p108 = por %p106, %p107
    %p110 = scmp.ne.s32.totalorder %s95, %s109
    %p111 = scmp.eq.s32.totalorder %s17, 0
    %p112 = por %p110, %p111
    %s114 = sadd.s32 %s113, 1
    %p117 = scmp.eq.s32.totalorder %s11, 1
    %p118 = scmp.ne.s32.totalorder %s113, %s115
    %p119 = scmp.eq.s32.totalorder %s11, 0
    %p120 = por %p118, %p119
    %p121 = scmp.ne.s32.totalorder %s113, %s115
    %p122 = scmp.eq.s32.totalorder %s16, 1
    %p123 = por %p121, %p122
    %p124 = scmp.ne.s32.totalorder %s115, %s116
    %p125 = scmp.eq.s32.totalorder %s16, 0
    %p126 = por %p124, %p125
    %p127 = scmp.ne.s32.totalorder %s115, %s116
    %p128 = scmp.eq.s32.totalorder %s17, 1
    %p129 = por %p127, %p128
    %p131 = scmp.ne.s32.totalorder %s116, %s130
    %p132 = scmp.eq.s32.totalorder %s17, 0
    %p133 = por %p131, %p132
    %s134 = ssub.s32 %s11, %s18
    %p135 = scmp.eq.s32.totalorder %s134, 0
    %s137 = sadd.s32 %s136, 1
    %s138 = scalar_select %p135, %s136, %s137
    %p141 = pneg %p135
    %p142 = scmp.eq.s32.totalorder %s11, 1
    %p143 = por %p141, %p142
    %p144 = scmp.ne.s32.totalorder %s136, %s139
    %p145 = scmp.eq.s32.totalorder %s11, 0
    %p146 = por %p144, %p145
    %p147 = scmp.ne.s32.totalorder %s136, %s139
    %p148 = scmp.eq.s32.totalorder %s16, 1
    %p149 = por %p147, %p148
    %p150 = scmp.ne.s32.totalorder %s139, %s140
    %p151 = scmp.eq.s32.totalorder %s16, 0
    %p152 = por %p150, %p151
    %p153 = scmp.ne.s32.totalorder %s139, %s140
    %p154 = scmp.eq.s32.totalorder %s17, 1
    %p155 = por %p153, %p154
    %p157 = scmp.ne.s32.totalorder %s140, %s156
    %p158 = scmp.eq.s32.totalorder %s17, 0
    %p159 = por %p157, %p158
    %p160 = scmp.le.s32.totalorder 1, %s11
    %p161 = scmp.lt.s32.totalorder %s11, 3
    %p162 = pnand %p160, %p161
    %p163 = pneg %p162
    // Predicated region
    $region9: #{residual_block_forward.5} parent=5 // pred_check
      _
    $region10: #{residual_block_forward.5} parent=5 // pred_check_branch
      %165 = sbr.rel (%p162) target = $region12
    $region11: #{residual_block_forward.5} parent=5 // pred_region
      %s166 = ssub.s32 %s11, 1
      // Predicated region
      $region13: #{residual_block_forward.5} parent=11 // pred_check
        %p167 = pneg %p58
      $region14: #{residual_block_forward.5} parent=11 // pred_check_branch
        %169 = sbr.rel (%p167) target = $region16
      $region15: #{residual_block_forward.5} parent=11 // pred_region
        _
      $region16: #{residual_block_forward.5} parent=11 // pred_fallthru
        _
      // Predicated region
      $region17: #{residual_block_forward.5} parent=11 // pred_check
        %p170 = pneg %p105
      $region18: #{residual_block_forward.5} parent=11 // pred_check_branch
        %172 = sbr.rel (%p170) target = $region20
      $region19: #{residual_block_forward.5} parent=11 // pred_region
        _
      $region20: #{residual_block_forward.5} parent=11 // pred_fallthru
        _
      // Predicated region
      $region21: #{residual_block_forward.5} parent=11 // pred_check
        %p173 = pneg %p126
      $region22: #{residual_block_forward.5} parent=11 // pred_check_branch
        %175 = sbr.rel (%p173) target = $region24
      $region23: #{residual_block_forward.5} parent=11 // pred_region
        _
      $region24: #{residual_block_forward.5} parent=11 // pred_fallthru
        _
    $region12: #{residual_block_forward.5} parent=5 // pred_fallthru
      _
    %p176 = scmp.lt.s32.totalorder %s11, 2
    // Predicated region
    $region25: #{residual_block_forward.5} parent=5 // pred_check
      %p177 = pneg %p176
    $region26: #{residual_block_forward.5} parent=5 // pred_check_branch
      %179 = sbr.rel (%p177) target = $region28
    $region27: #{residual_block_forward.5} parent=5 // pred_region
      // Predicated region
      $region29: #{residual_block_forward.5} parent=27 // pred_check
        %p180 = pneg %p31
      $region30: #{residual_block_forward.5} parent=27 // pred_check_branch
        %182 = sbr.rel (%p180) target = $region32
      $region31: #{residual_block_forward.5} parent=27 // pred_region
        %s183 = smul.u32 8, %s11
        %p184 = scmp.lt.s32.totalorder %s183, 15
        %s185 = scalar_select %p184, %s183, 15
        %s186 = smul.addr %s185, 4
        %s187 = scalar_lea.vmem %s0, %s186
        %s188 = smul.u32 8, %s11
      $region32: #{residual_block_forward.5} parent=27 // pred_fallthru
        _
      // Predicated region
      $region33: #{residual_block_forward.5} parent=27 // pred_check
        %p189 = pneg %p78
      $region34: #{residual_block_forward.5} parent=27 // pred_check_branch
        %191 = sbr.rel (%p189) target = $region36
      $region35: #{residual_block_forward.5} parent=27 // pred_region
        %s192 = smul.u32 8, %s11
        %p193 = scmp.lt.s32.totalorder %s192, 15
        %s194 = scalar_select %p193, %s192, 15
        %s195 = smul.addr %s194, 4
        %s196 = scalar_lea.vmem %s2, %s195
        %s197 = smul.u32 8, %s11
      $region36: #{residual_block_forward.5} parent=27 // pred_fallthru
        _
    $region28: #{residual_block_forward.5} parent=5 // pred_fallthru
      _
    %p198 = scmp.le.s32.totalorder 1, %s11
    %p199 = scmp.lt.s32.totalorder %s11, 3
    %p200 = pnand %p198, %p199
    %p201 = pneg %p200
    // Predicated region
    $region37: #{residual_block_forward.5} parent=5 // pred_check
      _
    $region38: #{residual_block_forward.5} parent=5 // pred_check_branch
      %203 = sbr.rel (%p200) target = $region40
    $region39: #{residual_block_forward.5} parent=5 // pred_region
      %s204 = ssub.s32 %s11, 1
      %s205 = smul.u32 8, %s16
      %p206 = scmp.lt.s32.totalorder %s205, 15
      %s207 = scalar_select %p206, %s205, 15
      %s208 = smul.addr %s207, 4
      %s209 = scalar_lea.vmem %s0, %s208
      %p210 = pneg %p37
      %p211 = pneg %p34
      %p212 = pneg %p58
      %p213 = pneg %p55
      %s214 = smul.u32 8, %s16
      %p215 = scmp.lt.s32.totalorder %s214, 15
      %s216 = scalar_select %p215, %s214, 15
      %s217 = smul.addr %s216, 4
      %s218 = scalar_lea.vmem %s2, %s217
      %p219 = pneg %p84
      %p220 = pneg %p81
      %p221 = pneg %p105
      %p222 = pneg %p102
      %p223 = pneg %p126
      %p224 = pneg %p123
      %p225 = pneg %p152
      %p226 = pneg %p149
      %s227 = smul.u32 8, %s16
      %p228 = scmp.lt.s32.totalorder %s227, 15
      %s229 = scalar_select %p228, %s227, 15
      %s230 = smul.addr %s229, 8
      %s231 = scalar_lea.vmem %s5, %s230
      %s232 = smul.u32 8, %s16
      %p233 = scmp.lt.s32.totalorder %s232, 15
      %s234 = scalar_select %p233, %s232, 15
      %s235 = smul.addr %s234, 4
      %s236 = scalar_lea.vmem %s0, %s235
      %s237 = smul.u32 8, %s16
      %s238 = smul.u32 8, %s16
      %p239 = scmp.lt.s32.totalorder %s238, 15
      %s240 = scalar_select %p239, %s238, 15
      %s241 = smul.addr %s240, 4
      %s242 = scalar_lea.vmem %s2, %s241
      %s243 = smul.u32 8, %s16
      %s244 = smul.u32 8, %s16
      %p245 = scmp.lt.s32.totalorder %s244, 15
      %s246 = scalar_select %p245, %s244, 15
      %s247 = smul.addr %s246, 8
      %s248 = scalar_lea.vmem %s5, %s247
      %s249 = smul.u32 8, %s16
      %v250 = vld [vmem:[%s236] sm:$0xf]
      %v251 = vld [vmem:[%s236 + $0x4] sm:$0xf]
      %v252 = vld [vmem:[%s236 + $0x8] sm:$0xf]
      %v253 = vld [vmem:[%s236 + $0xc] sm:$0xf]
      %v254 = vld [vmem:[%s236 + $0x10] sm:$0xf]
      %v255 = vld [vmem:[%s236 + $0x14] sm:$0xf]
      %v256 = vld [vmem:[%s236 + $0x18] sm:$0xf]
      %v257 = vld [vmem:[%s236 + $0x1c] sm:$0xf]
      %v258 = vld [vmem:[%s1] sm:$0xf]
      %v259 = vld [vmem:[%s1 + $0x4] sm:$0xf]
      %v260 = vld [vmem:[%s1 + $0x8] sm:$0xf]
      %v261 = vld [vmem:[%s1 + $0xc] sm:$0xf]
      %v262 = vld [vmem:[%s1 + $0x10] sm:$0xf]
      %v263 = vld [vmem:[%s1 + $0x14] sm:$0xf]
      %v264 = vld [vmem:[%s1 + $0x18] sm:$0xf]
      %v265 = vld [vmem:[%s1 + $0x1c] sm:$0xf]
      %v266 = vld [vmem:[%s1 + $0x20] sm:$0xf]
      %v267 = vld [vmem:[%s1 + $0x24] sm:$0xf]
      %v268 = vld [vmem:[%s1 + $0x28] sm:$0xf]
      %v269 = vld [vmem:[%s1 + $0x2c] sm:$0xf]
      %v270 = vld [vmem:[%s1 + $0x30] sm:$0xf]
      %v271 = vld [vmem:[%s1 + $0x34] sm:$0xf]
      %v272 = vld [vmem:[%s1 + $0x38] sm:$0xf]
      %v273 = vld [vmem:[%s1 + $0x3c] sm:$0xf]
      %v274 = vld [vmem:[%s242] sm:$0xf]
      %v275 = vld [vmem:[%s242 + $0x4] sm:$0xf]
      %v276 = vld [vmem:[%s242 + $0x8] sm:$0xf]
      %v277 = vld [vmem:[%s242 + $0xc] sm:$0xf]
      %v278 = vld [vmem:[%s242 + $0x10] sm:$0xf]
      %v279 = vld [vmem:[%s242 + $0x14] sm:$0xf]
      %v280 = vld [vmem:[%s242 + $0x18] sm:$0xf]
      %v281 = vld [vmem:[%s242 + $0x1c] sm:$0xf]
      %v282 = vld [vmem:[%s3] sm:$0xf]
      %v283 = vld [vmem:[%s3 + $0x4] sm:$0xf]
      %v284 = vld [vmem:[%s3 + $0x8] sm:$0xf]
      %v285 = vld [vmem:[%s3 + $0xc] sm:$0xf]
      %v286 = vld [vmem:[%s3 + $0x10] sm:$0xf]
      %v287 = vld [vmem:[%s3 + $0x14] sm:$0xf]
      %v288 = vld [vmem:[%s3 + $0x18] sm:$0xf]
      %v289 = vld [vmem:[%s3 + $0x1c] sm:$0xf]
      %v290 = vld [vmem:[%s3 + $0x20] sm:$0xf]
      %v291 = vld [vmem:[%s3 + $0x24] sm:$0xf]
      %v292 = vld [vmem:[%s3 + $0x28] sm:$0xf]
      %v293 = vld [vmem:[%s3 + $0x2c] sm:$0xf]
      %v294 = vld [vmem:[%s3 + $0x30] sm:$0xf]
      %v295 = vld [vmem:[%s3 + $0x34] sm:$0xf]
      %v296 = vld [vmem:[%s3 + $0x38] sm:$0xf]
      %v297 = vld [vmem:[%s3 + $0x3c] sm:$0xf]
      %v306 = vunpack.c.l.b16 %v274
      %v307 = vunpack.c.l.b16 %v275
      %v308 = vunpack.c.l.b16 %v276
      %v309 = vunpack.c.l.b16 %v277
      %v310 = vunpack.c.l.b16 %v278
      %v311 = vunpack.c.l.b16 %v279
      %v312 = vunpack.c.l.b16 %v280
      %v313 = vunpack.c.l.b16 %v281
      %v314 = vpack.c.b16 %v307, %v306
      %v315 = vpack.c.b16 %v309, %v308
      %v316 = vpack.c.b16 %v311, %v310
      %v317 = vpack.c.b16 %v313, %v312
      %v338 = vunpack.c.l.b16 %v282
      %v339 = vunpack.c.l.b16 %v283
      %v340 = vunpack.c.l.b16 %v284
      %v341 = vunpack.c.l.b16 %v285
      %v342 = vunpack.c.l.b16 %v286
      %v343 = vunpack.c.l.b16 %v287
      %v344 = vunpack.c.l.b16 %v288
      %v345 = vunpack.c.l.b16 %v289
      %v346 = vunpack.c.l.b16 %v290
      %v347 = vunpack.c.l.b16 %v291
      %v348 = vunpack.c.l.b16 %v292
      %v349 = vunpack.c.l.b16 %v293
      %v350 = vunpack.c.l.b16 %v294
      %v351 = vunpack.c.l.b16 %v295
      %v352 = vunpack.c.l.b16 %v296
      %v353 = vunpack.c.l.b16 %v297
      %v354 = vpack.c.b16 %v339, %v338
      %v355 = vpack.c.b16 %v341, %v340
      %v356 = vpack.c.b16 %v343, %v342
      %v357 = vpack.c.b16 %v345, %v344
      %v358 = vpack.c.b16 %v347, %v346
      %v359 = vpack.c.b16 %v349, %v348
      %v360 = vpack.c.b16 %v351, %v350
      %v361 = vpack.c.b16 %v353, %v352
      %370 = vmatpush.bf16.msra.mxu0 %v361
      %371 = vmatpush.bf16.msra.mxu0 %v360
      %372 = vmatpush.bf16.msra.mxu0 %v359
      %373 = vmatpush.bf16.msra.mxu0 %v358
      %374 = vmatpush.bf16.msra.mxu0 %v357
      %375 = vmatpush.bf16.msra.mxu0 %v356
      %376 = vmatpush.bf16.msra.mxu0 %v355
      %377 = vmatpush.bf16.msra.mxu0 %v354
      %378 = vmatmul.bf16.gmra.mxu0 %v314
      %v379 = vpop.f32.mrf.mxu0
      %v380 = vadd.f32 0.0, %v379
      %v381 = vpop.f32.mrf.mxu0
      %v382 = vadd.f32 0.0, %v381
      %383 = vmatmul.bf16.gmra.mxu0 %v315
      %v384 = vpop.f32.mrf.mxu0
      %v385 = vadd.f32 0.0, %v384
      %v386 = vpop.f32.mrf.mxu0
      %v387 = vadd.f32 0.0, %v386
      %388 = vmatmul.bf16.gmra.mxu0 %v316
      %v389 = vpop.f32.mrf.mxu0
      %v390 = vadd.f32 0.0, %v389
      %v391 = vpop.f32.mrf.mxu0
      %v392 = vadd.f32 0.0, %v391
      %393 = vmatmul.bf16.gmra.mxu0 %v317
      %v394 = vpop.f32.mrf.mxu0
      %v395 = vadd.f32 0.0, %v394
      %v396 = vpop.f32.mrf.mxu0
      %v397 = vadd.f32 0.0, %v396
      %398 = vdwg.mxu0
      %v407 = vunpack.c.l.b16 %v250
      %v408 = vunpack.c.l.b16 %v251
      %v409 = vunpack.c.l.b16 %v252
      %v410 = vunpack.c.l.b16 %v253
      %v411 = vunpack.c.l.b16 %v254
      %v412 = vunpack.c.l.b16 %v255
      %v413 = vunpack.c.l.b16 %v256
      %v414 = vunpack.c.l.b16 %v257
      %v415 = vpack.c.b16 %v408, %v407
      %v416 = vpack.c.b16 %v410, %v409
      %v417 = vpack.c.b16 %v412, %v411
      %v418 = vpack.c.b16 %v414, %v413
      %v439 = vunpack.c.l.b16 %v258
      %v440 = vunpack.c.l.b16 %v259
      %v441 = vunpack.c.l.b16 %v260
      %v442 = vunpack.c.l.b16 %v261
      %v443 = vunpack.c.l.b16 %v262
      %v444 = vunpack.c.l.b16 %v263
      %v445 = vunpack.c.l.b16 %v264
      %v446 = vunpack.c.l.b16 %v265
      %v447 = vunpack.c.l.b16 %v266
      %v448 = vunpack.c.l.b16 %v267
      %v449 = vunpack.c.l.b16 %v268
      %v450 = vunpack.c.l.b16 %v269
      %v451 = vunpack.c.l.b16 %v270
      %v452 = vunpack.c.l.b16 %v271
      %v453 = vunpack.c.l.b16 %v272
      %v454 = vunpack.c.l.b16 %v273
      %v455 = vpack.c.b16 %v440, %v439
      %v456 = vpack.c.b16 %v442, %v441
      %v457 = vpack.c.b16 %v444, %v443
      %v458 = vpack.c.b16 %v446, %v445
      %v459 = vpack.c.b16 %v448, %v447
      %v460 = vpack.c.b16 %v450, %v449
      %v461 = vpack.c.b16 %v452, %v451
      %v462 = vpack.c.b16 %v454, %v453
      %471 = vmatpush.bf16.msra.mxu0 %v462
      %472 = vmatpush.bf16.msra.mxu0 %v461
      %473 = vmatpush.bf16.msra.mxu0 %v460
      %474 = vmatpush.bf16.msra.mxu0 %v459
      %475 = vmatpush.bf16.msra.mxu0 %v458
      %476 = vmatpush.bf16.msra.mxu0 %v457
      %477 = vmatpush.bf16.msra.mxu0 %v456
      %478 = vmatpush.bf16.msra.mxu0 %v455
      %479 = vmatmul.bf16.gmra.mxu0 %v415
      %v480 = vpop.f32.mrf.mxu0
      %v481 = vadd.f32 %v380, %v480
      %v482 = vpop.f32.mrf.mxu0
      %v483 = vadd.f32 %v382, %v482
      %484 = vmatmul.bf16.gmra.mxu0 %v416
      %v485 = vpop.f32.mrf.mxu0
      %v486 = vadd.f32 %v385, %v485
      %v487 = vpop.f32.mrf.mxu0
      %v488 = vadd.f32 %v387, %v487
      %489 = vmatmul.bf16.gmra.mxu0 %v417
      %v490 = vpop.f32.mrf.mxu0
      %v491 = vadd.f32 %v390, %v490
      %v492 = vpop.f32.mrf.mxu0
      %v493 = vadd.f32 %v392, %v492
      %494 = vmatmul.bf16.gmra.mxu0 %v418
      %v495 = vpop.f32.mrf.mxu0
      %v496 = vadd.f32 %v395, %v495
      %v497 = vpop.f32.mrf.mxu0
      %v498 = vadd.f32 %v397, %v497
      %499 = vdwg.mxu0
      %v500 = vld [vmem:[%s4] sm:$0x1]
      %v502 = vperm.slane %v500, 0
      %v504 = vadd.f32 %v481, %v502
      %v505 = vadd.f32 %v483, %v502
      %v506 = vadd.f32 %v486, %v502
      %v507 = vadd.f32 %v488, %v502
      %v508 = vadd.f32 %v491, %v502
      %v509 = vadd.f32 %v493, %v502
      %v510 = vadd.f32 %v496, %v502
      %v511 = vadd.f32 %v498, %v502
      %v512 = vmax.f32 %v504, 0.0
      %v513 = vmax.f32 %v505, 0.0
      %v514 = vmax.f32 %v506, 0.0
      %v515 = vmax.f32 %v507, 0.0
      %v516 = vmax.f32 %v508, 0.0
      %v517 = vmax.f32 %v509, 0.0
      %v518 = vmax.f32 %v510, 0.0
      %v519 = vmax.f32 %v511, 0.0
      %520 = vst [vmem:[%s248] sm:$0xff] %v512
      %521 = vst [vmem:[%s248 + $0x8] sm:$0xff] %v513
      %522 = vst [vmem:[%s248 + $0x10] sm:$0xff] %v514
      %523 = vst [vmem:[%s248 + $0x18] sm:$0xff] %v515
      %524 = vst [vmem:[%s248 + $0x20] sm:$0xff] %v516
      %525 = vst [vmem:[%s248 + $0x28] sm:$0xff] %v517
      %526 = vst [vmem:[%s248 + $0x30] sm:$0xff] %v518
      %527 = vst [vmem:[%s248 + $0x38] sm:$0xff] %v519
      %s528 = smul.u32 8, %s16
      %p529 = scmp.lt.s32.totalorder %s528, 15
      %s530 = scalar_select %p529, %s528, 15
      %s531 = smul.addr %s530, 8
      %s532 = scalar_lea.vmem %s5, %s531
      // Predicated region
      $region41: #{residual_block_forward.5} parent=39 // pred_check
        %p533 = pneg %p149
      $region42: #{residual_block_forward.5} parent=39 // pred_check_branch
        %535 = sbr.rel (%p533) target = $region44
      $region43: #{residual_block_forward.5} parent=39 // pred_region
        %s536 = smul.u32 8, %s16
      $region44: #{residual_block_forward.5} parent=39 // pred_fallthru
        _
    $region40: #{residual_block_forward.5} parent=5 // pred_fallthru
      _
    %p537 = scmp.le.s32.totalorder 2, %s11
    // Predicated region
    $region45: #{residual_block_forward.5} parent=5 // pred_check
      %p538 = pneg %p537
    $region46: #{residual_block_forward.5} parent=5 // pred_check_branch
      %540 = sbr.rel (%p538) target = $region48
    $region47: #{residual_block_forward.5} parent=5 // pred_region
      %s541 = ssub.s32 %s11, 2
      // Predicated region
      $region49: #{residual_block_forward.5} parent=47 // pred_check
        %p542 = pneg %p155
      $region50: #{residual_block_forward.5} parent=47 // pred_check_branch
        %544 = sbr.rel (%p542) target = $region52
      $region51: #{residual_block_forward.5} parent=47 // pred_region
        %s545 = smul.u32 8, %s17
        %p546 = scmp.lt.s32.totalorder %s545, 15
        %s547 = scalar_select %p546, %s545, 15
        %s548 = smul.addr %s547, 8
        %s549 = scalar_lea.vmem %s5, %s548
      $region52: #{residual_block_forward.5} parent=47 // pred_fallthru
        _
    $region48: #{residual_block_forward.5} parent=5 // pred_fallthru
      _
  $region6: #{residual_block_forward.5} parent=0 // loop_footer
    %s15 = sadd.s32 1, %s11
  $region7: #{residual_block_forward.5} parent=0 // loop_footer_branch
    %10 = sbr.rel target = $region3
  $region8: #{residual_block_forward.5} parent=0 // loop_exit
    _

</llo_original>
